<compile_context>
chip_gen: v6e
topology: v6e:2x2x1
jax: 0.10.0
libtpu: 0.0.40
codegen_flags: <defaults>
</compile_context>

<pallas_src>
import functools
import math

import jax
import jax.numpy as jnp
from jax.experimental import pallas as pl
from jax.experimental.pallas import tpu as pltpu

LANE = 128


# ---------------------------------------------------------------------------
# Kernel: KxK conv (pre-padded input) + BN affine + optional residual + ReLU,
#         with an optional fused 1x1 projection-shortcut second output.
# ---------------------------------------------------------------------------
def _conv_bn_kernel(*refs, K, stride, Th, Wo, Wp, Cin, Cout,
                    relu, has_residual, has_shortcut):
    """One (image, output-row-band) tile.

    Inputs (in order):
      x_ref     (1, Hp, Wp, Cin)  padded image (bf16), VMEM-resident across r
      w_ref     (K, K*Cin, Cout)  per-tap-row weights, dx-major (bf16)
      scale_ref (1, Cout) f32     fused BN scale
      bias_ref  (1, Cout) f32     fused BN bias
      res_ref   (1, Th*Wo, Cout)  [optional] residual band (bf16)
      wsc/ssc/bsc                 [optional] fused 1x1 shortcut weight/BN
    Outputs:
      out_ref    (1, Th*Wo, Cout)
      sc_out_ref (1, Th*Wo, Cout) [optional]
    """
    it = iter(refs)
    x_ref, w_ref, scale_ref, bias_ref = next(it), next(it), next(it), next(it)
    res_ref = next(it) if has_residual else None
    if has_shortcut:
        wsc_ref, ssc_ref, bsc_ref = next(it), next(it), next(it)
    out_ref = next(it)
    sc_out_ref = next(it) if has_shortcut else None

    r = pl.program_id(1)
    row0 = pl.multiple_of(r * (Th * stride), Th * stride)
    band = (Th - 1) * stride + 1       # input rows per tap-row (after row stride)
    center = (K - 1) // 2              # tap equal to the 1x1 shortcut read

    # Load the whole input row band (+ halo rows) once per grid step.
    rows_all = x_ref[0, pl.ds(row0, band + K - 1), :, :]    # (band+K-1, Wp, Cin)

    if stride == 1:
        even_all, odd_all = rows_all, None
    else:
        # Parity-split the W (sublane) dim ONCE; the dx taps below then become
        # contiguous column slices (strided gathers hoisted out of the loops).
        n_even = max(dx // 2 + Wo for dx in range(0, K, 2))
        even_all = jax.lax.slice(rows_all, (0, 0, 0),
                                 (band + K - 1, 2 * (n_even - 1) + 1, Cin),
                                 (1, 2, 1))
        odd_all = None
        if K > 1:
            n_odd = max(dx // 2 + Wo for dx in range(1, K, 2))
            odd_all = jax.lax.slice(rows_all, (0, 1, 0),
                                    (band + K - 1, 2 * n_odd, Cin),
                                    (1, 2, 1))

    acc = None
    sc_patch = None
    for dy in range(K):
        taps = []
        for dx in range(K):
            if stride == 1:
                src, c0 = rows_all, dx
            else:
                src, c0 = (even_all, dx // 2) if dx % 2 == 0 else (odd_all, dx // 2)
            taps.append(jax.lax.slice(src, (dy, c0, 0),
                                      (dy + band, c0 + Wo, Cin),
                                      (stride, 1, 1)))       # (Th, Wo, Cin)
        if has_shortcut and dy == center:
            sc_patch = taps[center]                          # 1x1-conv input
        # Fold all K dx-taps into one MXU contraction of depth K*Cin.
        patch = taps[0] if K == 1 else jnp.concatenate(taps, axis=-1)
        patch = patch.reshape(Th * Wo, K * Cin)
        part = jnp.dot(patch, w_ref[dy], preferred_element_type=jnp.float32)
        acc = part if acc is None else acc + part            # local f32 accumulation

    y = acc * scale_ref[...] + bias_ref[...]                 # (Th*Wo, Cout)
    if has_residual:
        y = y + res_ref[0].astype(jnp.float32)
    if relu:
        y = jnp.maximum(y, 0.0)
    out_ref[0] = y.astype(out_ref.dtype)                     # single lane-dense store

    if has_shortcut:
        sc = jnp.dot(sc_patch.reshape(Th * Wo, Cin), wsc_ref[...],
                     preferred_element_type=jnp.float32)
        sc_out_ref[0] = (sc * ssc_ref[...] + bsc_ref[...]).astype(sc_out_ref.dtype)


# ---------------------------------------------------------------------------
# Wrapper (pallas_call plumbing)
# ---------------------------------------------------------------------------
def _pick_row_tile(Ho, Wo, target_pix=512):
    """Largest divisor Th of Ho with Th*Wo <= target_pix and a legal sublane
    tiling (Th*Wo % 8 == 0 or Th == Ho); falls back to the smallest legal
    divisor, never to a degenerate masked-store tile."""
    legal = [t for t in range(1, Ho + 1)
             if Ho % t == 0 and ((t * Wo) % 8 == 0 or t == Ho)]
    fitting = [t for t in legal if t * Wo <= target_pix]
    return max(fitting) if fitting else min(legal)


def conv_bn(x, w, scale, bias, *, stride=1, pad=0, relu=False,
            residual=None, shortcut=None, out_dtype=jnp.bfloat16):
    """x: (N,H,W,Cin) bf16 channel-padded.  w: (K, K*Cin, Cout) bf16.
    residual: optional (N, Ho*Wo, Cout) bf16 added before the final ReLU.
    shortcut: optional (w_sc (Cin,Cout), scale_sc, bias_sc) -> second output
              (fused 1x1 projection shortcut, read from the centre tap).
    Returns (N, Ho*Wo, Cout) [, (N, Ho*Wo, Cout)]."""
    N, H, W, Cin = x.shape
    K, KC, Cout = w.shape
    assert KC == K * Cin and stride in (1, 2)

    # TODO(synk): halo still via jnp.pad (extra HBM pass per conv).
    if pad:
        x = jnp.pad(x, ((0, 0), (pad, pad), (pad, pad), (0, 0)))
    Hp, Wp = H + 2 * pad, W + 2 * pad
    Ho = (Hp - K) // stride + 1
    Wo = (Wp - K) // stride + 1

    Th = _pick_row_tile(Ho, Wo)
    n_rt = Ho // Th

    kernel = functools.partial(
        _conv_bn_kernel, K=K, stride=stride, Th=Th, Wo=Wo, Wp=Wp,
        Cin=Cin, Cout=Cout, relu=relu,
        has_residual=residual is not None, has_shortcut=shortcut is not None)

    in_specs = [
        pl.BlockSpec((1, Hp, Wp, Cin), lambda n, r: (n, 0, 0, 0)),
        pl.BlockSpec((K, K * Cin, Cout), lambda n, r: (0, 0, 0)),
        pl.BlockSpec((1, Cout), lambda n, r: (0, 0)),
        pl.BlockSpec((1, Cout), lambda n, r: (0, 0)),
    ]
    args = [x, w, scale, bias]
    if residual is not None:
        in_specs.append(pl.BlockSpec((1, Th * Wo, Cout), lambda n, r: (n, r, 0)))
        args.append(residual)
    if shortcut is not None:
        wsc, ssc, bsc = shortcut
        in_specs += [pl.BlockSpec((Cin, Cout), lambda n, r: (0, 0)),
                     pl.BlockSpec((1, Cout), lambda n, r: (0, 0)),
                     pl.BlockSpec((1, Cout), lambda n, r: (0, 0))]
        args += [wsc, ssc, bsc]

    band_spec = pl.BlockSpec((1, Th * Wo, Cout), lambda n, r: (n, r, 0))
    if shortcut is not None:
        out_shape = (jax.ShapeDtypeStruct((N, Ho * Wo, Cout), out_dtype),
                     jax.ShapeDtypeStruct((N, Ho * Wo, Cout), out_dtype))
        out_specs = (band_spec, band_spec)
    else:
        out_shape = jax.ShapeDtypeStruct((N, Ho * Wo, Cout), out_dtype)
        out_specs = band_spec

    return pl.pallas_call(
        kernel,
        out_shape=out_shape,
        grid=(N, n_rt),
        in_specs=in_specs,
        out_specs=out_specs,
        compiler_params=pltpu.CompilerParams(
            dimension_semantics=("parallel", "parallel"),
            vmem_limit_bytes=64 * 1024 * 1024),
    )(*args)


# ---------------------------------------------------------------------------
# Parameter prep (channel padding to lane width, BN fusion, bf16 cast)
# ---------------------------------------------------------------------------
def _round_up(x, m):
    return (x + m - 1) // m * m


def _pad_channels(x, c_p):
    c = x.shape[-1]
    if c_p > c:
        x = jnp.pad(x, ((0, 0),) * (x.ndim - 1) + ((0, c_p - c),))
    return x


def _prep_w(w_hwio, cin_p, cout_p):
    K, K2, cin, cout = w_hwio.shape
    w = jnp.pad(w_hwio, ((0, 0), (0, 0), (0, cin_p - cin), (0, cout_p - cout)))
    # (K, K*Cin_p, Cout_p): tap-row slabs, dx-major along the contraction dim.
    return w.reshape(K, K2 * cin_p, cout_p).astype(jnp.bfloat16)


def _prep_w1x1(w_hwio, cin_p, cout_p):
    cin, cout = w_hwio.shape[2], w_hwio.shape[3]
    w = jnp.pad(w_hwio[0, 0], ((0, cin_p - cin), (0, cout_p - cout)))
    return w.astype(jnp.bfloat16)


def _prep_bn(bn, cout_p, eps=1e-5):
    gamma, beta, mean, var = bn
    scale = gamma / jnp.sqrt(var + eps)
    bias = beta - mean * scale
    c = gamma.shape[0]
    scale = jnp.pad(scale, (0, cout_p - c)).reshape(1, cout_p).astype(jnp.float32)
    bias = jnp.pad(bias, (0, cout_p - c)).reshape(1, cout_p).astype(jnp.float32)
    return scale, bias


def init_basic_block_params(key, in_planes, planes, stride=1):
    ks = jax.random.split(key, 12)

    def conv_w(k, kh, kw, cin, cout):
        bound = 1.0 / math.sqrt(cin * kh * kw)
        return jax.random.uniform(k, (kh, kw, cin, cout), jnp.float32, -bound, bound)

    def bn(kg, kb, km, kv, c):
        gamma = jax.random.uniform(kg, (c,), jnp.float32, 0.5, 1.5)
        beta = jax.random.uniform(kb, (c,), jnp.float32, -0.5, 0.5)
        mean = jax.random.uniform(km, (c,), jnp.float32, -0.5, 0.5)
        var = jax.random.uniform(kv, (c,), jnp.float32, 0.5, 1.5)
        return gamma, beta, mean, var

    params = {
        "conv1_w": conv_w(ks[0], 3, 3, in_planes, planes),
        "bn1": bn(ks[1], ks[2], ks[3], ks[4], planes),
        "conv2_w": conv_w(ks[5], 3, 3, planes, planes),
        "bn2": bn(ks[6], ks[7], ks[8], ks[9], planes),
    }
    if stride != 1 or in_planes != planes:
        params["sc_w"] = conv_w(ks[10], 1, 1, in_planes, planes)
        params["sc_bn"] = bn(*jax.random.split(ks[11], 4), planes)
    return params


# ---------------------------------------------------------------------------
# BasicBlock forward
# ---------------------------------------------------------------------------
def basic_block_forward(params, x_nchw, *, stride=1):
    N, Cin, H, W = x_nchw.shape
    planes = params["conv1_w"].shape[-1]
    Cin_p = _round_up(Cin, LANE)
    Cp = _round_up(planes, LANE)
    Ho, Wo = (H - 1) // stride + 1, (W - 1) // stride + 1

    # NCHW -> NHWC, channel-pad to lane width, cast to bf16 (MXU-native).
    x = jnp.transpose(x_nchw, (0, 2, 3, 1))
    xp = _pad_channels(x, Cin_p).astype(jnp.bfloat16)

    w1 = _prep_w(params["conv1_w"], Cin_p, Cp)
    w2 = _prep_w(params["conv2_w"], Cp, Cp)
    s1, b1 = _prep_bn(params["bn1"], Cp)
    s2, b2 = _prep_bn(params["bn2"], Cp)

    if "sc_w" in params:
        # conv1 + bn1 + relu, with the 1x1 projection shortcut (+ its BN) fused
        # into the SAME kernel as a second output (shares the xp HBM read).
        wsc = _prep_w1x1(params["sc_w"], Cin_p, Cp)
        ssc, bsc = _prep_bn(params["sc_bn"], Cp)
        out1, shortcut = conv_bn(xp, w1, s1, b1, stride=stride, pad=1, relu=True,
                                 shortcut=(wsc, ssc, bsc))
    else:
        # identity shortcut (stride==1, in_planes==planes => Cin_p==Cp)
        out1 = conv_bn(xp, w1, s1, b1, stride=stride, pad=1, relu=True)
        shortcut = xp.reshape(N, H * W, Cin_p)

    # conv2 + bn2 + residual add + relu, all fused in one kernel (bf16 store).
    out1_img = out1.reshape(N, Ho, Wo, Cp)
    out = conv_bn(out1_img, w2, s2, b2, stride=1, pad=1, relu=True,
                  residual=shortcut)

    out = out.reshape(N, Ho, Wo, Cp)[..., :planes].astype(jnp.float32)
    return jnp.transpose(out, (0, 3, 1, 2))      # back to NCHW


# ---------------------------------------------------------------------------
# Pure-JAX reference (same bf16 matmul inputs / bf16 stores as the kernel path)
# ---------------------------------------------------------------------------
def _fuse_bn(gamma, beta, mean, var, eps=1e-5):
    scale = gamma / jnp.sqrt(var + eps)
    return scale, beta - mean * scale


def reference_forward(params, x_nchw, *, stride=1):
    x = jnp.transpose(x_nchw, (0, 2, 3, 1))

    def conv(a, w, s, p):
        return jax.lax.conv_general_dilated(
            a.astype(jnp.bfloat16), w.astype(jnp.bfloat16), (s, s),
            [(p, p), (p, p)], dimension_numbers=("NHWC", "HWIO", "NHWC"),
            preferred_element_type=jnp.float32)

    s1, b1 = _fuse_bn(*params["bn1"])
    s2, b2 = _fuse_bn(*params["bn2"])
    out = jax.nn.relu(conv(x, params["conv1_w"], stride, 1) * s1 + b1)
    out = conv(out, params["conv2_w"], 1, 1) * s2 + b2
    if "sc_w" in params:
        ss, bs = _fuse_bn(*params["sc_bn"])
        sc = conv(x, params["sc_w"], stride, 0) * ss + bs
    else:
        sc = x.astype(jnp.float32)
    sc = sc.astype(jnp.bfloat16).astype(jnp.float32)   # kernel adds a bf16 residual
    out = jax.nn.relu(out + sc)
    out = out.astype(jnp.bfloat16).astype(jnp.float32)  # kernel stores bf16
    return jnp.transpose(out, (0, 3, 1, 2))


if __name__ == "__main__":
    key = jax.random.PRNGKey(0)

    configs = [
        (4, 8, 1),   # projection shortcut (in_planes != planes)
        (8, 8, 1),   # identity shortcut
        (4, 8, 2),   # projection shortcut with stride 2
    ]
    for in_planes, planes, stride in configs:
        kx, kp, key = jax.random.split(key, 3)
        x = jax.random.normal(kx, (2, in_planes, 16, 16), jnp.float32)  # NCHW
        params = init_basic_block_params(kp, in_planes, planes, stride)

        fwd = jax.jit(functools.partial(basic_block_forward, stride=stride))
        out = jax.block_until_ready(fwd(params, x))
        ref = reference_forward(params, x, stride=stride)

        Ho = 16 // stride
        assert out.shape == (2, planes, Ho, Ho), out.shape
        err = float(jnp.max(jnp.abs(out - ref)))
        assert jnp.allclose(out, ref, rtol=1e-2, atol=1e-2), err

    print("KERNEL_OK")
</pallas_src>

<mosaic_0001>
module attributes {stable_mosaic.version = 11 : i64} {
  func.func @_conv_bn_kernel(%arg0: i32, %arg1: i32, %arg2: memref<1x18x18x128xbf16, #tpu.memory_space<vmem>>, %arg3: memref<3x384x128xbf16, #tpu.memory_space<vmem>>, %arg4: memref<1x128xf32, #tpu.memory_space<vmem>>, %arg5: memref<1x128xf32, #tpu.memory_space<vmem>>, %arg6: memref<128x128xbf16, #tpu.memory_space<vmem>>, %arg7: memref<1x128xf32, #tpu.memory_space<vmem>>, %arg8: memref<1x128xf32, #tpu.memory_space<vmem>>, %arg9: memref<1x256x128xbf16, #tpu.memory_space<vmem>>, %arg10: memref<1x256x128xbf16, #tpu.memory_space<vmem>>) attributes {dimension_semantics = [#tpu.dimension_semantics<parallel>, #tpu.dimension_semantics<parallel>], iteration_bounds = array<i64: 2, 1>, scalar_prefetch = 0 : i64, scratch_operands = 0 : i64, tpu.core_type = #tpu.core_type<tc>, window_params = [{transform_indices = @transform_0, window_bounds = array<i64: 1, 18, 18, 128>}, {pipeline_mode = #tpu.pipeline_mode<synchronous>, transform_indices = @transform_1, window_bounds = array<i64: 3, 384, 128>}, {pipeline_mode = #tpu.pipeline_mode<synchronous>, transform_indices = @transform_2, window_bounds = array<i64: 1, 128>}, {pipeline_mode = #tpu.pipeline_mode<synchronous>, transform_indices = @transform_3, window_bounds = array<i64: 1, 128>}, {pipeline_mode = #tpu.pipeline_mode<synchronous>, transform_indices = @transform_4, window_bounds = array<i64: 128, 128>}, {pipeline_mode = #tpu.pipeline_mode<synchronous>, transform_indices = @transform_5, window_bounds = array<i64: 1, 128>}, {pipeline_mode = #tpu.pipeline_mode<synchronous>, transform_indices = @transform_6, window_bounds = array<i64: 1, 128>}, {transform_indices = @transform_7, window_bounds = array<i64: 1, 256, 128>}, {transform_indices = @transform_8, window_bounds = array<i64: 1, 256, 128>}]} {
    %c16_i32 = arith.constant 16 : i32
    %0 = arith.muli %arg1, %c16_i32 : i32
    %1 = tpu.assume_multiple %0, 16 : i32
    %c0 = arith.constant 0 : index
    %2 = arith.index_cast %1 : i32 to index
    %c0_0 = arith.constant 0 : index
    %c0_1 = arith.constant 0 : index
    %3 = vector.load %arg2[%c0, %2, %c0_0, %c0_1] : memref<1x18x18x128xbf16, #tpu.memory_space<vmem>>, vector<1x18x18x128xbf16>
    %4 = vector.shape_cast %3 : vector<1x18x18x128xbf16> to vector<18x18x128xbf16>
    %5 = vector.extract_strided_slice %4 {offsets = [0, 0, 0], sizes = [16, 16, 128], strides = [1, 1, 1]} : vector<18x18x128xbf16> to vector<16x16x128xbf16>
    %6 = vector.extract_strided_slice %4 {offsets = [0, 1, 0], sizes = [16, 16, 128], strides = [1, 1, 1]} : vector<18x18x128xbf16> to vector<16x16x128xbf16>
    %7 = vector.extract_strided_slice %4 {offsets = [0, 2, 0], sizes = [16, 16, 128], strides = [1, 1, 1]} : vector<18x18x128xbf16> to vector<16x16x128xbf16>
    %8 = tpu.concatenate %5, %6, %7 in 2 : vector<16x16x128xbf16>, vector<16x16x128xbf16>, vector<16x16x128xbf16> -> vector<16x16x384xbf16>
    %9 = vector.shape_cast %8 : vector<16x16x384xbf16> to vector<256x384xbf16>
    %c0_2 = arith.constant 0 : index
    %c0_3 = arith.constant 0 : index
    %c0_4 = arith.constant 0 : index
    %10 = vector.load %arg3[%c0_2, %c0_3, %c0_4] : memref<3x384x128xbf16, #tpu.memory_space<vmem>>, vector<1x384x128xbf16>
    %11 = vector.shape_cast %10 : vector<1x384x128xbf16> to vector<384x128xbf16>
    %cst = arith.constant dense<0.000000e+00> : vector<256x128xf32>
    %12 = tpu.matmul %9, %11, %cst {dimension_numbers = #tpu.dot_dimension_numbers<[1], [0], [0], [1], [0, 0, 1, 1], [], []>} : vector<256x384xbf16>, vector<384x128xbf16>, vector<256x128xf32> -> vector<256x128xf32>
    %13 = vector.extract_strided_slice %4 {offsets = [1, 0, 0], sizes = [16, 16, 128], strides = [1, 1, 1]} : vector<18x18x128xbf16> to vector<16x16x128xbf16>
    %14 = vector.extract_strided_slice %4 {offsets = [1, 1, 0], sizes = [16, 16, 128], strides = [1, 1, 1]} : vector<18x18x128xbf16> to vector<16x16x128xbf16>
    %15 = vector.extract_strided_slice %4 {offsets = [1, 2, 0], sizes = [16, 16, 128], strides = [1, 1, 1]} : vector<18x18x128xbf16> to vector<16x16x128xbf16>
    %16 = tpu.concatenate %13, %14, %15 in 2 : vector<16x16x128xbf16>, vector<16x16x128xbf16>, vector<16x16x128xbf16> -> vector<16x16x384xbf16>
    %17 = vector.shape_cast %16 : vector<16x16x384xbf16> to vector<256x384xbf16>
    %c1 = arith.constant 1 : index
    %c0_5 = arith.constant 0 : index
    %c0_6 = arith.constant 0 : index
    %18 = vector.load %arg3[%c1, %c0_5, %c0_6] : memref<3x384x128xbf16, #tpu.memory_space<vmem>>, vector<1x384x128xbf16>
    %19 = vector.shape_cast %18 : vector<1x384x128xbf16> to vector<384x128xbf16>
    %cst_7 = arith.constant dense<0.000000e+00> : vector<256x128xf32>
    %20 = tpu.matmul %17, %19, %cst_7 {dimension_numbers = #tpu.dot_dimension_numbers<[1], [0], [0], [1], [0, 0, 1, 1], [], []>} : vector<256x384xbf16>, vector<384x128xbf16>, vector<256x128xf32> -> vector<256x128xf32>
    %21 = arith.addf %12, %20 : vector<256x128xf32>
    %22 = vector.extract_strided_slice %4 {offsets = [2, 0, 0], sizes = [16, 16, 128], strides = [1, 1, 1]} : vector<18x18x128xbf16> to vector<16x16x128xbf16>
    %23 = vector.extract_strided_slice %4 {offsets = [2, 1, 0], sizes = [16, 16, 128], strides = [1, 1, 1]} : vector<18x18x128xbf16> to vector<16x16x128xbf16>
    %24 = vector.extract_strided_slice %4 {offsets = [2, 2, 0], sizes = [16, 16, 128], strides = [1, 1, 1]} : vector<18x18x128xbf16> to vector<16x16x128xbf16>
    %25 = tpu.concatenate %22, %23, %24 in 2 : vector<16x16x128xbf16>, vector<16x16x128xbf16>, vector<16x16x128xbf16> -> vector<16x16x384xbf16>
    %26 = vector.shape_cast %25 : vector<16x16x384xbf16> to vector<256x384xbf16>
    %c2 = arith.constant 2 : index
    %c0_8 = arith.constant 0 : index
    %c0_9 = arith.constant 0 : index
    %27 = vector.load %arg3[%c2, %c0_8, %c0_9] : memref<3x384x128xbf16, #tpu.memory_space<vmem>>, vector<1x384x128xbf16>
    %28 = vector.shape_cast %27 : vector<1x384x128xbf16> to vector<384x128xbf16>
    %cst_10 = arith.constant dense<0.000000e+00> : vector<256x128xf32>
    %29 = tpu.matmul %26, %28, %cst_10 {dimension_numbers = #tpu.dot_dimension_numbers<[1], [0], [0], [1], [0, 0, 1, 1], [], []>} : vector<256x384xbf16>, vector<384x128xbf16>, vector<256x128xf32> -> vector<256x128xf32>
    %30 = arith.addf %21, %29 : vector<256x128xf32>
    %c0_11 = arith.constant 0 : index
    %c0_12 = arith.constant 0 : index
    %31 = vector.load %arg4[%c0_11, %c0_12] : memref<1x128xf32, #tpu.memory_space<vmem>>, vector<1x128xf32>
    %32 = vector.broadcast %31 : vector<1x128xf32> to vector<256x128xf32>
    %33 = arith.mulf %30, %32 : vector<256x128xf32>
    %c0_13 = arith.constant 0 : index
    %c0_14 = arith.constant 0 : index
    %34 = vector.load %arg5[%c0_13, %c0_14] : memref<1x128xf32, #tpu.memory_space<vmem>>, vector<1x128xf32>
    %35 = vector.broadcast %34 : vector<1x128xf32> to vector<256x128xf32>
    %36 = arith.addf %33, %35 : vector<256x128xf32>
    %cst_15 = arith.constant 0.000000e+00 : f32
    %37 = vector.broadcast %cst_15 : f32 to vector<256x128xf32>
    %38 = arith.maximumf %36, %37 : vector<256x128xf32>
    %39 = arith.truncf %38 : vector<256x128xf32> to vector<256x128xbf16>
    %c0_16 = arith.constant 0 : index
    %c0_17 = arith.constant 0 : index
    %c0_18 = arith.constant 0 : index
    %40 = vector.load %arg9[%c0_16, %c0_17, %c0_18] : memref<1x256x128xbf16, #tpu.memory_space<vmem>>, vector<1x256x128xbf16>
    %41 = vector.shape_cast %40 : vector<1x256x128xbf16> to vector<256x128xbf16>
    %42 = vector.shape_cast %39 : vector<256x128xbf16> to vector<1x256x128xbf16>
    tpu.vector_store %arg9[%c0_16, %c0_17, %c0_18], %42 {strides = array<i32>} : memref<1x256x128xbf16, #tpu.memory_space<vmem>>, vector<1x256x128xbf16>,
    %43 = vector.shape_cast %14 : vector<16x16x128xbf16> to vector<256x128xbf16>
    %c0_19 = arith.constant 0 : index
    %c0_20 = arith.constant 0 : index
    %44 = vector.load %arg6[%c0_19, %c0_20] : memref<128x128xbf16, #tpu.memory_space<vmem>>, vector<128x128xbf16>
    %cst_21 = arith.constant dense<0.000000e+00> : vector<256x128xf32>
    %45 = tpu.matmul %43, %44, %cst_21 {dimension_numbers = #tpu.dot_dimension_numbers<[1], [0], [0], [1], [0, 0, 1, 1], [], []>} : vector<256x128xbf16>, vector<128x128xbf16>, vector<256x128xf32> -> vector<256x128xf32>
    %c0_22 = arith.constant 0 : index
    %c0_23 = arith.constant 0 : index
    %46 = vector.load %arg7[%c0_22, %c0_23] : memref<1x128xf32, #tpu.memory_space<vmem>>, vector<1x128xf32>
    %47 = vector.broadcast %46 : vector<1x128xf32> to vector<256x128xf32>
    %48 = arith.mulf %45, %47 : vector<256x128xf32>
    %c0_24 = arith.constant 0 : index
    %c0_25 = arith.constant 0 : index
    %49 = vector.load %arg8[%c0_24, %c0_25] : memref<1x128xf32, #tpu.memory_space<vmem>>, vector<1x128xf32>
    %50 = vector.broadcast %49 : vector<1x128xf32> to vector<256x128xf32>
    %51 = arith.addf %48, %50 : vector<256x128xf32>
    %52 = arith.truncf %51 : vector<256x128xf32> to vector<256x128xbf16>
    %c0_26 = arith.constant 0 : index
    %c0_27 = arith.constant 0 : index
    %c0_28 = arith.constant 0 : index
    %53 = vector.load %arg10[%c0_26, %c0_27, %c0_28] : memref<1x256x128xbf16, #tpu.memory_space<vmem>>, vector<1x256x128xbf16>
    %54 = vector.shape_cast %53 : vector<1x256x128xbf16> to vector<256x128xbf16>
    %55 = vector.shape_cast %52 : vector<256x128xbf16> to vector<1x256x128xbf16>
    tpu.vector_store %arg10[%c0_26, %c0_27, %c0_28], %55 {strides = array<i32>} : memref<1x256x128xbf16, #tpu.memory_space<vmem>>, vector<1x256x128xbf16>,
    return
  }
  func.func @transform_0(%arg0: i32, %arg1: i32) -> (i32, i32, i32, i32) {
    %c0_i32 = arith.constant 0 : i32
    %c0_i32_0 = arith.constant 0 : i32
    %c0_i32_1 = arith.constant 0 : i32
    %c0_i32_2 = arith.constant 0 : i32
    return %arg0, %c0_i32, %c0_i32_0, %c0_i32_1 : i32, i32, i32, i32
  }
  func.func @transform_1(%arg0: i32, %arg1: i32) -> (i32, i32, i32) {
    %c0_i32 = arith.constant 0 : i32
    %c0_i32_0 = arith.constant 0 : i32
    %c0_i32_1 = arith.constant 0 : i32
    %c0_i32_2 = arith.constant 0 : i32
    return %c0_i32, %c0_i32_0, %c0_i32_1 : i32, i32, i32
  }
  func.func @transform_2(%arg0: i32, %arg1: i32) -> (i32, i32) {
    %c0_i32 = arith.constant 0 : i32
    %c0_i32_0 = arith.constant 0 : i32
    %c0_i32_1 = arith.constant 0 : i32
    return %c0_i32, %c0_i32_0 : i32, i32
  }
  func.func @transform_3(%arg0: i32, %arg1: i32) -> (i32, i32) {
    %c0_i32 = arith.constant 0 : i32
    %c0_i32_0 = arith.constant 0 : i32
    %c0_i32_1 = arith.constant 0 : i32
    return %c0_i32, %c0_i32_0 : i32, i32
  }
  func.func @transform_4(%arg0: i32, %arg1: i32) -> (i32, i32) {
    %c0_i32 = arith.constant 0 : i32
    %c0_i32_0 = arith.constant 0 : i32
    %c0_i32_1 = arith.constant 0 : i32
    return %c0_i32, %c0_i32_0 : i32, i32
  }
  func.func @transform_5(%arg0: i32, %arg1: i32) -> (i32, i32) {
    %c0_i32 = arith.constant 0 : i32
    %c0_i32_0 = arith.constant 0 : i32
    %c0_i32_1 = arith.constant 0 : i32
    return %c0_i32, %c0_i32_0 : i32, i32
  }
  func.func @transform_6(%arg0: i32, %arg1: i32) -> (i32, i32) {
    %c0_i32 = arith.constant 0 : i32
    %c0_i32_0 = arith.constant 0 : i32
    %c0_i32_1 = arith.constant 0 : i32
    return %c0_i32, %c0_i32_0 : i32, i32
  }
  func.func @transform_7(%arg0: i32, %arg1: i32) -> (i32, i32, i32) {
    %c0_i32 = arith.constant 0 : i32
    %c0_i32_0 = arith.constant 0 : i32
    return %arg0, %arg1, %c0_i32 : i32, i32, i32
  }
  func.func @transform_8(%arg0: i32, %arg1: i32) -> (i32, i32, i32) {
    %c0_i32 = arith.constant 0 : i32
    %c0_i32_0 = arith.constant 0 : i32
    return %arg0, %arg1, %c0_i32 : i32, i32, i32
  }
}

module attributes {stable_mosaic.version = 11 : i64} {
  func.func @_conv_bn_kernel(%arg0: i32, %arg1: i32, %arg2: memref<1x18x18x128xbf16, #tpu.memory_space<vmem>>, %arg3: memref<3x384x128xbf16, #tpu.memory_space<vmem>>, %arg4: memref<1x128xf32, #tpu.memory_space<vmem>>, %arg5: memref<1x128xf32, #tpu.memory_space<vmem>>, %arg6: memref<1x256x128xbf16, #tpu.memory_space<vmem>>, %arg7: memref<1x256x128xbf16, #tpu.memory_space<vmem>>) attributes {dimension_semantics = [#tpu.dimension_semantics<parallel>, #tpu.dimension_semantics<parallel>], iteration_bounds = array<i64: 2, 1>, scalar_prefetch = 0 : i64, scratch_operands = 0 : i64, tpu.core_type = #tpu.core_type<tc>, window_params = [{transform_indices = @transform_0, window_bounds = array<i64: 1, 18, 18, 128>}, {pipeline_mode = #tpu.pipeline_mode<synchronous>, transform_indices = @transform_1, window_bounds = array<i64: 3, 384, 128>}, {pipeline_mode = #tpu.pipeline_mode<synchronous>, transform_indices = @transform_2, window_bounds = array<i64: 1, 128>}, {pipeline_mode = #tpu.pipeline_mode<synchronous>, transform_indices = @transform_3, window_bounds = array<i64: 1, 128>}, {transform_indices = @transform_4, window_bounds = array<i64: 1, 256, 128>}, {transform_indices = @transform_5, window_bounds = array<i64: 1, 256, 128>}]} {
    %c16_i32 = arith.constant 16 : i32
    %0 = arith.muli %arg1, %c16_i32 : i32
    %1 = tpu.assume_multiple %0, 16 : i32
    %c0 = arith.constant 0 : index
    %2 = arith.index_cast %1 : i32 to index
    %c0_0 = arith.constant 0 : index
    %c0_1 = arith.constant 0 : index
    %3 = vector.load %arg2[%c0, %2, %c0_0, %c0_1] : memref<1x18x18x128xbf16, #tpu.memory_space<vmem>>, vector<1x18x18x128xbf16>
    %4 = vector.shape_cast %3 : vector<1x18x18x128xbf16> to vector<18x18x128xbf16>
    %5 = vector.extract_strided_slice %4 {offsets = [0, 0, 0], sizes = [16, 16, 128], strides = [1, 1, 1]} : vector<18x18x128xbf16> to vector<16x16x128xbf16>
    %6 = vector.extract_strided_slice %4 {offsets = [0, 1, 0], sizes = [16, 16, 128], strides = [1, 1, 1]} : vector<18x18x128xbf16> to vector<16x16x128xbf16>
    %7 = vector.extract_strided_slice %4 {offsets = [0, 2, 0], sizes = [16, 16, 128], strides = [1, 1, 1]} : vector<18x18x128xbf16> to vector<16x16x128xbf16>
    %8 = tpu.concatenate %5, %6, %7 in 2 : vector<16x16x128xbf16>, vector<16x16x128xbf16>, vector<16x16x128xbf16> -> vector<16x16x384xbf16>
    %9 = vector.shape_cast %8 : vector<16x16x384xbf16> to vector<256x384xbf16>
    %c0_2 = arith.constant 0 : index
    %c0_3 = arith.constant 0 : index
    %c0_4 = arith.constant 0 : index
    %10 = vector.load %arg3[%c0_2, %c0_3, %c0_4] : memref<3x384x128xbf16, #tpu.memory_space<vmem>>, vector<1x384x128xbf16>
    %11 = vector.shape_cast %10 : vector<1x384x128xbf16> to vector<384x128xbf16>
    %cst = arith.constant dense<0.000000e+00> : vector<256x128xf32>
    %12 = tpu.matmul %9, %11, %cst {dimension_numbers = #tpu.dot_dimension_numbers<[1], [0], [0], [1], [0, 0, 1, 1], [], []>} : vector<256x384xbf16>, vector<384x128xbf16>, vector<256x128xf32> -> vector<256x128xf32>
    %13 = vector.extract_strided_slice %4 {offsets = [1, 0, 0], sizes = [16, 16, 128], strides = [1, 1, 1]} : vector<18x18x128xbf16> to vector<16x16x128xbf16>
    %14 = vector.extract_strided_slice %4 {offsets = [1, 1, 0], sizes = [16, 16, 128], strides = [1, 1, 1]} : vector<18x18x128xbf16> to vector<16x16x128xbf16>
    %15 = vector.extract_strided_slice %4 {offsets = [1, 2, 0], sizes = [16, 16, 128], strides = [1, 1, 1]} : vector<18x18x128xbf16> to vector<16x16x128xbf16>
    %16 = tpu.concatenate %13, %14, %15 in 2 : vector<16x16x128xbf16>, vector<16x16x128xbf16>, vector<16x16x128xbf16> -> vector<16x16x384xbf16>
    %17 = vector.shape_cast %16 : vector<16x16x384xbf16> to vector<256x384xbf16>
    %c1 = arith.constant 1 : index
    %c0_5 = arith.constant 0 : index
    %c0_6 = arith.constant 0 : index
    %18 = vector.load %arg3[%c1, %c0_5, %c0_6] : memref<3x384x128xbf16, #tpu.memory_space<vmem>>, vector<1x384x128xbf16>
    %19 = vector.shape_cast %18 : vector<1x384x128xbf16> to vector<384x128xbf16>
    %cst_7 = arith.constant dense<0.000000e+00> : vector<256x128xf32>
    %20 = tpu.matmul %17, %19, %cst_7 {dimension_numbers = #tpu.dot_dimension_numbers<[1], [0], [0], [1], [0, 0, 1, 1], [], []>} : vector<256x384xbf16>, vector<384x128xbf16>, vector<256x128xf32> -> vector<256x128xf32>
    %21 = arith.addf %12, %20 : vector<256x128xf32>
    %22 = vector.extract_strided_slice %4 {offsets = [2, 0, 0], sizes = [16, 16, 128], strides = [1, 1, 1]} : vector<18x18x128xbf16> to vector<16x16x128xbf16>
    %23 = vector.extract_strided_slice %4 {offsets = [2, 1, 0], sizes = [16, 16, 128], strides = [1, 1, 1]} : vector<18x18x128xbf16> to vector<16x16x128xbf16>
    %24 = vector.extract_strided_slice %4 {offsets = [2, 2, 0], sizes = [16, 16, 128], strides = [1, 1, 1]} : vector<18x18x128xbf16> to vector<16x16x128xbf16>
    %25 = tpu.concatenate %22, %23, %24 in 2 : vector<16x16x128xbf16>, vector<16x16x128xbf16>, vector<16x16x128xbf16> -> vector<16x16x384xbf16>
    %26 = vector.shape_cast %25 : vector<16x16x384xbf16> to vector<256x384xbf16>
    %c2 = arith.constant 2 : index
    %c0_8 = arith.constant 0 : index
    %c0_9 = arith.constant 0 : index
    %27 = vector.load %arg3[%c2, %c0_8, %c0_9] : memref<3x384x128xbf16, #tpu.memory_space<vmem>>, vector<1x384x128xbf16>
    %28 = vector.shape_cast %27 : vector<1x384x128xbf16> to vector<384x128xbf16>
    %cst_10 = arith.constant dense<0.000000e+00> : vector<256x128xf32>
    %29 = tpu.matmul %26, %28, %cst_10 {dimension_numbers = #tpu.dot_dimension_numbers<[1], [0], [0], [1], [0, 0, 1, 1], [], []>} : vector<256x384xbf16>, vector<384x128xbf16>, vector<256x128xf32> -> vector<256x128xf32>
    %30 = arith.addf %21, %29 : vector<256x128xf32>
    %c0_11 = arith.constant 0 : index
    %c0_12 = arith.constant 0 : index
    %31 = vector.load %arg4[%c0_11, %c0_12] : memref<1x128xf32, #tpu.memory_space<vmem>>, vector<1x128xf32>
    %32 = vector.broadcast %31 : vector<1x128xf32> to vector<256x128xf32>
    %33 = arith.mulf %30, %32 : vector<256x128xf32>
    %c0_13 = arith.constant 0 : index
    %c0_14 = arith.constant 0 : index
    %34 = vector.load %arg5[%c0_13, %c0_14] : memref<1x128xf32, #tpu.memory_space<vmem>>, vector<1x128xf32>
    %35 = vector.broadcast %34 : vector<1x128xf32> to vector<256x128xf32>
    %36 = arith.addf %33, %35 : vector<256x128xf32>
    %c0_15 = arith.constant 0 : index
    %c0_16 = arith.constant 0 : index
    %c0_17 = arith.constant 0 : index
    %37 = vector.load %arg6[%c0_15, %c0_16, %c0_17] : memref<1x256x128xbf16, #tpu.memory_space<vmem>>, vector<1x256x128xbf16>
    %38 = vector.shape_cast %37 : vector<1x256x128xbf16> to vector<256x128xbf16>
    %39 = arith.extf %38 : vector<256x128xbf16> to vector<256x128xf32>
    %40 = arith.addf %36, %39 : vector<256x128xf32>
    %cst_18 = arith.constant 0.000000e+00 : f32
    %41 = vector.broadcast %cst_18 : f32 to vector<256x128xf32>
    %42 = arith.maximumf %40, %41 : vector<256x128xf32>
    %43 = arith.truncf %42 : vector<256x128xf32> to vector<256x128xbf16>
    %c0_19 = arith.constant 0 : index
    %c0_20 = arith.constant 0 : index
    %c0_21 = arith.constant 0 : index
    %44 = vector.load %arg7[%c0_19, %c0_20, %c0_21] : memref<1x256x128xbf16, #tpu.memory_space<vmem>>, vector<1x256x128xbf16>
    %45 = vector.shape_cast %44 : vector<1x256x128xbf16> to vector<256x128xbf16>
    %46 = vector.shape_cast %43 : vector<256x128xbf16> to vector<1x256x128xbf16>
    tpu.vector_store %arg7[%c0_19, %c0_20, %c0_21], %46 {strides = array<i32>} : memref<1x256x128xbf16, #tpu.memory_space<vmem>>, vector<1x256x128xbf16>,
    return
  }
  func.func @transform_0(%arg0: i32, %arg1: i32) -> (i32, i32, i32, i32) {
    %c0_i32 = arith.constant 0 : i32
    %c0_i32_0 = arith.constant 0 : i32
    %c0_i32_1 = arith.constant 0 : i32
    %c0_i32_2 = arith.constant 0 : i32
    return %arg0, %c0_i32, %c0_i32_0, %c0_i32_1 : i32, i32, i32, i32
  }
  func.func @transform_1(%arg0: i32, %arg1: i32) -> (i32, i32, i32) {
    %c0_i32 = arith.constant 0 : i32
    %c0_i32_0 = arith.constant 0 : i32
    %c0_i32_1 = arith.constant 0 : i32
    %c0_i32_2 = arith.constant 0 : i32
    return %c0_i32, %c0_i32_0, %c0_i32_1 : i32, i32, i32
  }
  func.func @transform_2(%arg0: i32, %arg1: i32) -> (i32, i32) {
    %c0_i32 = arith.constant 0 : i32
    %c0_i32_0 = arith.constant 0 : i32
    %c0_i32_1 = arith.constant 0 : i32
    return %c0_i32, %c0_i32_0 : i32, i32
  }
  func.func @transform_3(%arg0: i32, %arg1: i32) -> (i32, i32) {
    %c0_i32 = arith.constant 0 : i32
    %c0_i32_0 = arith.constant 0 : i32
    %c0_i32_1 = arith.constant 0 : i32
    return %c0_i32, %c0_i32_0 : i32, i32
  }
  func.func @transform_4(%arg0: i32, %arg1: i32) -> (i32, i32, i32) {
    %c0_i32 = arith.constant 0 : i32
    %c0_i32_0 = arith.constant 0 : i32
    return %arg0, %arg1, %c0_i32 : i32, i32, i32
  }
  func.func @transform_5(%arg0: i32, %arg1: i32) -> (i32, i32, i32) {
    %c0_i32 = arith.constant 0 : i32
    %c0_i32_0 = arith.constant 0 : i32
    return %arg0, %arg1, %c0_i32 : i32, i32, i32
  }
}

</mosaic_0001>

<llo_original>
// kernel: basic_block_forward.3
$region0: #{basic_block_forward.3}
  #allocation0 [shape = 'u32[]', space=smem, size = 0x4, offset = 0x4, fixed_abs, tag = 'smem constant byte address 0x4 - core index']
  #allocation1 [shape = 'u32[144,128]{1,0:T(1,128)}', space=vmem, size = 0x12000, scoped, tag = 'internal scratch']
  %s0 = inlined_call_operand.vmem [shape: bf16[2,18,18,128], index: 0, kind: input, shape index: {}]
  %s1 = inlined_call_operand.vmem [shape: bf16[3,384,128], index: 1, kind: input, shape index: {}]
  %s2 = inlined_call_operand.vmem [shape: f32[1,128], index: 2, kind: input, shape index: {}]
  %s3 = inlined_call_operand.vmem [shape: f32[1,128], index: 3, kind: input, shape index: {}]
  %s4 = inlined_call_operand.vmem [shape: bf16[2,256,128], index: 4, kind: input, shape index: {}]
  %s5 = inlined_call_operand.vmem [shape: bf16[2,256,128], index: 5, kind: output, shape index: {}]
  %s6 = sld [smem:[#allocation0]]
  $region53: #{basic_block_forward.3} parent=0
    _
  %s8 = ssub.s32 1, %s6
  %s9 = scalar_select 0, %s8, %s6
  loop: start=0, step=1, limit=4
  $region2: #{basic_block_forward.3} parent=0 // loop_pre_header
    _
  $region3: #{basic_block_forward.3} parent=0 // loop_header
    %s11 = sphi 0, %s15
    %p12 = scmp.ge.s32.totalorder %s11, 4
    %s18 = sphi 0, %s30
    %s19 = sphi 0, %s26
    %s20 = sphi 0, %s18
    %s21 = sphi 0, %s19
    %s22 = sphi 0, %s20
    %s23 = sphi 0, %s21
    %s33 = sphi 0, %s35
    %s36 = sphi 0, %s33
    %s37 = sphi 0, %s36
    %s53 = sphi 0, %s37
    %s57 = sphi 0, %s57
    %s59 = sphi 0, %s57
    %s60 = sphi 0, %s59
    %s74 = sphi 0, %s60
    %s78 = sphi 0, %s78
    %s80 = sphi 0, %s78
    %s81 = sphi 0, %s80
    %s95 = sphi 0, %s81
    %s99 = sphi 0, %s99
    %s101 = sphi 0, %s99
    %s102 = sphi 0, %s101
    %s116 = sphi 0, %s102
    %s124 = sphi 0, %s126
    %s127 = sphi 0, %s124
    %s128 = sphi 0, %s127
    %s144 = sphi 0, %s128
    %s152 = sphi 0, %s154
    %s155 = sphi 0, %s152
    %s156 = sphi 0, %s155
    %s172 = sphi 0, %s156
  $region4: #{basic_block_forward.3} parent=0 // loop_header_branch
    %14 = sbr.rel (%p12) target = $region8
  $region5: #{basic_block_forward.3} parent=0 // loop_body
    %s16 = ssub.s32 %s11, 1
    %s17 = ssub.s32 %s11, 2
    %s24 = sadd.s32 1, %s19
    %p25 = scmp.ge.s32.totalorder %s24, 1
    %s26 = scalar_select %p25, 0, %s24
    %s27 = sadd.s32 1, %s18
    %s28 = scalar_select %p25, %s27, %s18
    %p29 = scmp.ge.s32.totalorder %s28, 2
    %s30 = scalar_select %p29, 0, %s28
    %s31 = ssub.s32 %s18, %s30
    %p32 = scmp.eq.s32.totalorder %s31, 0
    %s34 = sadd.s32 %s33, 1
    %s35 = scalar_select %p32, %s33, %s34
    %p38 = pneg %p32
    %p39 = scmp.eq.s32.totalorder %s11, 1
    %p40 = por %p38, %p39
    %p41 = scmp.ne.s32.totalorder %s33, %s36
    %p42 = scmp.eq.s32.totalorder %s11, 0
    %p43 = por %p41, %p42
    %p44 = scmp.ne.s32.totalorder %s33, %s36
    %p45 = scmp.eq.s32.totalorder %s16, 1
    %p46 = por %p44, %p45
    %p47 = scmp.ne.s32.totalorder %s36, %s37
    %p48 = scmp.eq.s32.totalorder %s16, 0
    %p49 = por %p47, %p48
    %p50 = scmp.ne.s32.totalorder %s36, %s37
    %p51 = scmp.eq.s32.totalorder %s17, 1
    %p52 = por %p50, %p51
    %p54 = scmp.ne.s32.totalorder %s37, %s53
    %p55 = scmp.eq.s32.totalorder %s17, 0
    %p56 = por %p54, %p55
    %s58 = sadd.s32 %s57, 1
    %p61 = scmp.eq.s32.totalorder %s11, 1
    %p62 = scmp.ne.s32.totalorder %s57, %s59
    %p63 = scmp.eq.s32.totalorder %s11, 0
    %p64 = por %p62, %p63
    %p65 = scmp.ne.s32.totalorder %s57, %s59
    %p66 = scmp.eq.s32.totalorder %s16, 1
    %p67 = por %p65, %p66
    %p68 = scmp.ne.s32.totalorder %s59, %s60
    %p69 = scmp.eq.s32.totalorder %s16, 0
    %p70 = por %p68, %p69
    %p71 = scmp.ne.s32.totalorder %s59, %s60
    %p72 = scmp.eq.s32.totalorder %s17, 1
    %p73 = por %p71, %p72
    %p75 = scmp.ne.s32.totalorder %s60, %s74
    %p76 = scmp.eq.s32.totalorder %s17, 0
    %p77 = por %p75, %p76
    %s79 = sadd.s32 %s78, 1
    %p82 = scmp.eq.s32.totalorder %s11, 1
    %p83 = scmp.ne.s32.totalorder %s78, %s80
    %p84 = scmp.eq.s32.totalorder %s11, 0
    %p85 = por %p83, %p84
    %p86 = scmp.ne.s32.totalorder %s78, %s80
    %p87 = scmp.eq.s32.totalorder %s16, 1
    %p88 = por %p86, %p87
    %p89 = scmp.ne.s32.totalorder %s80, %s81
    %p90 = scmp.eq.s32.totalorder %s16, 0
    %p91 = por %p89, %p90
    %p92 = scmp.ne.s32.totalorder %s80, %s81
    %p93 = scmp.eq.s32.totalorder %s17, 1
    %p94 = por %p92, %p93
    %p96 = scmp.ne.s32.totalorder %s81, %s95
    %p97 = scmp.eq.s32.totalorder %s17, 0
    %p98 = por %p96, %p97
    %s100 = sadd.s32 %s99, 1
    %p103 = scmp.eq.s32.totalorder %s11, 1
    %p104 = scmp.ne.s32.totalorder %s99, %s101
    %p105 = scmp.eq.s32.totalorder %s11, 0
    %p106 = por %p104, %p105
    %p107 = scmp.ne.s32.totalorder %s99, %s101
    %p108 = scmp.eq.s32.totalorder %s16, 1
    %p109 = por %p107, %p108
    %p110 = scmp.ne.s32.totalorder %s101, %s102
    %p111 = scmp.eq.s32.totalorder %s16, 0
    %p112 = por %p110, %p111
    %p113 = scmp.ne.s32.totalorder %s101, %s102
    %p114 = scmp.eq.s32.totalorder %s17, 1
    %p115 = por %p113, %p114
    %p117 = scmp.ne.s32.totalorder %s102, %s116
    %p118 = scmp.eq.s32.totalorder %s17, 0
    %p119 = por %p117, %p118
    %s120 = ssub.s32 %s18, %s30
    %s121 = ssub.s32 %s19, %s26
    %s122 = sor.u32 %s120, %s121
    %p123 = scmp.eq.s32.totalorder %s122, 0
    %s125 = sadd.s32 %s124, 1
    %s126 = scalar_select %p123, %s124, %s125
    %p129 = pneg %p123
    %p130 = scmp.eq.s32.totalorder %s11, 1
    %p131 = por %p129, %p130
    %p132 = scmp.ne.s32.totalorder %s124, %s127
    %p133 = scmp.eq.s32.totalorder %s11, 0
    %p134 = por %p132, %p133
    %p135 = scmp.ne.s32.totalorder %s124, %s127
    %p136 = scmp.eq.s32.totalorder %s16, 1
    %p137 = por %p135, %p136
    %p138 = scmp.ne.s32.totalorder %s127, %s128
    %p139 = scmp.eq.s32.totalorder %s16, 0
    %p140 = por %p138, %p139
    %p141 = scmp.ne.s32.totalorder %s127, %s128
    %p142 = scmp.eq.s32.totalorder %s17, 1
    %p143 = por %p141, %p142
    %p145 = scmp.ne.s32.totalorder %s128, %s144
    %p146 = scmp.eq.s32.totalorder %s17, 0
    %p147 = por %p145, %p146
    %s148 = ssub.s32 %s18, %s30
    %s149 = ssub.s32 %s19, %s26
    %s150 = sor.u32 %s148, %s149
    %p151 = scmp.eq.s32.totalorder %s150, 0
    %s153 = sadd.s32 %s152, 1
    %s154 = scalar_select %p151, %s152, %s153
    %p157 = pneg %p151
    %p158 = scmp.eq.s32.totalorder %s11, 1
    %p159 = por %p157, %p158
    %p160 = scmp.ne.s32.totalorder %s152, %s155
    %p161 = scmp.eq.s32.totalorder %s11, 0
    %p162 = por %p160, %p161
    %p163 = scmp.ne.s32.totalorder %s152, %s155
    %p164 = scmp.eq.s32.totalorder %s16, 1
    %p165 = por %p163, %p164
    %p166 = scmp.ne.s32.totalorder %s155, %s156
    %p167 = scmp.eq.s32.totalorder %s16, 0
    %p168 = por %p166, %p167
    %p169 = scmp.ne.s32.totalorder %s155, %s156
    %p170 = scmp.eq.s32.totalorder %s17, 1
    %p171 = por %p169, %p170
    %p173 = scmp.ne.s32.totalorder %s156, %s172
    %p174 = scmp.eq.s32.totalorder %s17, 0
    %p175 = por %p173, %p174
    %p176 = scmp.le.s32.totalorder 1, %s11
    %p177 = scmp.lt.s32.totalorder %s11, 3
    %p178 = pnand %p176, %p177
    %p179 = pneg %p178
    // Predicated region
    $region9: #{basic_block_forward.3} parent=5 // pred_check
      _
    $region10: #{basic_block_forward.3} parent=5 // pred_check_branch
      %181 = sbr.rel (%p178) target = $region12
    $region11: #{basic_block_forward.3} parent=5 // pred_region
      %s182 = ssub.s32 %s11, 1
      // Predicated region
      $region13: #{basic_block_forward.3} parent=11 // pred_check
        %p183 = pneg %p70
      $region14: #{basic_block_forward.3} parent=11 // pred_check_branch
        %185 = sbr.rel (%p183) target = $region16
      $region15: #{basic_block_forward.3} parent=11 // pred_region
        _
      $region16: #{basic_block_forward.3} parent=11 // pred_fallthru
        _
      // Predicated region
      $region17: #{basic_block_forward.3} parent=11 // pred_check
        %p186 = pneg %p91
      $region18: #{basic_block_forward.3} parent=11 // pred_check_branch
        %188 = sbr.rel (%p186) target = $region20
      $region19: #{basic_block_forward.3} parent=11 // pred_region
        _
      $region20: #{basic_block_forward.3} parent=11 // pred_fallthru
        _
      // Predicated region
      $region21: #{basic_block_forward.3} parent=11 // pred_check
        %p189 = pneg %p112
      $region22: #{basic_block_forward.3} parent=11 // pred_check_branch
        %191 = sbr.rel (%p189) target = $region24
      $region23: #{basic_block_forward.3} parent=11 // pred_region
        _
      $region24: #{basic_block_forward.3} parent=11 // pred_fallthru
        _
    $region12: #{basic_block_forward.3} parent=5 // pred_fallthru
      _
    %p192 = scmp.lt.s32.totalorder %s11, 2
    // Predicated region
    $region25: #{basic_block_forward.3} parent=5 // pred_check
      %p193 = pneg %p192
    $region26: #{basic_block_forward.3} parent=5 // pred_check_branch
      %195 = sbr.rel (%p193) target = $region28
    $region27: #{basic_block_forward.3} parent=5 // pred_region
      // Predicated region
      $region29: #{basic_block_forward.3} parent=27 // pred_check
        %p196 = pneg %p43
      $region30: #{basic_block_forward.3} parent=27 // pred_check_branch
        %198 = sbr.rel (%p196) target = $region32
      $region31: #{basic_block_forward.3} parent=27 // pred_region
        %p199 = scmp.lt.s32.totalorder %s18, 1
        %s200 = scalar_select %p199, %s18, 1
        %s201 = smul.addr %s200, 54
        %s202 = smul.addr %s201, 4
        %s203 = scalar_lea.vmem %s0, %s202
      $region32: #{basic_block_forward.3} parent=27 // pred_fallthru
        _
      // Predicated region
      $region33: #{basic_block_forward.3} parent=27 // pred_check
        %p204 = pneg %p134
      $region34: #{basic_block_forward.3} parent=27 // pred_check_branch
        %206 = sbr.rel (%p204) target = $region36
      $region35: #{basic_block_forward.3} parent=27 // pred_region
        %s207 = smul.u32 32, %s19
        %p208 = scmp.lt.s32.totalorder %s18, 1
        %s209 = scalar_select %p208, %s18, 1
        %p210 = scmp.lt.s32.totalorder %s207, 31
        %s211 = scalar_select %p210, %s207, 31
        %s212 = smul.addr %s209, 32
        %s213 = sadd.s32 %s211, %s212
        %s214 = smul.addr %s213, 4
        %s215 = scalar_lea.vmem %s4, %s214
        %s216 = smul.u32 32, %s19
      $region36: #{basic_block_forward.3} parent=27 // pred_fallthru
        _
    $region28: #{basic_block_forward.3} parent=5 // pred_fallthru
      _
    %p217 = scmp.le.s32.totalorder 1, %s11
    %p218 = scmp.lt.s32.totalorder %s11, 3
    %p219 = pnand %p217, %p218
    %p220 = pneg %p219
    // Predicated region
    $region37: #{basic_block_forward.3} parent=5 // pred_check
      _
    $region38: #{basic_block_forward.3} parent=5 // pred_check_branch
      %222 = sbr.rel (%p219) target = $region40
    $region39: #{basic_block_forward.3} parent=5 // pred_region
      %s223 = ssub.s32 %s11, 1
      %p224 = scmp.lt.s32.totalorder %s20, 1
      %s225 = scalar_select %p224, %s20, 1
      %s226 = smul.addr %s225, 54
      %s227 = smul.addr %s226, 4
      %s228 = scalar_lea.vmem %s0, %s227
      %p229 = pneg %p49
      %p230 = pneg %p46
      %p231 = pneg %p70
      %p232 = pneg %p67
      %p233 = pneg %p91
      %p234 = pneg %p88
      %p235 = pneg %p112
      %p236 = pneg %p109
      %s237 = smul.u32 32, %s21
      %p238 = scmp.lt.s32.totalorder %s20, 1
      %s239 = scalar_select %p238, %s20, 1
      %p240 = scmp.lt.s32.totalorder %s237, 31
      %s241 = scalar_select %p240, %s237, 31
      %s242 = smul.addr %s239, 32
      %s243 = sadd.s32 %s241, %s242
      %s244 = smul.addr %s243, 4
      %s245 = scalar_lea.vmem %s4, %s244
      %p246 = pneg %p140
      %p247 = pneg %p137
      %p248 = pneg %p168
      %p249 = pneg %p165
      %s250 = smul.u32 32, %s21
      %p251 = scmp.lt.s32.totalorder %s20, 1
      %s252 = scalar_select %p251, %s20, 1
      %p253 = scmp.lt.s32.totalorder %s250, 31
      %s254 = scalar_select %p253, %s250, 31
      %s255 = smul.addr %s252, 32
      %s256 = sadd.s32 %s254, %s255
      %s257 = smul.addr %s256, 4
      %s258 = scalar_lea.vmem %s5, %s257
      %p259 = scmp.lt.s32.totalorder %s20, 1
      %s260 = scalar_select %p259, %s20, 1
      %s261 = smul.addr %s260, 54
      %s262 = smul.addr %s261, 4
      %s263 = scalar_lea.vmem %s0, %s262
      %s264 = smul.u32 32, %s21
      %p265 = scmp.lt.s32.totalorder %s20, 1
      %s266 = scalar_select %p265, %s20, 1
      %p267 = scmp.lt.s32.totalorder %s264, 31
      %s268 = scalar_select %p267, %s264, 31
      %s269 = smul.addr %s266, 32
      %s270 = sadd.s32 %s268, %s269
      %s271 = smul.addr %s270, 4
      %s272 = scalar_lea.vmem %s4, %s271
      %s273 = smul.u32 32, %s21
      %s274 = smul.u32 32, %s21
      %p275 = scmp.lt.s32.totalorder %s20, 1
      %s276 = scalar_select %p275, %s20, 1
      %p277 = scmp.lt.s32.totalorder %s274, 31
      %s278 = scalar_select %p277, %s274, 31
      %s279 = smul.addr %s276, 32
      %s280 = sadd.s32 %s278, %s279
      %s281 = smul.addr %s280, 4
      %s282 = scalar_lea.vmem %s5, %s281
      %s283 = smul.u32 32, %s21
      %s285 = smul.u32 %s21, 16
      %s286 = smul.u32 %s285, 3
      %s287 = smul.addr %s286, 4
      %s288 = scalar_lea.vmem %s263, %s287
      %v289 = vld [vmem:[%s288] sm:$0xf]
      %v290 = vld [vmem:[%s288 + $0x4] sm:$0xf]
      %v291 = vld [vmem:[%s288 + $0x8] sm:$0x1]
      %v292 = vld [vmem:[%s288 + $0xc] sm:$0xf]
      %v293 = vld [vmem:[%s288 + $0x10] sm:$0xf]
      %v294 = vld [vmem:[%s288 + $0x14] sm:$0x1]
      %v295 = vld [vmem:[%s288 + $0x18] sm:$0xf]
      %v296 = vld [vmem:[%s288 + $0x1c] sm:$0xf]
      %v297 = vld [vmem:[%s288 + $0x20] sm:$0x1]
      %v298 = vld [vmem:[%s288 + $0x24] sm:$0xf]
      %v299 = vld [vmem:[%s288 + $0x28] sm:$0xf]
      %v300 = vld [vmem:[%s288 + $0x2c] sm:$0x1]
      %v301 = vld [vmem:[%s288 + $0x30] sm:$0xf]
      %v302 = vld [vmem:[%s288 + $0x34] sm:$0xf]
      %v303 = vld [vmem:[%s288 + $0x38] sm:$0x1]
      %v304 = vld [vmem:[%s288 + $0x3c] sm:$0xf]
      %v305 = vld [vmem:[%s288 + $0x40] sm:$0xf]
      %v306 = vld [vmem:[%s288 + $0x44] sm:$0x1]
      %v307 = vld [vmem:[%s288 + $0x48] sm:$0xf]
      %v308 = vld [vmem:[%s288 + $0x4c] sm:$0xf]
      %v309 = vld [vmem:[%s288 + $0x50] sm:$0x1]
      %v310 = vld [vmem:[%s288 + $0x54] sm:$0xf]
      %v311 = vld [vmem:[%s288 + $0x58] sm:$0xf]
      %v312 = vld [vmem:[%s288 + $0x5c] sm:$0x1]
      %v313 = vld [vmem:[%s288 + $0x60] sm:$0xf]
      %v314 = vld [vmem:[%s288 + $0x64] sm:$0xf]
      %v315 = vld [vmem:[%s288 + $0x68] sm:$0x1]
      %v316 = vld [vmem:[%s288 + $0x6c] sm:$0xf]
      %v317 = vld [vmem:[%s288 + $0x70] sm:$0xf]
      %v318 = vld [vmem:[%s288 + $0x74] sm:$0x1]
      %v319 = vld [vmem:[%s288 + $0x78] sm:$0xf]
      %v320 = vld [vmem:[%s288 + $0x7c] sm:$0xf]
      %v321 = vld [vmem:[%s288 + $0x80] sm:$0x1]
      %v322 = vld [vmem:[%s288 + $0x84] sm:$0xf]
      %v323 = vld [vmem:[%s288 + $0x88] sm:$0xf]
      %v324 = vld [vmem:[%s288 + $0x8c] sm:$0x1]
      %v325 = vld [vmem:[%s288 + $0x90] sm:$0xf]
      %v326 = vld [vmem:[%s288 + $0x94] sm:$0xf]
      %v327 = vld [vmem:[%s288 + $0x98] sm:$0x1]
      %v328 = vld [vmem:[%s288 + $0x9c] sm:$0xf]
      %v329 = vld [vmem:[%s288 + $0xa0] sm:$0xf]
      %v330 = vld [vmem:[%s288 + $0xa4] sm:$0x1]
      %v331 = vld [vmem:[%s288 + $0xa8] sm:$0xf]
      %v332 = vld [vmem:[%s288 + $0xac] sm:$0xf]
      %v333 = vld [vmem:[%s288 + $0xb0] sm:$0x1]
      %v334 = vld [vmem:[%s288 + $0xb4] sm:$0xf]
      %v335 = vld [vmem:[%s288 + $0xb8] sm:$0xf]
      %v336 = vld [vmem:[%s288 + $0xbc] sm:$0x1]
      %v337 = vld [vmem:[%s288 + $0xc0] sm:$0xf]
      %v338 = vld [vmem:[%s288 + $0xc4] sm:$0xf]
      %v339 = vld [vmem:[%s288 + $0xc8] sm:$0x1]
      %v340 = vld [vmem:[%s288 + $0xcc] sm:$0xf]
      %v341 = vld [vmem:[%s288 + $0xd0] sm:$0xf]
      %v342 = vld [vmem:[%s288 + $0xd4] sm:$0x1]
      %v375 = vunpack.c.l.b16 %v289
      %v376 = vunpack.c.l.b16 %v290
      %v377 = vunpack.c.l.b16 %v292
      %v378 = vunpack.c.l.b16 %v293
      %v379 = vunpack.c.l.b16 %v295
      %v380 = vunpack.c.l.b16 %v296
      %v381 = vunpack.c.l.b16 %v298
      %v382 = vunpack.c.l.b16 %v299
      %v383 = vunpack.c.l.b16 %v301
      %v384 = vunpack.c.l.b16 %v302
      %v385 = vunpack.c.l.b16 %v304
      %v386 = vunpack.c.l.b16 %v305
      %v387 = vunpack.c.l.b16 %v307
      %v388 = vunpack.c.l.b16 %v308
      %v389 = vunpack.c.l.b16 %v310
      %v390 = vunpack.c.l.b16 %v311
      %v391 = vunpack.c.l.b16 %v313
      %v392 = vunpack.c.l.b16 %v314
      %v393 = vunpack.c.l.b16 %v316
      %v394 = vunpack.c.l.b16 %v317
      %v395 = vunpack.c.l.b16 %v319
      %v396 = vunpack.c.l.b16 %v320
      %v397 = vunpack.c.l.b16 %v322
      %v398 = vunpack.c.l.b16 %v323
      %v399 = vunpack.c.l.b16 %v325
      %v400 = vunpack.c.l.b16 %v326
      %v401 = vunpack.c.l.b16 %v328
      %v402 = vunpack.c.l.b16 %v329
      %v403 = vunpack.c.l.b16 %v331
      %v404 = vunpack.c.l.b16 %v332
      %v405 = vunpack.c.l.b16 %v334
      %v406 = vunpack.c.l.b16 %v335
      %v407 = vpack.c.b16 %v376, %v375
      %v408 = vpack.c.b16 %v378, %v377
      %v409 = vpack.c.b16 %v380, %v379
      %v410 = vpack.c.b16 %v382, %v381
      %v411 = vpack.c.b16 %v384, %v383
      %v412 = vpack.c.b16 %v386, %v385
      %v413 = vpack.c.b16 %v388, %v387
      %v414 = vpack.c.b16 %v390, %v389
      %v415 = vpack.c.b16 %v392, %v391
      %v416 = vpack.c.b16 %v394, %v393
      %v417 = vpack.c.b16 %v396, %v395
      %v418 = vpack.c.b16 %v398, %v397
      %v419 = vpack.c.b16 %v400, %v399
      %v420 = vpack.c.b16 %v402, %v401
      %v421 = vpack.c.b16 %v404, %v403
      %v422 = vpack.c.b16 %v406, %v405
      %v455 = vunpack.c.l.b16 %v291
      %v456 = vunpack.c.l.b16 %v294
      %v457 = vunpack.c.l.b16 %v297
      %v458 = vunpack.c.l.b16 %v300
      %v459 = vunpack.c.l.b16 %v303
      %v460 = vunpack.c.l.b16 %v306
      %v461 = vunpack.c.l.b16 %v309
      %v462 = vunpack.c.l.b16 %v312
      %v463 = vunpack.c.l.b16 %v315
      %v464 = vunpack.c.l.b16 %v318
      %v465 = vunpack.c.l.b16 %v321
      %v466 = vunpack.c.l.b16 %v324
      %v467 = vunpack.c.l.b16 %v327
      %v468 = vunpack.c.l.b16 %v330
      %v469 = vunpack.c.l.b16 %v333
      %v470 = vunpack.c.l.b16 %v336
      %v471 = vpack.c.b16 %v455, %v455
      %v472 = vpack.c.b16 %v456, %v456
      %v473 = vpack.c.b16 %v457, %v457
      %v474 = vpack.c.b16 %v458, %v458
      %v475 = vpack.c.b16 %v459, %v459
      %v476 = vpack.c.b16 %v460, %v460
      %v477 = vpack.c.b16 %v461, %v461
      %v478 = vpack.c.b16 %v462, %v462
      %v479 = vpack.c.b16 %v463, %v463
      %v480 = vpack.c.b16 %v464, %v464
      %v481 = vpack.c.b16 %v465, %v465
      %v482 = vpack.c.b16 %v466, %v466
      %v483 = vpack.c.b16 %v467, %v467
      %v484 = vpack.c.b16 %v468, %v468
      %v485 = vpack.c.b16 %v469, %v469
      %v486 = vpack.c.b16 %v470, %v470
      %vm487 = vsmask.f32 7424
      %v489 = vshrl.u32 %v407, 16
      %v491 = vshll.u32 %v407, 16
      %v493 = vrot.slane %v491, 1
      %v494 = vor.u32 %v489, %v493
      %v496 = vshll.u32 %v471, 16
      %v498 = vrot.slane %v496, 1
      %v499 = vsel %vm487, %v494, %v498
      %v501 = vshrl.u32 %v408, 16
      %v503 = vshll.u32 %v408, 16
      %v505 = vrot.slane %v503, 1
      %v506 = vor.u32 %v501, %v505
      %v508 = vshll.u32 %v472, 16
      %v510 = vrot.slane %v508, 1
      %v511 = vsel %vm487, %v506, %v510
      %v513 = vshrl.u32 %v409, 16
      %v515 = vshll.u32 %v409, 16
      %v517 = vrot.slane %v515, 1
      %v518 = vor.u32 %v513, %v517
      %v520 = vshll.u32 %v473, 16
      %v522 = vrot.slane %v520, 1
      %v523 = vsel %vm487, %v518, %v522
      %v525 = vshrl.u32 %v410, 16
      %v527 = vshll.u32 %v410, 16
      %v529 = vrot.slane %v527, 1
      %v530 = vor.u32 %v525, %v529
      %v532 = vshll.u32 %v474, 16
      %v534 = vrot.slane %v532, 1
      %v535 = vsel %vm487, %v530, %v534
      %v537 = vshrl.u32 %v411, 16
      %v539 = vshll.u32 %v411, 16
      %v541 = vrot.slane %v539, 1
      %v542 = vor.u32 %v537, %v541
      %v544 = vshll.u32 %v475, 16
      %v546 = vrot.slane %v544, 1
      %v547 = vsel %vm487, %v542, %v546
      %v549 = vshrl.u32 %v412, 16
      %v551 = vshll.u32 %v412, 16
      %v553 = vrot.slane %v551, 1
      %v554 = vor.u32 %v549, %v553
      %v556 = vshll.u32 %v476, 16
      %v558 = vrot.slane %v556, 1
      %v559 = vsel %vm487, %v554, %v558
      %v561 = vshrl.u32 %v413, 16
      %v563 = vshll.u32 %v413, 16
      %v565 = vrot.slane %v563, 1
      %v566 = vor.u32 %v561, %v565
      %v568 = vshll.u32 %v477, 16
      %v570 = vrot.slane %v568, 1
      %v571 = vsel %vm487, %v566, %v570
      %v573 = vshrl.u32 %v414, 16
      %v575 = vshll.u32 %v414, 16
      %v577 = vrot.slane %v575, 1
      %v578 = vor.u32 %v573, %v577
      %v580 = vshll.u32 %v478, 16
      %v582 = vrot.slane %v580, 1
      %v583 = vsel %vm487, %v578, %v582
      %v585 = vshrl.u32 %v415, 16
      %v587 = vshll.u32 %v415, 16
      %v589 = vrot.slane %v587, 1
      %v590 = vor.u32 %v585, %v589
      %v592 = vshll.u32 %v479, 16
      %v594 = vrot.slane %v592, 1
      %v595 = vsel %vm487, %v590, %v594
      %v597 = vshrl.u32 %v416, 16
      %v599 = vshll.u32 %v416, 16
      %v601 = vrot.slane %v599, 1
      %v602 = vor.u32 %v597, %v601
      %v604 = vshll.u32 %v480, 16
      %v606 = vrot.slane %v604, 1
      %v607 = vsel %vm487, %v602, %v606
      %v609 = vshrl.u32 %v417, 16
      %v611 = vshll.u32 %v417, 16
      %v613 = vrot.slane %v611, 1
      %v614 = vor.u32 %v609, %v613
      %v616 = vshll.u32 %v481, 16
      %v618 = vrot.slane %v616, 1
      %v619 = vsel %vm487, %v614, %v618
      %v621 = vshrl.u32 %v418, 16
      %v623 = vshll.u32 %v418, 16
      %v625 = vrot.slane %v623, 1
      %v626 = vor.u32 %v621, %v625
      %v628 = vshll.u32 %v482, 16
      %v630 = vrot.slane %v628, 1
      %v631 = vsel %vm487, %v626, %v630
      %v633 = vshrl.u32 %v419, 16
      %v635 = vshll.u32 %v419, 16
      %v637 = vrot.slane %v635, 1
      %v638 = vor.u32 %v633, %v637
      %v640 = vshll.u32 %v483, 16
      %v642 = vrot.slane %v640, 1
      %v643 = vsel %vm487, %v638, %v642
      %v645 = vshrl.u32 %v420, 16
      %v647 = vshll.u32 %v420, 16
      %v649 = vrot.slane %v647, 1
      %v650 = vor.u32 %v645, %v649
      %v652 = vshll.u32 %v484, 16
      %v654 = vrot.slane %v652, 1
      %v655 = vsel %vm487, %v650, %v654
      %v657 = vshrl.u32 %v421, 16
      %v659 = vshll.u32 %v421, 16
      %v661 = vrot.slane %v659, 1
      %v662 = vor.u32 %v657, %v661
      %v664 = vshll.u32 %v485, 16
      %v666 = vrot.slane %v664, 1
      %v667 = vsel %vm487, %v662, %v666
      %v669 = vshrl.u32 %v422, 16
      %v671 = vshll.u32 %v422, 16
      %v673 = vrot.slane %v671, 1
      %v674 = vor.u32 %v669, %v673
      %v676 = vshll.u32 %v486, 16
      %v678 = vrot.slane %v676, 1
      %v679 = vsel %vm487, %v674, %v678
      %vm696 = vcmask 1046528
      %v697 = vrot.slane %v407, 1
      %v698 = vrot.slane %v471, 1
      %v699 = vsel %vm696, %v697, %v698
      %v700 = vrot.slane %v408, 1
      %v701 = vrot.slane %v472, 1
      %v702 = vsel %vm696, %v700, %v701
      %v703 = vrot.slane %v409, 1
      %v704 = vrot.slane %v473, 1
      %v705 = vsel %vm696, %v703, %v704
      %v706 = vrot.slane %v410, 1
      %v707 = vrot.slane %v474, 1
      %v708 = vsel %vm696, %v706, %v707
      %v709 = vrot.slane %v411, 1
      %v710 = vrot.slane %v475, 1
      %v711 = vsel %vm696, %v709, %v710
      %v712 = vrot.slane %v412, 1
      %v713 = vrot.slane %v476, 1
      %v714 = vsel %vm696, %v712, %v713
      %v715 = vrot.slane %v413, 1
      %v716 = vrot.slane %v477, 1
      %v717 = vsel %vm696, %v715, %v716
      %v718 = vrot.slane %v414, 1
      %v719 = vrot.slane %v478, 1
      %v720 = vsel %vm696, %v718, %v719
      %v721 = vrot.slane %v415, 1
      %v722 = vrot.slane %v479, 1
      %v723 = vsel %vm696, %v721, %v722
      %v724 = vrot.slane %v416, 1
      %v725 = vrot.slane %v480, 1
      %v726 = vsel %vm696, %v724, %v725
      %v727 = vrot.slane %v417, 1
      %v728 = vrot.slane %v481, 1
      %v729 = vsel %vm696, %v727, %v728
      %v730 = vrot.slane %v418, 1
      %v731 = vrot.slane %v482, 1
      %v732 = vsel %vm696, %v730, %v731
      %v733 = vrot.slane %v419, 1
      %v734 = vrot.slane %v483, 1
      %v735 = vsel %vm696, %v733, %v734
      %v736 = vrot.slane %v420, 1
      %v737 = vrot.slane %v484, 1
      %v738 = vsel %vm696, %v736, %v737
      %v739 = vrot.slane %v421, 1
      %v740 = vrot.slane %v485, 1
      %v741 = vsel %vm696, %v739, %v740
      %v742 = vrot.slane %v422, 1
      %v743 = vrot.slane %v486, 1
      %v744 = vsel %vm696, %v742, %v743
      %v761 = vld [vmem:[%s1] sm:$0xf]
      %v762 = vld [vmem:[%s1 + $0x4] sm:$0xf]
      %v763 = vld [vmem:[%s1 + $0x8] sm:$0xf]
      %v764 = vld [vmem:[%s1 + $0xc] sm:$0xf]
      %v765 = vld [vmem:[%s1 + $0x10] sm:$0xf]
      %v766 = vld [vmem:[%s1 + $0x14] sm:$0xf]
      %v767 = vld [vmem:[%s1 + $0x18] sm:$0xf]
      %v768 = vld [vmem:[%s1 + $0x1c] sm:$0xf]
      %v769 = vld [vmem:[%s1 + $0x20] sm:$0xf]
      %v770 = vld [vmem:[%s1 + $0x24] sm:$0xf]
      %v771 = vld [vmem:[%s1 + $0x28] sm:$0xf]
      %v772 = vld [vmem:[%s1 + $0x2c] sm:$0xf]
      %v773 = vld [vmem:[%s1 + $0x30] sm:$0xf]
      %v774 = vld [vmem:[%s1 + $0x34] sm:$0xf]
      %v775 = vld [vmem:[%s1 + $0x38] sm:$0xf]
      %v776 = vld [vmem:[%s1 + $0x3c] sm:$0xf]
      %v777 = vld [vmem:[%s1 + $0x40] sm:$0xf]
      %v778 = vld [vmem:[%s1 + $0x44] sm:$0xf]
      %v779 = vld [vmem:[%s1 + $0x48] sm:$0xf]
      %v780 = vld [vmem:[%s1 + $0x4c] sm:$0xf]
      %v781 = vld [vmem:[%s1 + $0x50] sm:$0xf]
      %v782 = vld [vmem:[%s1 + $0x54] sm:$0xf]
      %v783 = vld [vmem:[%s1 + $0x58] sm:$0xf]
      %v784 = vld [vmem:[%s1 + $0x5c] sm:$0xf]
      %v785 = vld [vmem:[%s1 + $0x60] sm:$0xf]
      %v786 = vld [vmem:[%s1 + $0x64] sm:$0xf]
      %v787 = vld [vmem:[%s1 + $0x68] sm:$0xf]
      %v788 = vld [vmem:[%s1 + $0x6c] sm:$0xf]
      %v789 = vld [vmem:[%s1 + $0x70] sm:$0xf]
      %v790 = vld [vmem:[%s1 + $0x74] sm:$0xf]
      %v791 = vld [vmem:[%s1 + $0x78] sm:$0xf]
      %v792 = vld [vmem:[%s1 + $0x7c] sm:$0xf]
      %v793 = vld [vmem:[%s1 + $0x80] sm:$0xf]
      %v794 = vld [vmem:[%s1 + $0x84] sm:$0xf]
      %v795 = vld [vmem:[%s1 + $0x88] sm:$0xf]
      %v796 = vld [vmem:[%s1 + $0x8c] sm:$0xf]
      %v797 = vld [vmem:[%s1 + $0x90] sm:$0xf]
      %v798 = vld [vmem:[%s1 + $0x94] sm:$0xf]
      %v799 = vld [vmem:[%s1 + $0x98] sm:$0xf]
      %v800 = vld [vmem:[%s1 + $0x9c] sm:$0xf]
      %v801 = vld [vmem:[%s1 + $0xa0] sm:$0xf]
      %v802 = vld [vmem:[%s1 + $0xa4] sm:$0xf]
      %v803 = vld [vmem:[%s1 + $0xa8] sm:$0xf]
      %v804 = vld [vmem:[%s1 + $0xac] sm:$0xf]
      %v805 = vld [vmem:[%s1 + $0xb0] sm:$0xf]
      %v806 = vld [vmem:[%s1 + $0xb4] sm:$0xf]
      %v807 = vld [vmem:[%s1 + $0xb8] sm:$0xf]
      %v808 = vld [vmem:[%s1 + $0xbc] sm:$0xf]
      %v811 = vunpack.c.l.b16 %v337
      %v812 = vunpack.c.l.b16 %v338
      %v813 = vpack.c.b16 %v812, %v811
      %v816 = vunpack.c.l.b16 %v339
      %v817 = vpack.c.b16 %v816, %v816
      %v819 = vshrl.u32 %v813, 16
      %v821 = vshll.u32 %v813, 16
      %v823 = vrot.slane %v821, 1
      %v824 = vor.u32 %v819, %v823
      %v826 = vshll.u32 %v817, 16
      %v828 = vrot.slane %v826, 1
      %v829 = vsel %vm487, %v824, %v828
      %v831 = vrot.slane %v813, 1
      %v832 = vrot.slane %v817, 1
      %v833 = vsel %vm696, %v831, %v832
      %s835 = scalar_lea.vmem %s1, 192
      %v836 = vld [vmem:[%s835] sm:$0xf]
      %v837 = vld [vmem:[%s835 + $0x4] sm:$0xf]
      %v838 = vld [vmem:[%s835 + $0x8] sm:$0xf]
      %v839 = vld [vmem:[%s835 + $0xc] sm:$0xf]
      %v840 = vld [vmem:[%s835 + $0x10] sm:$0xf]
      %v841 = vld [vmem:[%s835 + $0x14] sm:$0xf]
      %v842 = vld [vmem:[%s835 + $0x18] sm:$0xf]
      %v843 = vld [vmem:[%s835 + $0x1c] sm:$0xf]
      %v844 = vld [vmem:[%s835 + $0x20] sm:$0xf]
      %v845 = vld [vmem:[%s835 + $0x24] sm:$0xf]
      %v846 = vld [vmem:[%s835 + $0x28] sm:$0xf]
      %v847 = vld [vmem:[%s835 + $0x2c] sm:$0xf]
      %v848 = vld [vmem:[%s835 + $0x30] sm:$0xf]
      %v849 = vld [vmem:[%s835 + $0x34] sm:$0xf]
      %v850 = vld [vmem:[%s835 + $0x38] sm:$0xf]
      %v851 = vld [vmem:[%s835 + $0x3c] sm:$0xf]
      %v852 = vld [vmem:[%s835 + $0x40] sm:$0xf]
      %v853 = vld [vmem:[%s835 + $0x44] sm:$0xf]
      %v854 = vld [vmem:[%s835 + $0x48] sm:$0xf]
      %v855 = vld [vmem:[%s835 + $0x4c] sm:$0xf]
      %v856 = vld [vmem:[%s835 + $0x50] sm:$0xf]
      %v857 = vld [vmem:[%s835 + $0x54] sm:$0xf]
      %v858 = vld [vmem:[%s835 + $0x58] sm:$0xf]
      %v859 = vld [vmem:[%s835 + $0x5c] sm:$0xf]
      %v860 = vld [vmem:[%s835 + $0x60] sm:$0xf]
      %v861 = vld [vmem:[%s835 + $0x64] sm:$0xf]
      %v862 = vld [vmem:[%s835 + $0x68] sm:$0xf]
      %v863 = vld [vmem:[%s835 + $0x6c] sm:$0xf]
      %v864 = vld [vmem:[%s835 + $0x70] sm:$0xf]
      %v865 = vld [vmem:[%s835 + $0x74] sm:$0xf]
      %v866 = vld [vmem:[%s835 + $0x78] sm:$0xf]
      %v867 = vld [vmem:[%s835 + $0x7c] sm:$0xf]
      %v868 = vld [vmem:[%s835 + $0x80] sm:$0xf]
      %v869 = vld [vmem:[%s835 + $0x84] sm:$0xf]
      %v870 = vld [vmem:[%s835 + $0x88] sm:$0xf]
      %v871 = vld [vmem:[%s835 + $0x8c] sm:$0xf]
      %v872 = vld [vmem:[%s835 + $0x90] sm:$0xf]
      %v873 = vld [vmem:[%s835 + $0x94] sm:$0xf]
      %v874 = vld [vmem:[%s835 + $0x98] sm:$0xf]
      %v875 = vld [vmem:[%s835 + $0x9c] sm:$0xf]
      %v876 = vld [vmem:[%s835 + $0xa0] sm:$0xf]
      %v877 = vld [vmem:[%s835 + $0xa4] sm:$0xf]
      %v878 = vld [vmem:[%s835 + $0xa8] sm:$0xf]
      %v879 = vld [vmem:[%s835 + $0xac] sm:$0xf]
      %v880 = vld [vmem:[%s835 + $0xb0] sm:$0xf]
      %v881 = vld [vmem:[%s835 + $0xb4] sm:$0xf]
      %v882 = vld [vmem:[%s835 + $0xb8] sm:$0xf]
      %v883 = vld [vmem:[%s835 + $0xbc] sm:$0xf]
      %v932 = vunpack.c.l.b16 %v836
      %v933 = vunpack.c.l.b16 %v837
      %v934 = vunpack.c.l.b16 %v838
      %v935 = vunpack.c.l.b16 %v839
      %v936 = vunpack.c.l.b16 %v840
      %v937 = vunpack.c.l.b16 %v841
      %v938 = vunpack.c.l.b16 %v842
      %v939 = vunpack.c.l.b16 %v843
      %v940 = vunpack.c.l.b16 %v844
      %v941 = vunpack.c.l.b16 %v845
      %v942 = vunpack.c.l.b16 %v846
      %v943 = vunpack.c.l.b16 %v847
      %v944 = vunpack.c.l.b16 %v848
      %v945 = vunpack.c.l.b16 %v849
      %v946 = vunpack.c.l.b16 %v850
      %v947 = vunpack.c.l.b16 %v851
      %v948 = vunpack.c.l.b16 %v852
      %v949 = vunpack.c.l.b16 %v853
      %v950 = vunpack.c.l.b16 %v854
      %v951 = vunpack.c.l.b16 %v855
      %v952 = vunpack.c.l.b16 %v856
      %v953 = vunpack.c.l.b16 %v857
      %v954 = vunpack.c.l.b16 %v858
      %v955 = vunpack.c.l.b16 %v859
      %v956 = vunpack.c.l.b16 %v860
      %v957 = vunpack.c.l.b16 %v861
      %v958 = vunpack.c.l.b16 %v862
      %v959 = vunpack.c.l.b16 %v863
      %v960 = vunpack.c.l.b16 %v864
      %v961 = vunpack.c.l.b16 %v865
      %v962 = vunpack.c.l.b16 %v866
      %v963 = vunpack.c.l.b16 %v867
      %v964 = vunpack.c.l.b16 %v868
      %v965 = vunpack.c.l.b16 %v869
      %v966 = vunpack.c.l.b16 %v870
      %v967 = vunpack.c.l.b16 %v871
      %v968 = vunpack.c.l.b16 %v872
      %v969 = vunpack.c.l.b16 %v873
      %v970 = vunpack.c.l.b16 %v874
      %v971 = vunpack.c.l.b16 %v875
      %v972 = vunpack.c.l.b16 %v876
      %v973 = vunpack.c.l.b16 %v877
      %v974 = vunpack.c.l.b16 %v878
      %v975 = vunpack.c.l.b16 %v879
      %v976 = vunpack.c.l.b16 %v880
      %v977 = vunpack.c.l.b16 %v881
      %v978 = vunpack.c.l.b16 %v882
      %v979 = vunpack.c.l.b16 %v883
      %v980 = vpack.c.b16 %v933, %v932
      %v981 = vpack.c.b16 %v935, %v934
      %v982 = vpack.c.b16 %v937, %v936
      %v983 = vpack.c.b16 %v939, %v938
      %v984 = vpack.c.b16 %v941, %v940
      %v985 = vpack.c.b16 %v943, %v942
      %v986 = vpack.c.b16 %v945, %v944
      %v987 = vpack.c.b16 %v947, %v946
      %v988 = vpack.c.b16 %v949, %v948
      %v989 = vpack.c.b16 %v951, %v950
      %v990 = vpack.c.b16 %v953, %v952
      %v991 = vpack.c.b16 %v955, %v954
      %v992 = vpack.c.b16 %v957, %v956
      %v993 = vpack.c.b16 %v959, %v958
      %v994 = vpack.c.b16 %v961, %v960
      %v995 = vpack.c.b16 %v963, %v962
      %v996 = vpack.c.b16 %v965, %v964
      %v997 = vpack.c.b16 %v967, %v966
      %v998 = vpack.c.b16 %v969, %v968
      %v999 = vpack.c.b16 %v971, %v970
      %v1000 = vpack.c.b16 %v973, %v972
      %v1001 = vpack.c.b16 %v975, %v974
      %v1002 = vpack.c.b16 %v977, %v976
      %v1003 = vpack.c.b16 %v979, %v978
      %1028 = vmatprep.subr.bf16.mxu0 0
      %1029 = vmatpush1.bf16.msra.mxu0 %v987
      %1030 = vmatprep.subr.bf16.mxu0 0
      %1031 = vmatpush1.bf16.msra.mxu0 %v986
      %1032 = vmatprep.subr.bf16.mxu0 0
      %1033 = vmatpush1.bf16.msra.mxu0 %v985
      %1034 = vmatprep.subr.bf16.mxu0 0
      %1035 = vmatpush1.bf16.msra.mxu0 %v984
      %1036 = vmatprep.subr.bf16.mxu0 0
      %1037 = vmatpush1.bf16.msra.mxu0 %v983
      %1038 = vmatprep.subr.bf16.mxu0 0
      %1039 = vmatpush1.bf16.msra.mxu0 %v982
      %1040 = vmatprep.subr.bf16.mxu0 0
      %1041 = vmatpush1.bf16.msra.mxu0 %v981
      %1042 = vmatprep.subr.bf16.mxu0 0
      %1043 = vmatpush1.bf16.msra.mxu0 %v980
      %1044 = vmatprep.subr.bf16.mxu0 0
      %1045 = vmatpush2.bf16.msra.mxu0 %v995
      %1046 = vmatprep.subr.bf16.mxu0 0
      %1047 = vmatpush2.bf16.msra.mxu0 %v994
      %1048 = vmatprep.subr.bf16.mxu0 0
      %1049 = vmatpush2.bf16.msra.mxu0 %v993
      %1050 = vmatprep.subr.bf16.mxu0 0
      %1051 = vmatpush2.bf16.msra.mxu0 %v992
      %1052 = vmatprep.subr.bf16.mxu0 0
      %1053 = vmatpush2.bf16.msra.mxu0 %v991
      %1054 = vmatprep.subr.bf16.mxu0 0
      %1055 = vmatpush2.bf16.msra.mxu0 %v990
      %1056 = vmatprep.subr.bf16.mxu0 0
      %1057 = vmatpush2.bf16.msra.mxu0 %v989
      %1058 = vmatprep.subr.bf16.mxu0 0
      %1059 = vmatpush2.bf16.msra.mxu0 %v988
      %1060 = vmatprep.mubr.bf16.mxu0 %v511
      %1061 = vmatmul.mubr.bf16.gmra.mxu0 %v408
      %v1062 = vpop.f32.mrf.mxu0
      %v1063 = vadd.f32 0.0, %v1062
      %v1064 = vpop.f32.mrf.mxu0
      %v1065 = vpop.f32.mrf.mxu0
      %v1066 = vadd.f32 0.0, %v1065
      %v1067 = vpop.f32.mrf.mxu0
      %1068 = vmatprep.mubr.bf16.mxu0 %v523
      %1069 = vmatmul.mubr.bf16.gmra.mxu0 %v409
      %v1070 = vpop.f32.mrf.mxu0
      %v1071 = vadd.f32 0.0, %v1070
      %v1072 = vpop.f32.mrf.mxu0
      %v1073 = vpop.f32.mrf.mxu0
      %v1074 = vadd.f32 0.0, %v1073
      %v1075 = vpop.f32.mrf.mxu0
      %1076 = vmatprep.mubr.bf16.mxu0 %v535
      %1077 = vmatmul.mubr.bf16.gmra.mxu0 %v410
      %v1078 = vpop.f32.mrf.mxu0
      %v1079 = vadd.f32 0.0, %v1078
      %v1080 = vpop.f32.mrf.mxu0
      %v1081 = vpop.f32.mrf.mxu0
      %v1082 = vadd.f32 0.0, %v1081
      %v1083 = vpop.f32.mrf.mxu0
      %1084 = vmatprep.mubr.bf16.mxu0 %v547
      %1085 = vmatmul.mubr.bf16.gmra.mxu0 %v411
      %v1086 = vpop.f32.mrf.mxu0
      %v1087 = vadd.f32 0.0, %v1086
      %v1088 = vpop.f32.mrf.mxu0
      %v1089 = vpop.f32.mrf.mxu0
      %v1090 = vadd.f32 0.0, %v1089
      %v1091 = vpop.f32.mrf.mxu0
      %1092 = vmatprep.mubr.bf16.mxu0 %v559
      %1093 = vmatmul.mubr.bf16.gmra.mxu0 %v412
      %v1094 = vpop.f32.mrf.mxu0
      %v1095 = vadd.f32 0.0, %v1094
      %v1096 = vpop.f32.mrf.mxu0
      %v1097 = vpop.f32.mrf.mxu0
      %v1098 = vadd.f32 0.0, %v1097
      %v1099 = vpop.f32.mrf.mxu0
      %1100 = vmatprep.mubr.bf16.mxu0 %v571
      %1101 = vmatmul.mubr.bf16.gmra.mxu0 %v413
      %v1102 = vpop.f32.mrf.mxu0
      %v1103 = vadd.f32 0.0, %v1102
      %v1104 = vpop.f32.mrf.mxu0
      %v1105 = vpop.f32.mrf.mxu0
      %v1106 = vadd.f32 0.0, %v1105
      %v1107 = vpop.f32.mrf.mxu0
      %1108 = vmatprep.mubr.bf16.mxu0 %v583
      %1109 = vmatmul.mubr.bf16.gmra.mxu0 %v414
      %v1110 = vpop.f32.mrf.mxu0
      %v1111 = vadd.f32 0.0, %v1110
      %v1112 = vpop.f32.mrf.mxu0
      %v1113 = vpop.f32.mrf.mxu0
      %v1114 = vadd.f32 0.0, %v1113
      %v1115 = vpop.f32.mrf.mxu0
      %1116 = vmatprep.mubr.bf16.mxu0 %v595
      %1117 = vmatmul.mubr.bf16.gmra.mxu0 %v415
      %v1118 = vpop.f32.mrf.mxu0
      %v1119 = vadd.f32 0.0, %v1118
      %v1120 = vpop.f32.mrf.mxu0
      %v1121 = vpop.f32.mrf.mxu0
      %v1122 = vadd.f32 0.0, %v1121
      %v1123 = vpop.f32.mrf.mxu0
      %1124 = vmatprep.mubr.bf16.mxu0 %v607
      %1125 = vmatmul.mubr.bf16.gmra.mxu0 %v416
      %v1126 = vpop.f32.mrf.mxu0
      %v1127 = vadd.f32 0.0, %v1126
      %v1128 = vpop.f32.mrf.mxu0
      %v1129 = vpop.f32.mrf.mxu0
      %v1130 = vadd.f32 0.0, %v1129
      %v1131 = vpop.f32.mrf.mxu0
      %1132 = vmatprep.mubr.bf16.mxu0 %v619
      %1133 = vmatmul.mubr.bf16.gmra.mxu0 %v417
      %v1134 = vpop.f32.mrf.mxu0
      %v1135 = vadd.f32 0.0, %v1134
      %v1136 = vpop.f32.mrf.mxu0
      %v1137 = vpop.f32.mrf.mxu0
      %v1138 = vadd.f32 0.0, %v1137
      %v1139 = vpop.f32.mrf.mxu0
      %1140 = vmatprep.mubr.bf16.mxu0 %v631
      %1141 = vmatmul.mubr.bf16.gmra.mxu0 %v418
      %v1142 = vpop.f32.mrf.mxu0
      %v1143 = vadd.f32 0.0, %v1142
      %v1144 = vpop.f32.mrf.mxu0
      %v1145 = vpop.f32.mrf.mxu0
      %v1146 = vadd.f32 0.0, %v1145
      %v1147 = vpop.f32.mrf.mxu0
      %1148 = vmatprep.mubr.bf16.mxu0 %v643
      %1149 = vmatmul.mubr.bf16.gmra.mxu0 %v419
      %v1150 = vpop.f32.mrf.mxu0
      %v1151 = vadd.f32 0.0, %v1150
      %v1152 = vpop.f32.mrf.mxu0
      %v1153 = vpop.f32.mrf.mxu0
      %v1154 = vadd.f32 0.0, %v1153
      %v1155 = vpop.f32.mrf.mxu0
      %1156 = vmatprep.mubr.bf16.mxu0 %v655
      %1157 = vmatmul.mubr.bf16.gmra.mxu0 %v420
      %v1158 = vpop.f32.mrf.mxu0
      %v1159 = vadd.f32 0.0, %v1158
      %v1160 = vpop.f32.mrf.mxu0
      %v1161 = vpop.f32.mrf.mxu0
      %v1162 = vadd.f32 0.0, %v1161
      %v1163 = vpop.f32.mrf.mxu0
      %1164 = vmatprep.mubr.bf16.mxu0 %v667
      %1165 = vmatmul.mubr.bf16.gmra.mxu0 %v421
      %v1166 = vpop.f32.mrf.mxu0
      %v1167 = vadd.f32 0.0, %v1166
      %v1168 = vpop.f32.mrf.mxu0
      %v1169 = vpop.f32.mrf.mxu0
      %v1170 = vadd.f32 0.0, %v1169
      %v1171 = vpop.f32.mrf.mxu0
      %1172 = vmatprep.mubr.bf16.mxu0 %v679
      %1173 = vmatmul.mubr.bf16.gmra.mxu0 %v422
      %v1174 = vpop.f32.mrf.mxu0
      %v1175 = vadd.f32 0.0, %v1174
      %v1176 = vpop.f32.mrf.mxu0
      %v1177 = vpop.f32.mrf.mxu0
      %v1178 = vadd.f32 0.0, %v1177
      %v1179 = vpop.f32.mrf.mxu0
      %1180 = vmatprep.mubr.bf16.mxu0 %v829
      %1181 = vmatmul.mubr.bf16.gmra.mxu0 %v813
      %v1182 = vpop.f32.mrf.mxu0
      %v1183 = vadd.f32 0.0, %v1182
      %v1184 = vpop.f32.mrf.mxu0
      %v1185 = vpop.f32.mrf.mxu0
      %v1186 = vadd.f32 0.0, %v1185
      %v1187 = vpop.f32.mrf.mxu0
      %1188 = vdwg.mxu0
      %1189 = vmatprep.subr.bf16.mxu0 0
      %1190 = vmatpush1.bf16.msra.mxu0 %v1003
      %1191 = vmatprep.subr.bf16.mxu0 0
      %1192 = vmatpush1.bf16.msra.mxu0 %v1002
      %1193 = vmatprep.subr.bf16.mxu0 0
      %1194 = vmatpush1.bf16.msra.mxu0 %v1001
      %1195 = vmatprep.subr.bf16.mxu0 0
      %1196 = vmatpush1.bf16.msra.mxu0 %v1000
      %1197 = vmatprep.subr.bf16.mxu0 0
      %1198 = vmatpush1.bf16.msra.mxu0 %v999
      %1199 = vmatprep.subr.bf16.mxu0 0
      %1200 = vmatpush1.bf16.msra.mxu0 %v998
      %1201 = vmatprep.subr.bf16.mxu0 0
      %1202 = vmatpush1.bf16.msra.mxu0 %v997
      %1203 = vmatprep.subr.bf16.mxu0 0
      %1204 = vmatpush1.bf16.msra.mxu0 %v996
      %1205 = vmatprep.subr.bf16.mxu0 0
      %1206 = vmatpush2.bf16.msra.mxu0 0
      %1207 = vmatprep.subr.bf16.mxu0 0
      %1208 = vmatpush2.bf16.msra.mxu0 0
      %1209 = vmatprep.subr.bf16.mxu0 0
      %1210 = vmatpush2.bf16.msra.mxu0 0
      %1211 = vmatprep.subr.bf16.mxu0 0
      %1212 = vmatpush2.bf16.msra.mxu0 0
      %1213 = vmatprep.subr.bf16.mxu0 0
      %1214 = vmatpush2.bf16.msra.mxu0 0
      %1215 = vmatprep.subr.bf16.mxu0 0
      %1216 = vmatpush2.bf16.msra.mxu0 0
      %1217 = vmatprep.subr.bf16.mxu0 0
      %1218 = vmatpush2.bf16.msra.mxu0 0
      %1219 = vmatprep.subr.bf16.mxu0 0
      %1220 = vmatpush2.bf16.msra.mxu0 0
      %1221 = vmatprep.mubr.bf16.mxu0 0
      %1222 = vmatmul.mubr.bf16.gmra.mxu0 %v702
      %v1223 = vpop.f32.mrf.mxu0
      %v1224 = vadd.f32 %v1063, %v1223
      %v1225 = vpop.f32.mrf.mxu0
      %v1226 = vpop.f32.mrf.mxu0
      %v1227 = vadd.f32 %v1066, %v1226
      %v1228 = vpop.f32.mrf.mxu0
      %1229 = vmatprep.mubr.bf16.mxu0 0
      %1230 = vmatmul.mubr.bf16.gmra.mxu0 %v705
      %v1231 = vpop.f32.mrf.mxu0
      %v1232 = vadd.f32 %v1071, %v1231
      %v1233 = vpop.f32.mrf.mxu0
      %v1234 = vpop.f32.mrf.mxu0
      %v1235 = vadd.f32 %v1074, %v1234
      %v1236 = vpop.f32.mrf.mxu0
      %1237 = vmatprep.mubr.bf16.mxu0 0
      %1238 = vmatmul.mubr.bf16.gmra.mxu0 %v708
      %v1239 = vpop.f32.mrf.mxu0
      %v1240 = vadd.f32 %v1079, %v1239
      %v1241 = vpop.f32.mrf.mxu0
      %v1242 = vpop.f32.mrf.mxu0
      %v1243 = vadd.f32 %v1082, %v1242
      %v1244 = vpop.f32.mrf.mxu0
      %1245 = vmatprep.mubr.bf16.mxu0 0
      %1246 = vmatmul.mubr.bf16.gmra.mxu0 %v711
      %v1247 = vpop.f32.mrf.mxu0
      %v1248 = vadd.f32 %v1087, %v1247
      %v1249 = vpop.f32.mrf.mxu0
      %v1250 = vpop.f32.mrf.mxu0
      %v1251 = vadd.f32 %v1090, %v1250
      %v1252 = vpop.f32.mrf.mxu0
      %1253 = vmatprep.mubr.bf16.mxu0 0
      %1254 = vmatmul.mubr.bf16.gmra.mxu0 %v714
      %v1255 = vpop.f32.mrf.mxu0
      %v1256 = vadd.f32 %v1095, %v1255
      %v1257 = vpop.f32.mrf.mxu0
      %v1258 = vpop.f32.mrf.mxu0
      %v1259 = vadd.f32 %v1098, %v1258
      %v1260 = vpop.f32.mrf.mxu0
      %1261 = vmatprep.mubr.bf16.mxu0 0
      %1262 = vmatmul.mubr.bf16.gmra.mxu0 %v717
      %v1263 = vpop.f32.mrf.mxu0
      %v1264 = vadd.f32 %v1103, %v1263
      %v1265 = vpop.f32.mrf.mxu0
      %v1266 = vpop.f32.mrf.mxu0
      %v1267 = vadd.f32 %v1106, %v1266
      %v1268 = vpop.f32.mrf.mxu0
      %1269 = vmatprep.mubr.bf16.mxu0 0
      %1270 = vmatmul.mubr.bf16.gmra.mxu0 %v720
      %v1271 = vpop.f32.mrf.mxu0
      %v1272 = vadd.f32 %v1111, %v1271
      %v1273 = vpop.f32.mrf.mxu0
      %v1274 = vpop.f32.mrf.mxu0
      %v1275 = vadd.f32 %v1114, %v1274
      %v1276 = vpop.f32.mrf.mxu0
      %1277 = vmatprep.mubr.bf16.mxu0 0
      %1278 = vmatmul.mubr.bf16.gmra.mxu0 %v723
      %v1279 = vpop.f32.mrf.mxu0
      %v1280 = vadd.f32 %v1119, %v1279
      %v1281 = vpop.f32.mrf.mxu0
      %v1282 = vpop.f32.mrf.mxu0
      %v1283 = vadd.f32 %v1122, %v1282
      %v1284 = vpop.f32.mrf.mxu0
      %1285 = vmatprep.mubr.bf16.mxu0 0
      %1286 = vmatmul.mubr.bf16.gmra.mxu0 %v726
      %v1287 = vpop.f32.mrf.mxu0
      %v1288 = vadd.f32 %v1127, %v1287
      %v1289 = vpop.f32.mrf.mxu0
      %v1290 = vpop.f32.mrf.mxu0
      %v1291 = vadd.f32 %v1130, %v1290
      %v1292 = vpop.f32.mrf.mxu0
      %1293 = vmatprep.mubr.bf16.mxu0 0
      %1294 = vmatmul.mubr.bf16.gmra.mxu0 %v729
      %v1295 = vpop.f32.mrf.mxu0
      %v1296 = vadd.f32 %v1135, %v1295
      %v1297 = vpop.f32.mrf.mxu0
      %v1298 = vpop.f32.mrf.mxu0
      %v1299 = vadd.f32 %v1138, %v1298
      %v1300 = vpop.f32.mrf.mxu0
      %1301 = vmatprep.mubr.bf16.mxu0 0
      %1302 = vmatmul.mubr.bf16.gmra.mxu0 %v732
      %v1303 = vpop.f32.mrf.mxu0
      %v1304 = vadd.f32 %v1143, %v1303
      %v1305 = vpop.f32.mrf.mxu0
      %v1306 = vpop.f32.mrf.mxu0
      %v1307 = vadd.f32 %v1146, %v1306
      %v1308 = vpop.f32.mrf.mxu0
      %1309 = vmatprep.mubr.bf16.mxu0 0
      %1310 = vmatmul.mubr.bf16.gmra.mxu0 %v735
      %v1311 = vpop.f32.mrf.mxu0
      %v1312 = vadd.f32 %v1151, %v1311
      %v1313 = vpop.f32.mrf.mxu0
      %v1314 = vpop.f32.mrf.mxu0
      %v1315 = vadd.f32 %v1154, %v1314
      %v1316 = vpop.f32.mrf.mxu0
      %1317 = vmatprep.mubr.bf16.mxu0 0
      %1318 = vmatmul.mubr.bf16.gmra.mxu0 %v738
      %v1319 = vpop.f32.mrf.mxu0
      %v1320 = vadd.f32 %v1159, %v1319
      %v1321 = vpop.f32.mrf.mxu0
      %v1322 = vpop.f32.mrf.mxu0
      %v1323 = vadd.f32 %v1162, %v1322
      %v1324 = vpop.f32.mrf.mxu0
      %1325 = vmatprep.mubr.bf16.mxu0 0
      %1326 = vmatmul.mubr.bf16.gmra.mxu0 %v741
      %v1327 = vpop.f32.mrf.mxu0
      %v1328 = vadd.f32 %v1167, %v1327
      %v1329 = vpop.f32.mrf.mxu0
      %v1330 = vpop.f32.mrf.mxu0
      %v1331 = vadd.f32 %v1170, %v1330
      %v1332 = vpop.f32.mrf.mxu0
      %1333 = vmatprep.mubr.bf16.mxu0 0
      %1334 = vmatmul.mubr.bf16.gmra.mxu0 %v744
      %v1335 = vpop.f32.mrf.mxu0
      %v1336 = vadd.f32 %v1175, %v1335
      %v1337 = vpop.f32.mrf.mxu0
      %v1338 = vpop.f32.mrf.mxu0
      %v1339 = vadd.f32 %v1178, %v1338
      %v1340 = vpop.f32.mrf.mxu0
      %1341 = vmatprep.mubr.bf16.mxu0 0
      %1342 = vmatmul.mubr.bf16.gmra.mxu0 %v833
      %v1343 = vpop.f32.mrf.mxu0
      %v1344 = vadd.f32 %v1183, %v1343
      %v1345 = vpop.f32.mrf.mxu0
      %v1346 = vpop.f32.mrf.mxu0
      %v1347 = vadd.f32 %v1186, %v1346
      %v1348 = vpop.f32.mrf.mxu0
      %1349 = vdwg.mxu0
      %v1398 = vunpack.c.l.b16 %v761
      %v1399 = vunpack.c.l.b16 %v762
      %v1400 = vunpack.c.l.b16 %v763
      %v1401 = vunpack.c.l.b16 %v764
      %v1402 = vunpack.c.l.b16 %v765
      %v1403 = vunpack.c.l.b16 %v766
      %v1404 = vunpack.c.l.b16 %v767
      %v1405 = vunpack.c.l.b16 %v768
      %v1406 = vunpack.c.l.b16 %v769
      %v1407 = vunpack.c.l.b16 %v770
      %v1408 = vunpack.c.l.b16 %v771
      %v1409 = vunpack.c.l.b16 %v772
      %v1410 = vunpack.c.l.b16 %v773
      %v1411 = vunpack.c.l.b16 %v774
      %v1412 = vunpack.c.l.b16 %v775
      %v1413 = vunpack.c.l.b16 %v776
      %v1414 = vunpack.c.l.b16 %v777
      %v1415 = vunpack.c.l.b16 %v778
      %v1416 = vunpack.c.l.b16 %v779
      %v1417 = vunpack.c.l.b16 %v780
      %v1418 = vunpack.c.l.b16 %v781
      %v1419 = vunpack.c.l.b16 %v782
      %v1420 = vunpack.c.l.b16 %v783
      %v1421 = vunpack.c.l.b16 %v784
      %v1422 = vunpack.c.l.b16 %v785
      %v1423 = vunpack.c.l.b16 %v786
      %v1424 = vunpack.c.l.b16 %v787
      %v1425 = vunpack.c.l.b16 %v788
      %v1426 = vunpack.c.l.b16 %v789
      %v1427 = vunpack.c.l.b16 %v790
      %v1428 = vunpack.c.l.b16 %v791
      %v1429 = vunpack.c.l.b16 %v792
      %v1430 = vunpack.c.l.b16 %v793
      %v1431 = vunpack.c.l.b16 %v794
      %v1432 = vunpack.c.l.b16 %v795
      %v1433 = vunpack.c.l.b16 %v796
      %v1434 = vunpack.c.l.b16 %v797
      %v1435 = vunpack.c.l.b16 %v798
      %v1436 = vunpack.c.l.b16 %v799
      %v1437 = vunpack.c.l.b16 %v800
      %v1438 = vunpack.c.l.b16 %v801
      %v1439 = vunpack.c.l.b16 %v802
      %v1440 = vunpack.c.l.b16 %v803
      %v1441 = vunpack.c.l.b16 %v804
      %v1442 = vunpack.c.l.b16 %v805
      %v1443 = vunpack.c.l.b16 %v806
      %v1444 = vunpack.c.l.b16 %v807
      %v1445 = vunpack.c.l.b16 %v808
      %v1446 = vpack.c.b16 %v1399, %v1398
      %v1447 = vpack.c.b16 %v1401, %v1400
      %v1448 = vpack.c.b16 %v1403, %v1402
      %v1449 = vpack.c.b16 %v1405, %v1404
      %v1450 = vpack.c.b16 %v1407, %v1406
      %v1451 = vpack.c.b16 %v1409, %v1408
      %v1452 = vpack.c.b16 %v1411, %v1410
      %v1453 = vpack.c.b16 %v1413, %v1412
      %v1454 = vpack.c.b16 %v1415, %v1414
      %v1455 = vpack.c.b16 %v1417, %v1416
      %v1456 = vpack.c.b16 %v1419, %v1418
      %v1457 = vpack.c.b16 %v1421, %v1420
      %v1458 = vpack.c.b16 %v1423, %v1422
      %v1459 = vpack.c.b16 %v1425, %v1424
      %v1460 = vpack.c.b16 %v1427, %v1426
      %v1461 = vpack.c.b16 %v1429, %v1428
      %v1462 = vpack.c.b16 %v1431, %v1430
      %v1463 = vpack.c.b16 %v1433, %v1432
      %v1464 = vpack.c.b16 %v1435, %v1434
      %v1465 = vpack.c.b16 %v1437, %v1436
      %v1466 = vpack.c.b16 %v1439, %v1438
      %v1467 = vpack.c.b16 %v1441, %v1440
      %v1468 = vpack.c.b16 %v1443, %v1442
      %v1469 = vpack.c.b16 %v1445, %v1444
      %1494 = vmatprep.subr.bf16.mxu0 0
      %1495 = vmatpush1.bf16.msra.mxu0 %v1453
      %1496 = vmatprep.subr.bf16.mxu0 0
      %1497 = vmatpush1.bf16.msra.mxu0 %v1452
      %1498 = vmatprep.subr.bf16.mxu0 0
      %1499 = vmatpush1.bf16.msra.mxu0 %v1451
      %1500 = vmatprep.subr.bf16.mxu0 0
      %1501 = vmatpush1.bf16.msra.mxu0 %v1450
      %1502 = vmatprep.subr.bf16.mxu0 0
      %1503 = vmatpush1.bf16.msra.mxu0 %v1449
      %1504 = vmatprep.subr.bf16.mxu0 0
      %1505 = vmatpush1.bf16.msra.mxu0 %v1448
      %1506 = vmatprep.subr.bf16.mxu0 0
      %1507 = vmatpush1.bf16.msra.mxu0 %v1447
      %1508 = vmatprep.subr.bf16.mxu0 0
      %1509 = vmatpush1.bf16.msra.mxu0 %v1446
      %1510 = vmatprep.subr.bf16.mxu0 0
      %1511 = vmatpush2.bf16.msra.mxu0 %v1461
      %1512 = vmatprep.subr.bf16.mxu0 0
      %1513 = vmatpush2.bf16.msra.mxu0 %v1460
      %1514 = vmatprep.subr.bf16.mxu0 0
      %1515 = vmatpush2.bf16.msra.mxu0 %v1459
      %1516 = vmatprep.subr.bf16.mxu0 0
      %1517 = vmatpush2.bf16.msra.mxu0 %v1458
      %1518 = vmatprep.subr.bf16.mxu0 0
      %1519 = vmatpush2.bf16.msra.mxu0 %v1457
      %1520 = vmatprep.subr.bf16.mxu0 0
      %1521 = vmatpush2.bf16.msra.mxu0 %v1456
      %1522 = vmatprep.subr.bf16.mxu0 0
      %1523 = vmatpush2.bf16.msra.mxu0 %v1455
      %1524 = vmatprep.subr.bf16.mxu0 0
      %1525 = vmatpush2.bf16.msra.mxu0 %v1454
      %1526 = vmatprep.mubr.bf16.mxu0 %v499
      %1527 = vmatmul.mubr.bf16.gmra.mxu0 %v407
      %v1528 = vpop.f32.mrf.mxu0
      %v1529 = vadd.f32 %v1224, %v1528
      %v1530 = vpop.f32.mrf.mxu0
      %v1531 = vpop.f32.mrf.mxu0
      %v1532 = vadd.f32 %v1227, %v1531
      %v1533 = vpop.f32.mrf.mxu0
      %1534 = vmatprep.mubr.bf16.mxu0 %v511
      %1535 = vmatmul.mubr.bf16.gmra.mxu0 %v408
      %v1536 = vpop.f32.mrf.mxu0
      %v1537 = vadd.f32 %v1232, %v1536
      %v1538 = vpop.f32.mrf.mxu0
      %v1539 = vpop.f32.mrf.mxu0
      %v1540 = vadd.f32 %v1235, %v1539
      %v1541 = vpop.f32.mrf.mxu0
      %1542 = vmatprep.mubr.bf16.mxu0 %v523
      %1543 = vmatmul.mubr.bf16.gmra.mxu0 %v409
      %v1544 = vpop.f32.mrf.mxu0
      %v1545 = vadd.f32 %v1240, %v1544
      %v1546 = vpop.f32.mrf.mxu0
      %v1547 = vpop.f32.mrf.mxu0
      %v1548 = vadd.f32 %v1243, %v1547
      %v1549 = vpop.f32.mrf.mxu0
      %1550 = vmatprep.mubr.bf16.mxu0 %v535
      %1551 = vmatmul.mubr.bf16.gmra.mxu0 %v410
      %v1552 = vpop.f32.mrf.mxu0
      %v1553 = vadd.f32 %v1248, %v1552
      %v1554 = vpop.f32.mrf.mxu0
      %v1555 = vpop.f32.mrf.mxu0
      %v1556 = vadd.f32 %v1251, %v1555
      %v1557 = vpop.f32.mrf.mxu0
      %1558 = vmatprep.mubr.bf16.mxu0 %v547
      %1559 = vmatmul.mubr.bf16.gmra.mxu0 %v411
      %v1560 = vpop.f32.mrf.mxu0
      %v1561 = vadd.f32 %v1256, %v1560
      %v1562 = vpop.f32.mrf.mxu0
      %v1563 = vpop.f32.mrf.mxu0
      %v1564 = vadd.f32 %v1259, %v1563
      %v1565 = vpop.f32.mrf.mxu0
      %1566 = vmatprep.mubr.bf16.mxu0 %v559
      %1567 = vmatmul.mubr.bf16.gmra.mxu0 %v412
      %v1568 = vpop.f32.mrf.mxu0
      %v1569 = vadd.f32 %v1264, %v1568
      %v1570 = vpop.f32.mrf.mxu0
      %v1571 = vpop.f32.mrf.mxu0
      %v1572 = vadd.f32 %v1267, %v1571
      %v1573 = vpop.f32.mrf.mxu0
      %1574 = vmatprep.mubr.bf16.mxu0 %v571
      %1575 = vmatmul.mubr.bf16.gmra.mxu0 %v413
      %v1576 = vpop.f32.mrf.mxu0
      %v1577 = vadd.f32 %v1272, %v1576
      %v1578 = vpop.f32.mrf.mxu0
      %v1579 = vpop.f32.mrf.mxu0
      %v1580 = vadd.f32 %v1275, %v1579
      %v1581 = vpop.f32.mrf.mxu0
      %1582 = vmatprep.mubr.bf16.mxu0 %v583
      %1583 = vmatmul.mubr.bf16.gmra.mxu0 %v414
      %v1584 = vpop.f32.mrf.mxu0
      %v1585 = vadd.f32 %v1280, %v1584
      %v1586 = vpop.f32.mrf.mxu0
      %v1587 = vpop.f32.mrf.mxu0
      %v1588 = vadd.f32 %v1283, %v1587
      %v1589 = vpop.f32.mrf.mxu0
      %1590 = vmatprep.mubr.bf16.mxu0 %v595
      %1591 = vmatmul.mubr.bf16.gmra.mxu0 %v415
      %v1592 = vpop.f32.mrf.mxu0
      %v1593 = vadd.f32 %v1288, %v1592
      %v1594 = vpop.f32.mrf.mxu0
      %v1595 = vpop.f32.mrf.mxu0
      %v1596 = vadd.f32 %v1291, %v1595
      %v1597 = vpop.f32.mrf.mxu0
      %1598 = vmatprep.mubr.bf16.mxu0 %v607
      %1599 = vmatmul.mubr.bf16.gmra.mxu0 %v416
      %v1600 = vpop.f32.mrf.mxu0
      %v1601 = vadd.f32 %v1296, %v1600
      %v1602 = vpop.f32.mrf.mxu0
      %v1603 = vpop.f32.mrf.mxu0
      %v1604 = vadd.f32 %v1299, %v1603
      %v1605 = vpop.f32.mrf.mxu0
      %1606 = vmatprep.mubr.bf16.mxu0 %v619
      %1607 = vmatmul.mubr.bf16.gmra.mxu0 %v417
      %v1608 = vpop.f32.mrf.mxu0
      %v1609 = vadd.f32 %v1304, %v1608
      %v1610 = vpop.f32.mrf.mxu0
      %v1611 = vpop.f32.mrf.mxu0
      %v1612 = vadd.f32 %v1307, %v1611
      %v1613 = vpop.f32.mrf.mxu0
      %1614 = vmatprep.mubr.bf16.mxu0 %v631
      %1615 = vmatmul.mubr.bf16.gmra.mxu0 %v418
      %v1616 = vpop.f32.mrf.mxu0
      %v1617 = vadd.f32 %v1312, %v1616
      %v1618 = vpop.f32.mrf.mxu0
      %v1619 = vpop.f32.mrf.mxu0
      %v1620 = vadd.f32 %v1315, %v1619
      %v1621 = vpop.f32.mrf.mxu0
      %1622 = vmatprep.mubr.bf16.mxu0 %v643
      %1623 = vmatmul.mubr.bf16.gmra.mxu0 %v419
      %v1624 = vpop.f32.mrf.mxu0
      %v1625 = vadd.f32 %v1320, %v1624
      %v1626 = vpop.f32.mrf.mxu0
      %v1627 = vpop.f32.mrf.mxu0
      %v1628 = vadd.f32 %v1323, %v1627
      %v1629 = vpop.f32.mrf.mxu0
      %1630 = vmatprep.mubr.bf16.mxu0 %v655
      %1631 = vmatmul.mubr.bf16.gmra.mxu0 %v420
      %v1632 = vpop.f32.mrf.mxu0
      %v1633 = vadd.f32 %v1328, %v1632
      %v1634 = vpop.f32.mrf.mxu0
      %v1635 = vpop.f32.mrf.mxu0
      %v1636 = vadd.f32 %v1331, %v1635
      %v1637 = vpop.f32.mrf.mxu0
      %1638 = vmatprep.mubr.bf16.mxu0 %v667
      %1639 = vmatmul.mubr.bf16.gmra.mxu0 %v421
      %v1640 = vpop.f32.mrf.mxu0
      %v1641 = vadd.f32 %v1336, %v1640
      %v1642 = vpop.f32.mrf.mxu0
      %v1643 = vpop.f32.mrf.mxu0
      %v1644 = vadd.f32 %v1339, %v1643
      %v1645 = vpop.f32.mrf.mxu0
      %1646 = vmatprep.mubr.bf16.mxu0 %v679
      %1647 = vmatmul.mubr.bf16.gmra.mxu0 %v422
      %v1648 = vpop.f32.mrf.mxu0
      %v1649 = vadd.f32 %v1344, %v1648
      %v1650 = vpop.f32.mrf.mxu0
      %v1651 = vpop.f32.mrf.mxu0
      %v1652 = vadd.f32 %v1347, %v1651
      %v1653 = vpop.f32.mrf.mxu0
      %1654 = vdwg.mxu0
      %1655 = vmatprep.subr.bf16.mxu0 0
      %1656 = vmatpush1.bf16.msra.mxu0 %v1469
      %1657 = vmatprep.subr.bf16.mxu0 0
      %1658 = vmatpush1.bf16.msra.mxu0 %v1468
      %1659 = vmatprep.subr.bf16.mxu0 0
      %1660 = vmatpush1.bf16.msra.mxu0 %v1467
      %1661 = vmatprep.subr.bf16.mxu0 0
      %1662 = vmatpush1.bf16.msra.mxu0 %v1466
      %1663 = vmatprep.subr.bf16.mxu0 0
      %1664 = vmatpush1.bf16.msra.mxu0 %v1465
      %1665 = vmatprep.subr.bf16.mxu0 0
      %1666 = vmatpush1.bf16.msra.mxu0 %v1464
      %1667 = vmatprep.subr.bf16.mxu0 0
      %1668 = vmatpush1.bf16.msra.mxu0 %v1463
      %1669 = vmatprep.subr.bf16.mxu0 0
      %1670 = vmatpush1.bf16.msra.mxu0 %v1462
      %1671 = vmatprep.subr.bf16.mxu0 0
      %1672 = vmatpush2.bf16.msra.mxu0 0
      %1673 = vmatprep.subr.bf16.mxu0 0
      %1674 = vmatpush2.bf16.msra.mxu0 0
      %1675 = vmatprep.subr.bf16.mxu0 0
      %1676 = vmatpush2.bf16.msra.mxu0 0
      %1677 = vmatprep.subr.bf16.mxu0 0
      %1678 = vmatpush2.bf16.msra.mxu0 0
      %1679 = vmatprep.subr.bf16.mxu0 0
      %1680 = vmatpush2.bf16.msra.mxu0 0
      %1681 = vmatprep.subr.bf16.mxu0 0
      %1682 = vmatpush2.bf16.msra.mxu0 0
      %1683 = vmatprep.subr.bf16.mxu0 0
      %1684 = vmatpush2.bf16.msra.mxu0 0
      %1685 = vmatprep.subr.bf16.mxu0 0
      %1686 = vmatpush2.bf16.msra.mxu0 0
      %1687 = vmatprep.mubr.bf16.mxu0 0
      %1688 = vmatmul.mubr.bf16.gmra.mxu0 %v699
      %v1689 = vpop.f32.mrf.mxu0
      %v1690 = vadd.f32 %v1529, %v1689
      %v1691 = vpop.f32.mrf.mxu0
      %v1692 = vpop.f32.mrf.mxu0
      %v1693 = vadd.f32 %v1532, %v1692
      %v1694 = vpop.f32.mrf.mxu0
      %1695 = vmatprep.mubr.bf16.mxu0 0
      %1696 = vmatmul.mubr.bf16.gmra.mxu0 %v702
      %v1697 = vpop.f32.mrf.mxu0
      %v1698 = vadd.f32 %v1537, %v1697
      %v1699 = vpop.f32.mrf.mxu0
      %v1700 = vpop.f32.mrf.mxu0
      %v1701 = vadd.f32 %v1540, %v1700
      %v1702 = vpop.f32.mrf.mxu0
      %1703 = vmatprep.mubr.bf16.mxu0 0
      %1704 = vmatmul.mubr.bf16.gmra.mxu0 %v705
      %v1705 = vpop.f32.mrf.mxu0
      %v1706 = vadd.f32 %v1545, %v1705
      %v1707 = vpop.f32.mrf.mxu0
      %v1708 = vpop.f32.mrf.mxu0
      %v1709 = vadd.f32 %v1548, %v1708
      %v1710 = vpop.f32.mrf.mxu0
      %1711 = vmatprep.mubr.bf16.mxu0 0
      %1712 = vmatmul.mubr.bf16.gmra.mxu0 %v708
      %v1713 = vpop.f32.mrf.mxu0
      %v1714 = vadd.f32 %v1553, %v1713
      %v1715 = vpop.f32.mrf.mxu0
      %v1716 = vpop.f32.mrf.mxu0
      %v1717 = vadd.f32 %v1556, %v1716
      %v1718 = vpop.f32.mrf.mxu0
      %1719 = vmatprep.mubr.bf16.mxu0 0
      %1720 = vmatmul.mubr.bf16.gmra.mxu0 %v711
      %v1721 = vpop.f32.mrf.mxu0
      %v1722 = vadd.f32 %v1561, %v1721
      %v1723 = vpop.f32.mrf.mxu0
      %v1724 = vpop.f32.mrf.mxu0
      %v1725 = vadd.f32 %v1564, %v1724
      %v1726 = vpop.f32.mrf.mxu0
      %1727 = vmatprep.mubr.bf16.mxu0 0
      %1728 = vmatmul.mubr.bf16.gmra.mxu0 %v714
      %v1729 = vpop.f32.mrf.mxu0
      %v1730 = vadd.f32 %v1569, %v1729
      %v1731 = vpop.f32.mrf.mxu0
      %v1732 = vpop.f32.mrf.mxu0
      %v1733 = vadd.f32 %v1572, %v1732
      %v1734 = vpop.f32.mrf.mxu0
      %1735 = vmatprep.mubr.bf16.mxu0 0
      %1736 = vmatmul.mubr.bf16.gmra.mxu0 %v717
      %v1737 = vpop.f32.mrf.mxu0
      %v1738 = vadd.f32 %v1577, %v1737
      %v1739 = vpop.f32.mrf.mxu0
      %v1740 = vpop.f32.mrf.mxu0
      %v1741 = vadd.f32 %v1580, %v1740
      %v1742 = vpop.f32.mrf.mxu0
      %1743 = vmatprep.mubr.bf16.mxu0 0
      %1744 = vmatmul.mubr.bf16.gmra.mxu0 %v720
      %v1745 = vpop.f32.mrf.mxu0
      %v1746 = vadd.f32 %v1585, %v1745
      %v1747 = vpop.f32.mrf.mxu0
      %v1748 = vpop.f32.mrf.mxu0
      %v1749 = vadd.f32 %v1588, %v1748
      %v1750 = vpop.f32.mrf.mxu0
      %1751 = vmatprep.mubr.bf16.mxu0 0
      %1752 = vmatmul.mubr.bf16.gmra.mxu0 %v723
      %v1753 = vpop.f32.mrf.mxu0
      %v1754 = vadd.f32 %v1593, %v1753
      %v1755 = vpop.f32.mrf.mxu0
      %v1756 = vpop.f32.mrf.mxu0
      %v1757 = vadd.f32 %v1596, %v1756
      %v1758 = vpop.f32.mrf.mxu0
      %1759 = vmatprep.mubr.bf16.mxu0 0
      %1760 = vmatmul.mubr.bf16.gmra.mxu0 %v726
      %v1761 = vpop.f32.mrf.mxu0
      %v1762 = vadd.f32 %v1601, %v1761
      %v1763 = vpop.f32.mrf.mxu0
      %v1764 = vpop.f32.mrf.mxu0
      %v1765 = vadd.f32 %v1604, %v1764
      %v1766 = vpop.f32.mrf.mxu0
      %1767 = vmatprep.mubr.bf16.mxu0 0
      %1768 = vmatmul.mubr.bf16.gmra.mxu0 %v729
      %v1769 = vpop.f32.mrf.mxu0
      %v1770 = vadd.f32 %v1609, %v1769
      %v1771 = vpop.f32.mrf.mxu0
      %v1772 = vpop.f32.mrf.mxu0
      %v1773 = vadd.f32 %v1612, %v1772
      %v1774 = vpop.f32.mrf.mxu0
      %1775 = vmatprep.mubr.bf16.mxu0 0
      %1776 = vmatmul.mubr.bf16.gmra.mxu0 %v732
      %v1777 = vpop.f32.mrf.mxu0
      %v1778 = vadd.f32 %v1617, %v1777
      %v1779 = vpop.f32.mrf.mxu0
      %v1780 = vpop.f32.mrf.mxu0
      %v1781 = vadd.f32 %v1620, %v1780
      %v1782 = vpop.f32.mrf.mxu0
      %1783 = vmatprep.mubr.bf16.mxu0 0
      %1784 = vmatmul.mubr.bf16.gmra.mxu0 %v735
      %v1785 = vpop.f32.mrf.mxu0
      %v1786 = vadd.f32 %v1625, %v1785
      %v1787 = vpop.f32.mrf.mxu0
      %v1788 = vpop.f32.mrf.mxu0
      %v1789 = vadd.f32 %v1628, %v1788
      %v1790 = vpop.f32.mrf.mxu0
      %1791 = vmatprep.mubr.bf16.mxu0 0
      %1792 = vmatmul.mubr.bf16.gmra.mxu0 %v738
      %v1793 = vpop.f32.mrf.mxu0
      %v1794 = vadd.f32 %v1633, %v1793
      %v1795 = vpop.f32.mrf.mxu0
      %v1796 = vpop.f32.mrf.mxu0
      %v1797 = vadd.f32 %v1636, %v1796
      %v1798 = vpop.f32.mrf.mxu0
      %1799 = vmatprep.mubr.bf16.mxu0 0
      %1800 = vmatmul.mubr.bf16.gmra.mxu0 %v741
      %v1801 = vpop.f32.mrf.mxu0
      %v1802 = vadd.f32 %v1641, %v1801
      %v1803 = vpop.f32.mrf.mxu0
      %v1804 = vpop.f32.mrf.mxu0
      %v1805 = vadd.f32 %v1644, %v1804
      %v1806 = vpop.f32.mrf.mxu0
      %1807 = vmatprep.mubr.bf16.mxu0 0
      %1808 = vmatmul.mubr.bf16.gmra.mxu0 %v744
      %v1809 = vpop.f32.mrf.mxu0
      %v1810 = vadd.f32 %v1649, %v1809
      %v1811 = vpop.f32.mrf.mxu0
      %v1812 = vpop.f32.mrf.mxu0
      %v1813 = vadd.f32 %v1652, %v1812
      %v1814 = vpop.f32.mrf.mxu0
      %1815 = vdwg.mxu0
      %v1818 = vunpack.c.l.b16 %v340
      %v1819 = vunpack.c.l.b16 %v341
      %v1820 = vpack.c.b16 %v1819, %v1818
      %v1823 = vunpack.c.l.b16 %v342
      %v1824 = vpack.c.b16 %v1823, %v1823
      %v1826 = vshrl.u32 %v1820, 16
      %v1828 = vshll.u32 %v1820, 16
      %v1830 = vrot.slane %v1828, 1
      %v1831 = vor.u32 %v1826, %v1830
      %v1833 = vshll.u32 %v1824, 16
      %v1835 = vrot.slane %v1833, 1
      %v1836 = vsel %vm487, %v1831, %v1835
      %v1838 = vrot.slane %v1820, 1
      %v1839 = vrot.slane %v1824, 1
      %v1840 = vsel %vm696, %v1838, %v1839
      %s1842 = scalar_lea.vmem %s1, 384
      %v1843 = vld [vmem:[%s1842] sm:$0xf]
      %v1844 = vld [vmem:[%s1842 + $0x4] sm:$0xf]
      %v1845 = vld [vmem:[%s1842 + $0x8] sm:$0xf]
      %v1846 = vld [vmem:[%s1842 + $0xc] sm:$0xf]
      %v1847 = vld [vmem:[%s1842 + $0x10] sm:$0xf]
      %v1848 = vld [vmem:[%s1842 + $0x14] sm:$0xf]
      %v1849 = vld [vmem:[%s1842 + $0x18] sm:$0xf]
      %v1850 = vld [vmem:[%s1842 + $0x1c] sm:$0xf]
      %v1851 = vld [vmem:[%s1842 + $0x20] sm:$0xf]
      %v1852 = vld [vmem:[%s1842 + $0x24] sm:$0xf]
      %v1853 = vld [vmem:[%s1842 + $0x28] sm:$0xf]
      %v1854 = vld [vmem:[%s1842 + $0x2c] sm:$0xf]
      %v1855 = vld [vmem:[%s1842 + $0x30] sm:$0xf]
      %v1856 = vld [vmem:[%s1842 + $0x34] sm:$0xf]
      %v1857 = vld [vmem:[%s1842 + $0x38] sm:$0xf]
      %v1858 = vld [vmem:[%s1842 + $0x3c] sm:$0xf]
      %v1859 = vld [vmem:[%s1842 + $0x40] sm:$0xf]
      %v1860 = vld [vmem:[%s1842 + $0x44] sm:$0xf]
      %v1861 = vld [vmem:[%s1842 + $0x48] sm:$0xf]
      %v1862 = vld [vmem:[%s1842 + $0x4c] sm:$0xf]
      %v1863 = vld [vmem:[%s1842 + $0x50] sm:$0xf]
      %v1864 = vld [vmem:[%s1842 + $0x54] sm:$0xf]
      %v1865 = vld [vmem:[%s1842 + $0x58] sm:$0xf]
      %v1866 = vld [vmem:[%s1842 + $0x5c] sm:$0xf]
      %v1867 = vld [vmem:[%s1842 + $0x60] sm:$0xf]
      %v1868 = vld [vmem:[%s1842 + $0x64] sm:$0xf]
      %v1869 = vld [vmem:[%s1842 + $0x68] sm:$0xf]
      %v1870 = vld [vmem:[%s1842 + $0x6c] sm:$0xf]
      %v1871 = vld [vmem:[%s1842 + $0x70] sm:$0xf]
      %v1872 = vld [vmem:[%s1842 + $0x74] sm:$0xf]
      %v1873 = vld [vmem:[%s1842 + $0x78] sm:$0xf]
      %v1874 = vld [vmem:[%s1842 + $0x7c] sm:$0xf]
      %v1875 = vld [vmem:[%s1842 + $0x80] sm:$0xf]
      %v1876 = vld [vmem:[%s1842 + $0x84] sm:$0xf]
      %v1877 = vld [vmem:[%s1842 + $0x88] sm:$0xf]
      %v1878 = vld [vmem:[%s1842 + $0x8c] sm:$0xf]
      %v1879 = vld [vmem:[%s1842 + $0x90] sm:$0xf]
      %v1880 = vld [vmem:[%s1842 + $0x94] sm:$0xf]
      %v1881 = vld [vmem:[%s1842 + $0x98] sm:$0xf]
      %v1882 = vld [vmem:[%s1842 + $0x9c] sm:$0xf]
      %v1883 = vld [vmem:[%s1842 + $0xa0] sm:$0xf]
      %v1884 = vld [vmem:[%s1842 + $0xa4] sm:$0xf]
      %v1885 = vld [vmem:[%s1842 + $0xa8] sm:$0xf]
      %v1886 = vld [vmem:[%s1842 + $0xac] sm:$0xf]
      %v1887 = vld [vmem:[%s1842 + $0xb0] sm:$0xf]
      %v1888 = vld [vmem:[%s1842 + $0xb4] sm:$0xf]
      %v1889 = vld [vmem:[%s1842 + $0xb8] sm:$0xf]
      %v1890 = vld [vmem:[%s1842 + $0xbc] sm:$0xf]
      %v1939 = vunpack.c.l.b16 %v1843
      %v1940 = vunpack.c.l.b16 %v1844
      %v1941 = vunpack.c.l.b16 %v1845
      %v1942 = vunpack.c.l.b16 %v1846
      %v1943 = vunpack.c.l.b16 %v1847
      %v1944 = vunpack.c.l.b16 %v1848
      %v1945 = vunpack.c.l.b16 %v1849
      %v1946 = vunpack.c.l.b16 %v1850
      %v1947 = vunpack.c.l.b16 %v1851
      %v1948 = vunpack.c.l.b16 %v1852
      %v1949 = vunpack.c.l.b16 %v1853
      %v1950 = vunpack.c.l.b16 %v1854
      %v1951 = vunpack.c.l.b16 %v1855
      %v1952 = vunpack.c.l.b16 %v1856
      %v1953 = vunpack.c.l.b16 %v1857
      %v1954 = vunpack.c.l.b16 %v1858
      %v1955 = vunpack.c.l.b16 %v1859
      %v1956 = vunpack.c.l.b16 %v1860
      %v1957 = vunpack.c.l.b16 %v1861
      %v1958 = vunpack.c.l.b16 %v1862
      %v1959 = vunpack.c.l.b16 %v1863
      %v1960 = vunpack.c.l.b16 %v1864
      %v1961 = vunpack.c.l.b16 %v1865
      %v1962 = vunpack.c.l.b16 %v1866
      %v1963 = vunpack.c.l.b16 %v1867
      %v1964 = vunpack.c.l.b16 %v1868
      %v1965 = vunpack.c.l.b16 %v1869
      %v1966 = vunpack.c.l.b16 %v1870
      %v1967 = vunpack.c.l.b16 %v1871
      %v1968 = vunpack.c.l.b16 %v1872
      %v1969 = vunpack.c.l.b16 %v1873
      %v1970 = vunpack.c.l.b16 %v1874
      %v1971 = vunpack.c.l.b16 %v1875
      %v1972 = vunpack.c.l.b16 %v1876
      %v1973 = vunpack.c.l.b16 %v1877
      %v1974 = vunpack.c.l.b16 %v1878
      %v1975 = vunpack.c.l.b16 %v1879
      %v1976 = vunpack.c.l.b16 %v1880
      %v1977 = vunpack.c.l.b16 %v1881
      %v1978 = vunpack.c.l.b16 %v1882
      %v1979 = vunpack.c.l.b16 %v1883
      %v1980 = vunpack.c.l.b16 %v1884
      %v1981 = vunpack.c.l.b16 %v1885
      %v1982 = vunpack.c.l.b16 %v1886
      %v1983 = vunpack.c.l.b16 %v1887
      %v1984 = vunpack.c.l.b16 %v1888
      %v1985 = vunpack.c.l.b16 %v1889
      %v1986 = vunpack.c.l.b16 %v1890
      %v1987 = vpack.c.b16 %v1940, %v1939
      %v1988 = vpack.c.b16 %v1942, %v1941
      %v1989 = vpack.c.b16 %v1944, %v1943
      %v1990 = vpack.c.b16 %v1946, %v1945
      %v1991 = vpack.c.b16 %v1948, %v1947
      %v1992 = vpack.c.b16 %v1950, %v1949
      %v1993 = vpack.c.b16 %v1952, %v1951
      %v1994 = vpack.c.b16 %v1954, %v1953
      %v1995 = vpack.c.b16 %v1956, %v1955
      %v1996 = vpack.c.b16 %v1958, %v1957
      %v1997 = vpack.c.b16 %v1960, %v1959
      %v1998 = vpack.c.b16 %v1962, %v1961
      %v1999 = vpack.c.b16 %v1964, %v1963
      %v2000 = vpack.c.b16 %v1966, %v1965
      %v2001 = vpack.c.b16 %v1968, %v1967
      %v2002 = vpack.c.b16 %v1970, %v1969
      %v2003 = vpack.c.b16 %v1972, %v1971
      %v2004 = vpack.c.b16 %v1974, %v1973
      %v2005 = vpack.c.b16 %v1976, %v1975
      %v2006 = vpack.c.b16 %v1978, %v1977
      %v2007 = vpack.c.b16 %v1980, %v1979
      %v2008 = vpack.c.b16 %v1982, %v1981
      %v2009 = vpack.c.b16 %v1984, %v1983
      %v2010 = vpack.c.b16 %v1986, %v1985
      %2035 = vmatprep.subr.bf16.mxu0 0
      %2036 = vmatpush1.bf16.msra.mxu0 %v1994
      %2037 = vmatprep.subr.bf16.mxu0 0
      %2038 = vmatpush1.bf16.msra.mxu0 %v1993
      %2039 = vmatprep.subr.bf16.mxu0 0
      %2040 = vmatpush1.bf16.msra.mxu0 %v1992
      %2041 = vmatprep.subr.bf16.mxu0 0
      %2042 = vmatpush1.bf16.msra.mxu0 %v1991
      %2043 = vmatprep.subr.bf16.mxu0 0
      %2044 = vmatpush1.bf16.msra.mxu0 %v1990
      %2045 = vmatprep.subr.bf16.mxu0 0
      %2046 = vmatpush1.bf16.msra.mxu0 %v1989
      %2047 = vmatprep.subr.bf16.mxu0 0
      %2048 = vmatpush1.bf16.msra.mxu0 %v1988
      %2049 = vmatprep.subr.bf16.mxu0 0
      %2050 = vmatpush1.bf16.msra.mxu0 %v1987
      %2051 = vmatprep.subr.bf16.mxu0 0
      %2052 = vmatpush2.bf16.msra.mxu0 %v2002
      %2053 = vmatprep.subr.bf16.mxu0 0
      %2054 = vmatpush2.bf16.msra.mxu0 %v2001
      %2055 = vmatprep.subr.bf16.mxu0 0
      %2056 = vmatpush2.bf16.msra.mxu0 %v2000
      %2057 = vmatprep.subr.bf16.mxu0 0
      %2058 = vmatpush2.bf16.msra.mxu0 %v1999
      %2059 = vmatprep.subr.bf16.mxu0 0
      %2060 = vmatpush2.bf16.msra.mxu0 %v1998
      %2061 = vmatprep.subr.bf16.mxu0 0
      %2062 = vmatpush2.bf16.msra.mxu0 %v1997
      %2063 = vmatprep.subr.bf16.mxu0 0
      %2064 = vmatpush2.bf16.msra.mxu0 %v1996
      %2065 = vmatprep.subr.bf16.mxu0 0
      %2066 = vmatpush2.bf16.msra.mxu0 %v1995
      %2067 = vmatprep.mubr.bf16.mxu0 %v523
      %2068 = vmatmul.mubr.bf16.gmra.mxu0 %v409
      %v2069 = vpop.f32.mrf.mxu0
      %v2070 = vadd.f32 0.0, %v2069
      %v2071 = vpop.f32.mrf.mxu0
      %v2072 = vpop.f32.mrf.mxu0
      %v2073 = vadd.f32 0.0, %v2072
      %v2074 = vpop.f32.mrf.mxu0
      %2075 = vmatprep.mubr.bf16.mxu0 %v535
      %2076 = vmatmul.mubr.bf16.gmra.mxu0 %v410
      %v2077 = vpop.f32.mrf.mxu0
      %v2078 = vadd.f32 0.0, %v2077
      %v2079 = vpop.f32.mrf.mxu0
      %v2080 = vpop.f32.mrf.mxu0
      %v2081 = vadd.f32 0.0, %v2080
      %v2082 = vpop.f32.mrf.mxu0
      %2083 = vmatprep.mubr.bf16.mxu0 %v547
      %2084 = vmatmul.mubr.bf16.gmra.mxu0 %v411
      %v2085 = vpop.f32.mrf.mxu0
      %v2086 = vadd.f32 0.0, %v2085
      %v2087 = vpop.f32.mrf.mxu0
      %v2088 = vpop.f32.mrf.mxu0
      %v2089 = vadd.f32 0.0, %v2088
      %v2090 = vpop.f32.mrf.mxu0
      %2091 = vmatprep.mubr.bf16.mxu0 %v559
      %2092 = vmatmul.mubr.bf16.gmra.mxu0 %v412
      %v2093 = vpop.f32.mrf.mxu0
      %v2094 = vadd.f32 0.0, %v2093
      %v2095 = vpop.f32.mrf.mxu0
      %v2096 = vpop.f32.mrf.mxu0
      %v2097 = vadd.f32 0.0, %v2096
      %v2098 = vpop.f32.mrf.mxu0
      %2099 = vmatprep.mubr.bf16.mxu0 %v571
      %2100 = vmatmul.mubr.bf16.gmra.mxu0 %v413
      %v2101 = vpop.f32.mrf.mxu0
      %v2102 = vadd.f32 0.0, %v2101
      %v2103 = vpop.f32.mrf.mxu0
      %v2104 = vpop.f32.mrf.mxu0
      %v2105 = vadd.f32 0.0, %v2104
      %v2106 = vpop.f32.mrf.mxu0
      %2107 = vmatprep.mubr.bf16.mxu0 %v583
      %2108 = vmatmul.mubr.bf16.gmra.mxu0 %v414
      %v2109 = vpop.f32.mrf.mxu0
      %v2110 = vadd.f32 0.0, %v2109
      %v2111 = vpop.f32.mrf.mxu0
      %v2112 = vpop.f32.mrf.mxu0
      %v2113 = vadd.f32 0.0, %v2112
      %v2114 = vpop.f32.mrf.mxu0
      %2115 = vmatprep.mubr.bf16.mxu0 %v595
      %2116 = vmatmul.mubr.bf16.gmra.mxu0 %v415
      %v2117 = vpop.f32.mrf.mxu0
      %v2118 = vadd.f32 0.0, %v2117
      %v2119 = vpop.f32.mrf.mxu0
      %v2120 = vpop.f32.mrf.mxu0
      %v2121 = vadd.f32 0.0, %v2120
      %v2122 = vpop.f32.mrf.mxu0
      %2123 = vmatprep.mubr.bf16.mxu0 %v607
      %2124 = vmatmul.mubr.bf16.gmra.mxu0 %v416
      %v2125 = vpop.f32.mrf.mxu0
      %v2126 = vadd.f32 0.0, %v2125
      %v2127 = vpop.f32.mrf.mxu0
      %v2128 = vpop.f32.mrf.mxu0
      %v2129 = vadd.f32 0.0, %v2128
      %v2130 = vpop.f32.mrf.mxu0
      %2131 = vmatprep.mubr.bf16.mxu0 %v619
      %2132 = vmatmul.mubr.bf16.gmra.mxu0 %v417
      %v2133 = vpop.f32.mrf.mxu0
      %v2134 = vadd.f32 0.0, %v2133
      %v2135 = vpop.f32.mrf.mxu0
      %v2136 = vpop.f32.mrf.mxu0
      %v2137 = vadd.f32 0.0, %v2136
      %v2138 = vpop.f32.mrf.mxu0
      %2139 = vmatprep.mubr.bf16.mxu0 %v631
      %2140 = vmatmul.mubr.bf16.gmra.mxu0 %v418
      %v2141 = vpop.f32.mrf.mxu0
      %v2142 = vadd.f32 0.0, %v2141
      %v2143 = vpop.f32.mrf.mxu0
      %v2144 = vpop.f32.mrf.mxu0
      %v2145 = vadd.f32 0.0, %v2144
      %v2146 = vpop.f32.mrf.mxu0
      %2147 = vmatprep.mubr.bf16.mxu0 %v643
      %2148 = vmatmul.mubr.bf16.gmra.mxu0 %v419
      %v2149 = vpop.f32.mrf.mxu0
      %v2150 = vadd.f32 0.0, %v2149
      %v2151 = vpop.f32.mrf.mxu0
      %v2152 = vpop.f32.mrf.mxu0
      %v2153 = vadd.f32 0.0, %v2152
      %v2154 = vpop.f32.mrf.mxu0
      %2155 = vmatprep.mubr.bf16.mxu0 %v655
      %2156 = vmatmul.mubr.bf16.gmra.mxu0 %v420
      %v2157 = vpop.f32.mrf.mxu0
      %v2158 = vadd.f32 0.0, %v2157
      %v2159 = vpop.f32.mrf.mxu0
      %v2160 = vpop.f32.mrf.mxu0
      %v2161 = vadd.f32 0.0, %v2160
      %v2162 = vpop.f32.mrf.mxu0
      %2163 = vmatprep.mubr.bf16.mxu0 %v667
      %2164 = vmatmul.mubr.bf16.gmra.mxu0 %v421
      %v2165 = vpop.f32.mrf.mxu0
      %v2166 = vadd.f32 0.0, %v2165
      %v2167 = vpop.f32.mrf.mxu0
      %v2168 = vpop.f32.mrf.mxu0
      %v2169 = vadd.f32 0.0, %v2168
      %v2170 = vpop.f32.mrf.mxu0
      %2171 = vmatprep.mubr.bf16.mxu0 %v679
      %2172 = vmatmul.mubr.bf16.gmra.mxu0 %v422
      %v2173 = vpop.f32.mrf.mxu0
      %v2174 = vadd.f32 0.0, %v2173
      %v2175 = vpop.f32.mrf.mxu0
      %v2176 = vpop.f32.mrf.mxu0
      %v2177 = vadd.f32 0.0, %v2176
      %v2178 = vpop.f32.mrf.mxu0
      %2179 = vmatprep.mubr.bf16.mxu0 %v829
      %2180 = vmatmul.mubr.bf16.gmra.mxu0 %v813
      %v2181 = vpop.f32.mrf.mxu0
      %v2182 = vadd.f32 0.0, %v2181
      %v2183 = vpop.f32.mrf.mxu0
      %v2184 = vpop.f32.mrf.mxu0
      %v2185 = vadd.f32 0.0, %v2184
      %v2186 = vpop.f32.mrf.mxu0
      %2187 = vmatprep.mubr.bf16.mxu0 %v1836
      %2188 = vmatmul.mubr.bf16.gmra.mxu0 %v1820
      %v2189 = vpop.f32.mrf.mxu0
      %v2190 = vadd.f32 0.0, %v2189
      %v2191 = vpop.f32.mrf.mxu0
      %v2192 = vpop.f32.mrf.mxu0
      %v2193 = vadd.f32 0.0, %v2192
      %v2194 = vpop.f32.mrf.mxu0
      %2195 = vdwg.mxu0
      %2196 = vmatprep.subr.bf16.mxu0 0
      %2197 = vmatpush1.bf16.msra.mxu0 %v2010
      %2198 = vmatprep.subr.bf16.mxu0 0
      %2199 = vmatpush1.bf16.msra.mxu0 %v2009
      %2200 = vmatprep.subr.bf16.mxu0 0
      %2201 = vmatpush1.bf16.msra.mxu0 %v2008
      %2202 = vmatprep.subr.bf16.mxu0 0
      %2203 = vmatpush1.bf16.msra.mxu0 %v2007
      %2204 = vmatprep.subr.bf16.mxu0 0
      %2205 = vmatpush1.bf16.msra.mxu0 %v2006
      %2206 = vmatprep.subr.bf16.mxu0 0
      %2207 = vmatpush1.bf16.msra.mxu0 %v2005
      %2208 = vmatprep.subr.bf16.mxu0 0
      %2209 = vmatpush1.bf16.msra.mxu0 %v2004
      %2210 = vmatprep.subr.bf16.mxu0 0
      %2211 = vmatpush1.bf16.msra.mxu0 %v2003
      %2212 = vmatprep.subr.bf16.mxu0 0
      %2213 = vmatpush2.bf16.msra.mxu0 0
      %2214 = vmatprep.subr.bf16.mxu0 0
      %2215 = vmatpush2.bf16.msra.mxu0 0
      %2216 = vmatprep.subr.bf16.mxu0 0
      %2217 = vmatpush2.bf16.msra.mxu0 0
      %2218 = vmatprep.subr.bf16.mxu0 0
      %2219 = vmatpush2.bf16.msra.mxu0 0
      %2220 = vmatprep.subr.bf16.mxu0 0
      %2221 = vmatpush2.bf16.msra.mxu0 0
      %2222 = vmatprep.subr.bf16.mxu0 0
      %2223 = vmatpush2.bf16.msra.mxu0 0
      %2224 = vmatprep.subr.bf16.mxu0 0
      %2225 = vmatpush2.bf16.msra.mxu0 0
      %2226 = vmatprep.subr.bf16.mxu0 0
      %2227 = vmatpush2.bf16.msra.mxu0 0
      %2228 = vmatprep.mubr.bf16.mxu0 0
      %2229 = vmatmul.mubr.bf16.gmra.mxu0 %v705
      %v2230 = vpop.f32.mrf.mxu0
      %v2231 = vadd.f32 %v2070, %v2230
      %v2232 = vpop.f32.mrf.mxu0
      %v2233 = vpop.f32.mrf.mxu0
      %v2234 = vadd.f32 %v2073, %v2233
      %v2235 = vpop.f32.mrf.mxu0
      %2236 = vmatprep.mubr.bf16.mxu0 0
      %2237 = vmatmul.mubr.bf16.gmra.mxu0 %v708
      %v2238 = vpop.f32.mrf.mxu0
      %v2239 = vadd.f32 %v2078, %v2238
      %v2240 = vpop.f32.mrf.mxu0
      %v2241 = vpop.f32.mrf.mxu0
      %v2242 = vadd.f32 %v2081, %v2241
      %v2243 = vpop.f32.mrf.mxu0
      %2244 = vmatprep.mubr.bf16.mxu0 0
      %2245 = vmatmul.mubr.bf16.gmra.mxu0 %v711
      %v2246 = vpop.f32.mrf.mxu0
      %v2247 = vadd.f32 %v2086, %v2246
      %v2248 = vpop.f32.mrf.mxu0
      %v2249 = vpop.f32.mrf.mxu0
      %v2250 = vadd.f32 %v2089, %v2249
      %v2251 = vpop.f32.mrf.mxu0
      %2252 = vmatprep.mubr.bf16.mxu0 0
      %2253 = vmatmul.mubr.bf16.gmra.mxu0 %v714
      %v2254 = vpop.f32.mrf.mxu0
      %v2255 = vadd.f32 %v2094, %v2254
      %v2256 = vpop.f32.mrf.mxu0
      %v2257 = vpop.f32.mrf.mxu0
      %v2258 = vadd.f32 %v2097, %v2257
      %v2259 = vpop.f32.mrf.mxu0
      %2260 = vmatprep.mubr.bf16.mxu0 0
      %2261 = vmatmul.mubr.bf16.gmra.mxu0 %v717
      %v2262 = vpop.f32.mrf.mxu0
      %v2263 = vadd.f32 %v2102, %v2262
      %v2264 = vpop.f32.mrf.mxu0
      %v2265 = vpop.f32.mrf.mxu0
      %v2266 = vadd.f32 %v2105, %v2265
      %v2267 = vpop.f32.mrf.mxu0
      %2268 = vmatprep.mubr.bf16.mxu0 0
      %2269 = vmatmul.mubr.bf16.gmra.mxu0 %v720
      %v2270 = vpop.f32.mrf.mxu0
      %v2271 = vadd.f32 %v2110, %v2270
      %v2272 = vpop.f32.mrf.mxu0
      %v2273 = vpop.f32.mrf.mxu0
      %v2274 = vadd.f32 %v2113, %v2273
      %v2275 = vpop.f32.mrf.mxu0
      %2276 = vmatprep.mubr.bf16.mxu0 0
      %2277 = vmatmul.mubr.bf16.gmra.mxu0 %v723
      %v2278 = vpop.f32.mrf.mxu0
      %v2279 = vadd.f32 %v2118, %v2278
      %v2280 = vpop.f32.mrf.mxu0
      %v2281 = vpop.f32.mrf.mxu0
      %v2282 = vadd.f32 %v2121, %v2281
      %v2283 = vpop.f32.mrf.mxu0
      %2284 = vmatprep.mubr.bf16.mxu0 0
      %2285 = vmatmul.mubr.bf16.gmra.mxu0 %v726
      %v2286 = vpop.f32.mrf.mxu0
      %v2287 = vadd.f32 %v2126, %v2286
      %v2288 = vpop.f32.mrf.mxu0
      %v2289 = vpop.f32.mrf.mxu0
      %v2290 = vadd.f32 %v2129, %v2289
      %v2291 = vpop.f32.mrf.mxu0
      %2292 = vmatprep.mubr.bf16.mxu0 0
      %2293 = vmatmul.mubr.bf16.gmra.mxu0 %v729
      %v2294 = vpop.f32.mrf.mxu0
      %v2295 = vadd.f32 %v2134, %v2294
      %v2296 = vpop.f32.mrf.mxu0
      %v2297 = vpop.f32.mrf.mxu0
      %v2298 = vadd.f32 %v2137, %v2297
      %v2299 = vpop.f32.mrf.mxu0
      %2300 = vmatprep.mubr.bf16.mxu0 0
      %2301 = vmatmul.mubr.bf16.gmra.mxu0 %v732
      %v2302 = vpop.f32.mrf.mxu0
      %v2303 = vadd.f32 %v2142, %v2302
      %v2304 = vpop.f32.mrf.mxu0
      %v2305 = vpop.f32.mrf.mxu0
      %v2306 = vadd.f32 %v2145, %v2305
      %v2307 = vpop.f32.mrf.mxu0
      %2308 = vmatprep.mubr.bf16.mxu0 0
      %2309 = vmatmul.mubr.bf16.gmra.mxu0 %v735
      %v2310 = vpop.f32.mrf.mxu0
      %v2311 = vadd.f32 %v2150, %v2310
      %v2312 = vpop.f32.mrf.mxu0
      %v2313 = vpop.f32.mrf.mxu0
      %v2314 = vadd.f32 %v2153, %v2313
      %v2315 = vpop.f32.mrf.mxu0
      %2316 = vmatprep.mubr.bf16.mxu0 0
      %2317 = vmatmul.mubr.bf16.gmra.mxu0 %v738
      %v2318 = vpop.f32.mrf.mxu0
      %v2319 = vadd.f32 %v2158, %v2318
      %v2320 = vpop.f32.mrf.mxu0
      %v2321 = vpop.f32.mrf.mxu0
      %v2322 = vadd.f32 %v2161, %v2321
      %v2323 = vpop.f32.mrf.mxu0
      %2324 = vmatprep.mubr.bf16.mxu0 0
      %2325 = vmatmul.mubr.bf16.gmra.mxu0 %v741
      %v2326 = vpop.f32.mrf.mxu0
      %v2327 = vadd.f32 %v2166, %v2326
      %v2328 = vpop.f32.mrf.mxu0
      %v2329 = vpop.f32.mrf.mxu0
      %v2330 = vadd.f32 %v2169, %v2329
      %v2331 = vpop.f32.mrf.mxu0
      %2332 = vmatprep.mubr.bf16.mxu0 0
      %2333 = vmatmul.mubr.bf16.gmra.mxu0 %v744
      %v2334 = vpop.f32.mrf.mxu0
      %v2335 = vadd.f32 %v2174, %v2334
      %v2336 = vpop.f32.mrf.mxu0
      %v2337 = vpop.f32.mrf.mxu0
      %v2338 = vadd.f32 %v2177, %v2337
      %v2339 = vpop.f32.mrf.mxu0
      %2340 = vmatprep.mubr.bf16.mxu0 0
      %2341 = vmatmul.mubr.bf16.gmra.mxu0 %v833
      %v2342 = vpop.f32.mrf.mxu0
      %v2343 = vadd.f32 %v2182, %v2342
      %v2344 = vpop.f32.mrf.mxu0
      %v2345 = vpop.f32.mrf.mxu0
      %v2346 = vadd.f32 %v2185, %v2345
      %v2347 = vpop.f32.mrf.mxu0
      %2348 = vmatprep.mubr.bf16.mxu0 0
      %2349 = vmatmul.mubr.bf16.gmra.mxu0 %v1840
      %v2350 = vpop.f32.mrf.mxu0
      %v2351 = vadd.f32 %v2190, %v2350
      %v2352 = vpop.f32.mrf.mxu0
      %v2353 = vpop.f32.mrf.mxu0
      %v2354 = vadd.f32 %v2193, %v2353
      %v2355 = vpop.f32.mrf.mxu0
      %2356 = vdwg.mxu0
      %v2357 = vadd.f32 %v1690, %v2231
      %v2358 = vadd.f32 %v1693, %v2234
      %v2359 = vadd.f32 %v1698, %v2239
      %v2360 = vadd.f32 %v1701, %v2242
      %v2361 = vadd.f32 %v1706, %v2247
      %v2362 = vadd.f32 %v1709, %v2250
      %v2363 = vadd.f32 %v1714, %v2255
      %v2364 = vadd.f32 %v1717, %v2258
      %v2365 = vadd.f32 %v1722, %v2263
      %v2366 = vadd.f32 %v1725, %v2266
      %v2367 = vadd.f32 %v1730, %v2271
      %v2368 = vadd.f32 %v1733, %v2274
      %v2369 = vadd.f32 %v1738, %v2279
      %v2370 = vadd.f32 %v1741, %v2282
      %v2371 = vadd.f32 %v1746, %v2287
      %v2372 = vadd.f32 %v1749, %v2290
      %v2373 = vadd.f32 %v1754, %v2295
      %v2374 = vadd.f32 %v1757, %v2298
      %v2375 = vadd.f32 %v1762, %v2303
      %v2376 = vadd.f32 %v1765, %v2306
      %v2377 = vadd.f32 %v1770, %v2311
      %v2378 = vadd.f32 %v1773, %v2314
      %v2379 = vadd.f32 %v1778, %v2319
      %v2380 = vadd.f32 %v1781, %v2322
      %v2381 = vadd.f32 %v1786, %v2327
      %v2382 = vadd.f32 %v1789, %v2330
      %v2383 = vadd.f32 %v1794, %v2335
      %v2384 = vadd.f32 %v1797, %v2338
      %v2385 = vadd.f32 %v1802, %v2343
      %v2386 = vadd.f32 %v1805, %v2346
      %v2387 = vadd.f32 %v1810, %v2351
      %v2388 = vadd.f32 %v1813, %v2354
      %v2389 = vld [vmem:[%s2] sm:$0x1]
      %v2391 = vlaneseq
      %v2392 = vshrl.u32 %v2391, 7
      %v2393 = vsub.s32 0, %v2392
      %v2394 = vrot.slane %v2389, %v2393
      %v2396 = vmul.f32 %v2357, %v2394
      %v2397 = vmul.f32 %v2358, %v2394
      %v2398 = vmul.f32 %v2359, %v2394
      %v2399 = vmul.f32 %v2360, %v2394
      %v2400 = vmul.f32 %v2361, %v2394
      %v2401 = vmul.f32 %v2362, %v2394
      %v2402 = vmul.f32 %v2363, %v2394
      %v2403 = vmul.f32 %v2364, %v2394
      %v2404 = vmul.f32 %v2365, %v2394
      %v2405 = vmul.f32 %v2366, %v2394
      %v2406 = vmul.f32 %v2367, %v2394
      %v2407 = vmul.f32 %v2368, %v2394
      %v2408 = vmul.f32 %v2369, %v2394
      %v2409 = vmul.f32 %v2370, %v2394
      %v2410 = vmul.f32 %v2371, %v2394
      %v2411 = vmul.f32 %v2372, %v2394
      %v2412 = vmul.f32 %v2373, %v2394
      %v2413 = vmul.f32 %v2374, %v2394
      %v2414 = vmul.f32 %v2375, %v2394
      %v2415 = vmul.f32 %v2376, %v2394
      %v2416 = vmul.f32 %v2377, %v2394
      %v2417 = vmul.f32 %v2378, %v2394
      %v2418 = vmul.f32 %v2379, %v2394
      %v2419 = vmul.f32 %v2380, %v2394
      %v2420 = vmul.f32 %v2381, %v2394
      %v2421 = vmul.f32 %v2382, %v2394
      %v2422 = vmul.f32 %v2383, %v2394
      %v2423 = vmul.f32 %v2384, %v2394
      %v2424 = vmul.f32 %v2385, %v2394
      %v2425 = vmul.f32 %v2386, %v2394
      %v2426 = vmul.f32 %v2387, %v2394
      %v2427 = vmul.f32 %v2388, %v2394
      %v2428 = vld [vmem:[%s3] sm:$0x1]
      %v2430 = vlaneseq
      %v2431 = vshrl.u32 %v2430, 7
      %v2432 = vsub.s32 0, %v2431
      %v2433 = vrot.slane %v2428, %v2432
      %v2435 = vadd.f32 %v2396, %v2433
      %v2436 = vadd.f32 %v2397, %v2433
      %v2437 = vadd.f32 %v2398, %v2433
      %v2438 = vadd.f32 %v2399, %v2433
      %v2439 = vadd.f32 %v2400, %v2433
      %v2440 = vadd.f32 %v2401, %v2433
      %v2441 = vadd.f32 %v2402, %v2433
      %v2442 = vadd.f32 %v2403, %v2433
      %v2443 = vadd.f32 %v2404, %v2433
      %v2444 = vadd.f32 %v2405, %v2433
      %v2445 = vadd.f32 %v2406, %v2433
      %v2446 = vadd.f32 %v2407, %v2433
      %v2447 = vadd.f32 %v2408, %v2433
      %v2448 = vadd.f32 %v2409, %v2433
      %v2449 = vadd.f32 %v2410, %v2433
      %v2450 = vadd.f32 %v2411, %v2433
      %v2451 = vadd.f32 %v2412, %v2433
      %v2452 = vadd.f32 %v2413, %v2433
      %v2453 = vadd.f32 %v2414, %v2433
      %v2454 = vadd.f32 %v2415, %v2433
      %v2455 = vadd.f32 %v2416, %v2433
      %v2456 = vadd.f32 %v2417, %v2433
      %v2457 = vadd.f32 %v2418, %v2433
      %v2458 = vadd.f32 %v2419, %v2433
      %v2459 = vadd.f32 %v2420, %v2433
      %v2460 = vadd.f32 %v2421, %v2433
      %v2461 = vadd.f32 %v2422, %v2433
      %v2462 = vadd.f32 %v2423, %v2433
      %v2463 = vadd.f32 %v2424, %v2433
      %v2464 = vadd.f32 %v2425, %v2433
      %v2465 = vadd.f32 %v2426, %v2433
      %v2466 = vadd.f32 %v2427, %v2433
      %v2467 = vld [vmem:[%s272] sm:$0xf]
      %v2468 = vld [vmem:[%s272 + $0x4] sm:$0xf]
      %v2469 = vld [vmem:[%s272 + $0x8] sm:$0xf]
      %v2470 = vld [vmem:[%s272 + $0xc] sm:$0xf]
      %v2471 = vld [vmem:[%s272 + $0x10] sm:$0xf]
      %v2472 = vld [vmem:[%s272 + $0x14] sm:$0xf]
      %v2473 = vld [vmem:[%s272 + $0x18] sm:$0xf]
      %v2474 = vld [vmem:[%s272 + $0x1c] sm:$0xf]
      %v2475 = vld [vmem:[%s272 + $0x20] sm:$0xf]
      %v2476 = vld [vmem:[%s272 + $0x24] sm:$0xf]
      %v2477 = vld [vmem:[%s272 + $0x28] sm:$0xf]
      %v2478 = vld [vmem:[%s272 + $0x2c] sm:$0xf]
      %v2479 = vld [vmem:[%s272 + $0x30] sm:$0xf]
      %v2480 = vld [vmem:[%s272 + $0x34] sm:$0xf]
      %v2481 = vld [vmem:[%s272 + $0x38] sm:$0xf]
      %v2482 = vld [vmem:[%s272 + $0x3c] sm:$0xf]
      %v2483 = vld [vmem:[%s272 + $0x40] sm:$0xf]
      %v2484 = vld [vmem:[%s272 + $0x44] sm:$0xf]
      %v2485 = vld [vmem:[%s272 + $0x48] sm:$0xf]
      %v2486 = vld [vmem:[%s272 + $0x4c] sm:$0xf]
      %v2487 = vld [vmem:[%s272 + $0x50] sm:$0xf]
      %v2488 = vld [vmem:[%s272 + $0x54] sm:$0xf]
      %v2489 = vld [vmem:[%s272 + $0x58] sm:$0xf]
      %v2490 = vld [vmem:[%s272 + $0x5c] sm:$0xf]
      %v2491 = vld [vmem:[%s272 + $0x60] sm:$0xf]
      %v2492 = vld [vmem:[%s272 + $0x64] sm:$0xf]
      %v2493 = vld [vmem:[%s272 + $0x68] sm:$0xf]
      %v2494 = vld [vmem:[%s272 + $0x6c] sm:$0xf]
      %v2495 = vld [vmem:[%s272 + $0x70] sm:$0xf]
      %v2496 = vld [vmem:[%s272 + $0x74] sm:$0xf]
      %v2497 = vld [vmem:[%s272 + $0x78] sm:$0xf]
      %v2498 = vld [vmem:[%s272 + $0x7c] sm:$0xf]
      %v2499 = vunpack.c.l.bf16 %v2467
      %v2500 = vunpack.c.l.bf16 %v2468
      %v2501 = vunpack.c.l.bf16 %v2469
      %v2502 = vunpack.c.l.bf16 %v2470
      %v2503 = vunpack.c.l.bf16 %v2471
      %v2504 = vunpack.c.l.bf16 %v2472
      %v2505 = vunpack.c.l.bf16 %v2473
      %v2506 = vunpack.c.l.bf16 %v2474
      %v2507 = vunpack.c.l.bf16 %v2475
      %v2508 = vunpack.c.l.bf16 %v2476
      %v2509 = vunpack.c.l.bf16 %v2477
      %v2510 = vunpack.c.l.bf16 %v2478
      %v2511 = vunpack.c.l.bf16 %v2479
      %v2512 = vunpack.c.l.bf16 %v2480
      %v2513 = vunpack.c.l.bf16 %v2481
      %v2514 = vunpack.c.l.bf16 %v2482
      %v2515 = vunpack.c.l.bf16 %v2483
      %v2516 = vunpack.c.l.bf16 %v2484
      %v2517 = vunpack.c.l.bf16 %v2485
      %v2518 = vunpack.c.l.bf16 %v2486
      %v2519 = vunpack.c.l.bf16 %v2487
      %v2520 = vunpack.c.l.bf16 %v2488
      %v2521 = vunpack.c.l.bf16 %v2489
      %v2522 = vunpack.c.l.bf16 %v2490
      %v2523 = vunpack.c.l.bf16 %v2491
      %v2524 = vunpack.c.l.bf16 %v2492
      %v2525 = vunpack.c.l.bf16 %v2493
      %v2526 = vunpack.c.l.bf16 %v2494
      %v2527 = vunpack.c.l.bf16 %v2495
      %v2528 = vunpack.c.l.bf16 %v2496
      %v2529 = vunpack.c.l.bf16 %v2497
      %v2530 = vunpack.c.l.bf16 %v2498
      %v2531 = vadd.f32 %v2435, %v2499
      %v2532 = vadd.f32 %v2436, %v2500
      %v2533 = vadd.f32 %v2437, %v2501
      %v2534 = vadd.f32 %v2438, %v2502
      %v2535 = vadd.f32 %v2439, %v2503
      %v2536 = vadd.f32 %v2440, %v2504
      %v2537 = vadd.f32 %v2441, %v2505
      %v2538 = vadd.f32 %v2442, %v2506
      %v2539 = vadd.f32 %v2443, %v2507
      %v2540 = vadd.f32 %v2444, %v2508
      %v2541 = vadd.f32 %v2445, %v2509
      %v2542 = vadd.f32 %v2446, %v2510
      %v2543 = vadd.f32 %v2447, %v2511
      %v2544 = vadd.f32 %v2448, %v2512
      %v2545 = vadd.f32 %v2449, %v2513
      %v2546 = vadd.f32 %v2450, %v2514
      %v2547 = vadd.f32 %v2451, %v2515
      %v2548 = vadd.f32 %v2452, %v2516
      %v2549 = vadd.f32 %v2453, %v2517
      %v2550 = vadd.f32 %v2454, %v2518
      %v2551 = vadd.f32 %v2455, %v2519
      %v2552 = vadd.f32 %v2456, %v2520
      %v2553 = vadd.f32 %v2457, %v2521
      %v2554 = vadd.f32 %v2458, %v2522
      %v2555 = vadd.f32 %v2459, %v2523
      %v2556 = vadd.f32 %v2460, %v2524
      %v2557 = vadd.f32 %v2461, %v2525
      %v2558 = vadd.f32 %v2462, %v2526
      %v2559 = vadd.f32 %v2463, %v2527
      %v2560 = vadd.f32 %v2464, %v2528
      %v2561 = vadd.f32 %v2465, %v2529
      %v2562 = vadd.f32 %v2466, %v2530
      %v2563 = vmax.f32 %v2531, 0.0
      %v2564 = vmax.f32 %v2532, 0.0
      %v2565 = vmax.f32 %v2533, 0.0
      %v2566 = vmax.f32 %v2534, 0.0
      %v2567 = vmax.f32 %v2535, 0.0
      %v2568 = vmax.f32 %v2536, 0.0
      %v2569 = vmax.f32 %v2537, 0.0
      %v2570 = vmax.f32 %v2538, 0.0
      %v2571 = vmax.f32 %v2539, 0.0
      %v2572 = vmax.f32 %v2540, 0.0
      %v2573 = vmax.f32 %v2541, 0.0
      %v2574 = vmax.f32 %v2542, 0.0
      %v2575 = vmax.f32 %v2543, 0.0
      %v2576 = vmax.f32 %v2544, 0.0
      %v2577 = vmax.f32 %v2545, 0.0
      %v2578 = vmax.f32 %v2546, 0.0
      %v2579 = vmax.f32 %v2547, 0.0
      %v2580 = vmax.f32 %v2548, 0.0
      %v2581 = vmax.f32 %v2549, 0.0
      %v2582 = vmax.f32 %v2550, 0.0
      %v2583 = vmax.f32 %v2551, 0.0
      %v2584 = vmax.f32 %v2552, 0.0
      %v2585 = vmax.f32 %v2553, 0.0
      %v2586 = vmax.f32 %v2554, 0.0
      %v2587 = vmax.f32 %v2555, 0.0
      %v2588 = vmax.f32 %v2556, 0.0
      %v2589 = vmax.f32 %v2557, 0.0
      %v2590 = vmax.f32 %v2558, 0.0
      %v2591 = vmax.f32 %v2559, 0.0
      %v2592 = vmax.f32 %v2560, 0.0
      %v2593 = vmax.f32 %v2561, 0.0
      %v2594 = vmax.f32 %v2562, 0.0
      %v2595 = vpack.c.bf16 %v2564, %v2563
      %v2596 = vpack.c.bf16 %v2566, %v2565
      %v2597 = vpack.c.bf16 %v2568, %v2567
      %v2598 = vpack.c.bf16 %v2570, %v2569
      %v2599 = vpack.c.bf16 %v2572, %v2571
      %v2600 = vpack.c.bf16 %v2574, %v2573
      %v2601 = vpack.c.bf16 %v2576, %v2575
      %v2602 = vpack.c.bf16 %v2578, %v2577
      %v2603 = vpack.c.bf16 %v2580, %v2579
      %v2604 = vpack.c.bf16 %v2582, %v2581
      %v2605 = vpack.c.bf16 %v2584, %v2583
      %v2606 = vpack.c.bf16 %v2586, %v2585
      %v2607 = vpack.c.bf16 %v2588, %v2587
      %v2608 = vpack.c.bf16 %v2590, %v2589
      %v2609 = vpack.c.bf16 %v2592, %v2591
      %v2610 = vpack.c.bf16 %v2594, %v2593
      %v2627 = vunpack.c.l.b16 %v2595
      %v2628 = vunpack.c.h.b16 %v2595
      %v2629 = vunpack.c.l.b16 %v2596
      %v2630 = vunpack.c.h.b16 %v2596
      %v2631 = vunpack.c.l.b16 %v2597
      %v2632 = vunpack.c.h.b16 %v2597
      %v2633 = vunpack.c.l.b16 %v2598
      %v2634 = vunpack.c.h.b16 %v2598
      %v2635 = vunpack.c.l.b16 %v2599
      %v2636 = vunpack.c.h.b16 %v2599
      %v2637 = vunpack.c.l.b16 %v2600
      %v2638 = vunpack.c.h.b16 %v2600
      %v2639 = vunpack.c.l.b16 %v2601
      %v2640 = vunpack.c.h.b16 %v2601
      %v2641 = vunpack.c.l.b16 %v2602
      %v2642 = vunpack.c.h.b16 %v2602
      %v2643 = vunpack.c.l.b16 %v2603
      %v2644 = vunpack.c.h.b16 %v2603
      %v2645 = vunpack.c.l.b16 %v2604
      %v2646 = vunpack.c.h.b16 %v2604
      %v2647 = vunpack.c.l.b16 %v2605
      %v2648 = vunpack.c.h.b16 %v2605
      %v2649 = vunpack.c.l.b16 %v2606
      %v2650 = vunpack.c.h.b16 %v2606
      %v2651 = vunpack.c.l.b16 %v2607
      %v2652 = vunpack.c.h.b16 %v2607
      %v2653 = vunpack.c.l.b16 %v2608
      %v2654 = vunpack.c.h.b16 %v2608
      %v2655 = vunpack.c.l.b16 %v2609
      %v2656 = vunpack.c.h.b16 %v2609
      %v2657 = vunpack.c.l.b16 %v2610
      %v2658 = vunpack.c.h.b16 %v2610
      %v2659 = vpack.c.b16 %v2627, %v2627
      %v2660 = vpack.c.b16 %v2628, %v2628
      %v2661 = vpack.c.b16 %v2629, %v2629
      %v2662 = vpack.c.b16 %v2630, %v2630
      %v2663 = vpack.c.b16 %v2631, %v2631
      %v2664 = vpack.c.b16 %v2632, %v2632
      %v2665 = vpack.c.b16 %v2633, %v2633
      %v2666 = vpack.c.b16 %v2634, %v2634
      %v2667 = vpack.c.b16 %v2635, %v2635
      %v2668 = vpack.c.b16 %v2636, %v2636
      %v2669 = vpack.c.b16 %v2637, %v2637
      %v2670 = vpack.c.b16 %v2638, %v2638
      %v2671 = vpack.c.b16 %v2639, %v2639
      %v2672 = vpack.c.b16 %v2640, %v2640
      %v2673 = vpack.c.b16 %v2641, %v2641
      %v2674 = vpack.c.b16 %v2642, %v2642
      %v2675 = vpack.c.b16 %v2643, %v2643
      %v2676 = vpack.c.b16 %v2644, %v2644
      %v2677 = vpack.c.b16 %v2645, %v2645
      %v2678 = vpack.c.b16 %v2646, %v2646
      %v2679 = vpack.c.b16 %v2647, %v2647
      %v2680 = vpack.c.b16 %v2648, %v2648
      %v2681 = vpack.c.b16 %v2649, %v2649
      %v2682 = vpack.c.b16 %v2650, %v2650
      %v2683 = vpack.c.b16 %v2651, %v2651
      %v2684 = vpack.c.b16 %v2652, %v2652
      %v2685 = vpack.c.b16 %v2653, %v2653
      %v2686 = vpack.c.b16 %v2654, %v2654
      %v2687 = vpack.c.b16 %v2655, %v2655
      %v2688 = vpack.c.b16 %v2656, %v2656
      %v2689 = vpack.c.b16 %v2657, %v2657
      %v2690 = vpack.c.b16 %v2658, %v2658
      %2723 = vst [vmem:[%s282] sm:$0xf] %v2659
      %2724 = vst [vmem:[%s282 + $0x4] sm:$0xf] %v2660
      %2725 = vst [vmem:[%s282 + $0x8] sm:$0xf] %v2661
      %2726 = vst [vmem:[%s282 + $0xc] sm:$0xf] %v2662
      %2727 = vst [vmem:[%s282 + $0x10] sm:$0xf] %v2663
      %2728 = vst [vmem:[%s282 + $0x14] sm:$0xf] %v2664
      %2729 = vst [vmem:[%s282 + $0x18] sm:$0xf] %v2665
      %2730 = vst [vmem:[%s282 + $0x1c] sm:$0xf] %v2666
      %2731 = vst [vmem:[%s282 + $0x20] sm:$0xf] %v2667
      %2732 = vst [vmem:[%s282 + $0x24] sm:$0xf] %v2668
      %2733 = vst [vmem:[%s282 + $0x28] sm:$0xf] %v2669
      %2734 = vst [vmem:[%s282 + $0x2c] sm:$0xf] %v2670
      %2735 = vst [vmem:[%s282 + $0x30] sm:$0xf] %v2671
      %2736 = vst [vmem:[%s282 + $0x34] sm:$0xf] %v2672
      %2737 = vst [vmem:[%s282 + $0x38] sm:$0xf] %v2673
      %2738 = vst [vmem:[%s282 + $0x3c] sm:$0xf] %v2674
      %2739 = vst [vmem:[%s282 + $0x40] sm:$0xf] %v2675
      %2740 = vst [vmem:[%s282 + $0x44] sm:$0xf] %v2676
      %2741 = vst [vmem:[%s282 + $0x48] sm:$0xf] %v2677
      %2742 = vst [vmem:[%s282 + $0x4c] sm:$0xf] %v2678
      %2743 = vst [vmem:[%s282 + $0x50] sm:$0xf] %v2679
      %2744 = vst [vmem:[%s282 + $0x54] sm:$0xf] %v2680
      %2745 = vst [vmem:[%s282 + $0x58] sm:$0xf] %v2681
      %2746 = vst [vmem:[%s282 + $0x5c] sm:$0xf] %v2682
      %2747 = vst [vmem:[%s282 + $0x60] sm:$0xf] %v2683
      %2748 = vst [vmem:[%s282 + $0x64] sm:$0xf] %v2684
      %2749 = vst [vmem:[%s282 + $0x68] sm:$0xf] %v2685
      %2750 = vst [vmem:[%s282 + $0x6c] sm:$0xf] %v2686
      %2751 = vst [vmem:[%s282 + $0x70] sm:$0xf] %v2687
      %2752 = vst [vmem:[%s282 + $0x74] sm:$0xf] %v2688
      %2753 = vst [vmem:[%s282 + $0x78] sm:$0xf] %v2689
      %2754 = vst [vmem:[%s282 + $0x7c] sm:$0xf] %v2690
      %s2755 = smul.u32 32, %s21
      %p2756 = scmp.lt.s32.totalorder %s20, 1
      %s2757 = scalar_select %p2756, %s20, 1
      %p2758 = scmp.lt.s32.totalorder %s2755, 31
      %s2759 = scalar_select %p2758, %s2755, 31
      %s2760 = smul.addr %s2757, 32
      %s2761 = sadd.s32 %s2759, %s2760
      %s2762 = smul.addr %s2761, 4
      %s2763 = scalar_lea.vmem %s5, %s2762
      // Predicated region
      $region41: #{basic_block_forward.3} parent=39 // pred_check
        %p2764 = pneg %p165
      $region42: #{basic_block_forward.3} parent=39 // pred_check_branch
        %2766 = sbr.rel (%p2764) target = $region44
      $region43: #{basic_block_forward.3} parent=39 // pred_region
        %s2767 = smul.u32 32, %s21
      $region44: #{basic_block_forward.3} parent=39 // pred_fallthru
        _
    $region40: #{basic_block_forward.3} parent=5 // pred_fallthru
      _
    %p2768 = scmp.le.s32.totalorder 2, %s11
    // Predicated region
    $region45: #{basic_block_forward.3} parent=5 // pred_check
      %p2769 = pneg %p2768
    $region46: #{basic_block_forward.3} parent=5 // pred_check_branch
      %2771 = sbr.rel (%p2769) target = $region48
    $region47: #{basic_block_forward.3} parent=5 // pred_region
      %s2772 = ssub.s32 %s11, 2
      // Predicated region
      $region49: #{basic_block_forward.3} parent=47 // pred_check
        %p2773 = pneg %p171
      $region50: #{basic_block_forward.3} parent=47 // pred_check_branch
        %2775 = sbr.rel (%p2773) target = $region52
      $region51: #{basic_block_forward.3} parent=47 // pred_region
        %s2776 = smul.u32 32, %s23
        %p2777 = scmp.lt.s32.totalorder %s22, 1
        %s2778 = scalar_select %p2777, %s22, 1
        %p2779 = scmp.lt.s32.totalorder %s2776, 31
        %s2780 = scalar_select %p2779, %s2776, 31
        %s2781 = smul.addr %s2778, 32
        %s2782 = sadd.s32 %s2780, %s2781
        %s2783 = smul.addr %s2782, 4
        %s2784 = scalar_lea.vmem %s5, %s2783
      $region52: #{basic_block_forward.3} parent=47 // pred_fallthru
        _
    $region48: #{basic_block_forward.3} parent=5 // pred_fallthru
      _
  $region6: #{basic_block_forward.3} parent=0 // loop_footer
    %s15 = sadd.s32 1, %s11
  $region7: #{basic_block_forward.3} parent=0 // loop_footer_branch
    %10 = sbr.rel target = $region3
  $region8: #{basic_block_forward.3} parent=0 // loop_exit
    _

// kernel: basic_block_forward.2
$region0: #{basic_block_forward.2}
  #allocation0 [shape = 'u32[]', space=smem, size = 0x4, offset = 0x4, fixed_abs, tag = 'smem constant byte address 0x4 - core index']
  #allocation1 [shape = 'u32[144,128]{1,0:T(1,128)}', space=vmem, size = 0x12000, scoped, tag = 'internal scratch']
  %s0 = inlined_call_operand.vmem [shape: bf16[2,18,18,128], index: 0, kind: input, shape index: {}]
  %s1 = inlined_call_operand.vmem [shape: bf16[3,384,128], index: 1, kind: input, shape index: {}]
  %s2 = inlined_call_operand.vmem [shape: f32[1,128], index: 2, kind: input, shape index: {}]
  %s3 = inlined_call_operand.vmem [shape: f32[1,128], index: 3, kind: input, shape index: {}]
  %s4 = inlined_call_operand.vmem [shape: bf16[128,128], index: 4, kind: input, shape index: {}]
  %s5 = inlined_call_operand.vmem [shape: f32[1,128], index: 5, kind: input, shape index: {}]
  %s6 = inlined_call_operand.vmem [shape: f32[1,128], index: 6, kind: input, shape index: {}]
  %s7 = inlined_call_operand.vmem [shape: bf16[2,256,128], index: 7, kind: output, shape index: {0}]
  %s8 = inlined_call_operand.vmem [shape: bf16[2,256,128], index: 8, kind: output, shape index: {1}]
  %9 = xla_tuple %s7, %s8
  %s10 = sld [smem:[#allocation0]]
  $region69: #{basic_block_forward.2} parent=0
    _
  %s12 = ssub.s32 1, %s10
  %s13 = scalar_select 0, %s12, %s10
  loop: start=0, step=1, limit=4
  $region2: #{basic_block_forward.2} parent=0 // loop_pre_header
    _
  $region3: #{basic_block_forward.2} parent=0 // loop_header
    %s15 = sphi 0, %s19
    %p16 = scmp.ge.s32.totalorder %s15, 4
    %s22 = sphi 0, %s34
    %s23 = sphi 0, %s30
    %s24 = sphi 0, %s22
    %s25 = sphi 0, %s23
    %s26 = sphi 0, %s24
    %s27 = sphi 0, %s25
    %s37 = sphi 0, %s39
    %s40 = sphi 0, %s37
    %s41 = sphi 0, %s40
    %s57 = sphi 0, %s41
    %s61 = sphi 0, %s61
    %s63 = sphi 0, %s61
    %s64 = sphi 0, %s63
    %s78 = sphi 0, %s64
    %s82 = sphi 0, %s82
    %s84 = sphi 0, %s82
    %s85 = sphi 0, %s84
    %s99 = sphi 0, %s85
    %s103 = sphi 0, %s103
    %s105 = sphi 0, %s103
    %s106 = sphi 0, %s105
    %s120 = sphi 0, %s106
    %s124 = sphi 0, %s124
    %s126 = sphi 0, %s124
    %s127 = sphi 0, %s126
    %s141 = sphi 0, %s127
    %s145 = sphi 0, %s145
    %s147 = sphi 0, %s145
    %s148 = sphi 0, %s147
    %s162 = sphi 0, %s148
    %s166 = sphi 0, %s166
    %s168 = sphi 0, %s166
    %s169 = sphi 0, %s168
    %s183 = sphi 0, %s169
    %s191 = sphi 0, %s193
    %s194 = sphi 0, %s191
    %s195 = sphi 0, %s194
    %s211 = sphi 0, %s195
    %s219 = sphi 0, %s221
    %s222 = sphi 0, %s219
    %s223 = sphi 0, %s222
    %s239 = sphi 0, %s223
  $region4: #{basic_block_forward.2} parent=0 // loop_header_branch
    %18 = sbr.rel (%p16) target = $region8
  $region5: #{basic_block_forward.2} parent=0 // loop_body
    %s20 = ssub.s32 %s15, 1
    %s21 = ssub.s32 %s15, 2
    %s28 = sadd.s32 1, %s23
    %p29 = scmp.ge.s32.totalorder %s28, 1
    %s30 = scalar_select %p29, 0, %s28
    %s31 = sadd.s32 1, %s22
    %s32 = scalar_select %p29, %s31, %s22
    %p33 = scmp.ge.s32.totalorder %s32, 2
    %s34 = scalar_select %p33, 0, %s32
    %s35 = ssub.s32 %s22, %s34
    %p36 = scmp.eq.s32.totalorder %s35, 0
    %s38 = sadd.s32 %s37, 1
    %s39 = scalar_select %p36, %s37, %s38
    %p42 = pneg %p36
    %p43 = scmp.eq.s32.totalorder %s15, 1
    %p44 = por %p42, %p43
    %p45 = scmp.ne.s32.totalorder %s37, %s40
    %p46 = scmp.eq.s32.totalorder %s15, 0
    %p47 = por %p45, %p46
    %p48 = scmp.ne.s32.totalorder %s37, %s40
    %p49 = scmp.eq.s32.totalorder %s20, 1
    %p50 = por %p48, %p49
    %p51 = scmp.ne.s32.totalorder %s40, %s41
    %p52 = scmp.eq.s32.totalorder %s20, 0
    %p53 = por %p51, %p52
    %p54 = scmp.ne.s32.totalorder %s40, %s41
    %p55 = scmp.eq.s32.totalorder %s21, 1
    %p56 = por %p54, %p55
    %p58 = scmp.ne.s32.totalorder %s41, %s57
    %p59 = scmp.eq.s32.totalorder %s21, 0
    %p60 = por %p58, %p59
    %s62 = sadd.s32 %s61, 1
    %p65 = scmp.eq.s32.totalorder %s15, 1
    %p66 = scmp.ne.s32.totalorder %s61, %s63
    %p67 = scmp.eq.s32.totalorder %s15, 0
    %p68 = por %p66, %p67
    %p69 = scmp.ne.s32.totalorder %s61, %s63
    %p70 = scmp.eq.s32.totalorder %s20, 1
    %p71 = por %p69, %p70
    %p72 = scmp.ne.s32.totalorder %s63, %s64
    %p73 = scmp.eq.s32.totalorder %s20, 0
    %p74 = por %p72, %p73
    %p75 = scmp.ne.s32.totalorder %s63, %s64
    %p76 = scmp.eq.s32.totalorder %s21, 1
    %p77 = por %p75, %p76
    %p79 = scmp.ne.s32.totalorder %s64, %s78
    %p80 = scmp.eq.s32.totalorder %s21, 0
    %p81 = por %p79, %p80
    %s83 = sadd.s32 %s82, 1
    %p86 = scmp.eq.s32.totalorder %s15, 1
    %p87 = scmp.ne.s32.totalorder %s82, %s84
    %p88 = scmp.eq.s32.totalorder %s15, 0
    %p89 = por %p87, %p88
    %p90 = scmp.ne.s32.totalorder %s82, %s84
    %p91 = scmp.eq.s32.totalorder %s20, 1
    %p92 = por %p90, %p91
    %p93 = scmp.ne.s32.totalorder %s84, %s85
    %p94 = scmp.eq.s32.totalorder %s20, 0
    %p95 = por %p93, %p94
    %p96 = scmp.ne.s32.totalorder %s84, %s85
    %p97 = scmp.eq.s32.totalorder %s21, 1
    %p98 = por %p96, %p97
    %p100 = scmp.ne.s32.totalorder %s85, %s99
    %p101 = scmp.eq.s32.totalorder %s21, 0
    %p102 = por %p100, %p101
    %s104 = sadd.s32 %s103, 1
    %p107 = scmp.eq.s32.totalorder %s15, 1
    %p108 = scmp.ne.s32.totalorder %s103, %s105
    %p109 = scmp.eq.s32.totalorder %s15, 0
    %p110 = por %p108, %p109
    %p111 = scmp.ne.s32.totalorder %s103, %s105
    %p112 = scmp.eq.s32.totalorder %s20, 1
    %p113 = por %p111, %p112
    %p114 = scmp.ne.s32.totalorder %s105, %s106
    %p115 = scmp.eq.s32.totalorder %s20, 0
    %p116 = por %p114, %p115
    %p117 = scmp.ne.s32.totalorder %s105, %s106
    %p118 = scmp.eq.s32.totalorder %s21, 1
    %p119 = por %p117, %p118
    %p121 = scmp.ne.s32.totalorder %s106, %s120
    %p122 = scmp.eq.s32.totalorder %s21, 0
    %p123 = por %p121, %p122
    %s125 = sadd.s32 %s124, 1
    %p128 = scmp.eq.s32.totalorder %s15, 1
    %p129 = scmp.ne.s32.totalorder %s124, %s126
    %p130 = scmp.eq.s32.totalorder %s15, 0
    %p131 = por %p129, %p130
    %p132 = scmp.ne.s32.totalorder %s124, %s126
    %p133 = scmp.eq.s32.totalorder %s20, 1
    %p134 = por %p132, %p133
    %p135 = scmp.ne.s32.totalorder %s126, %s127
    %p136 = scmp.eq.s32.totalorder %s20, 0
    %p137 = por %p135, %p136
    %p138 = scmp.ne.s32.totalorder %s126, %s127
    %p139 = scmp.eq.s32.totalorder %s21, 1
    %p140 = por %p138, %p139
    %p142 = scmp.ne.s32.totalorder %s127, %s141
    %p143 = scmp.eq.s32.totalorder %s21, 0
    %p144 = por %p142, %p143
    %s146 = sadd.s32 %s145, 1
    %p149 = scmp.eq.s32.totalorder %s15, 1
    %p150 = scmp.ne.s32.totalorder %s145, %s147
    %p151 = scmp.eq.s32.totalorder %s15, 0
    %p152 = por %p150, %p151
    %p153 = scmp.ne.s32.totalorder %s145, %s147
    %p154 = scmp.eq.s32.totalorder %s20, 1
    %p155 = por %p153, %p154
    %p156 = scmp.ne.s32.totalorder %s147, %s148
    %p157 = scmp.eq.s32.totalorder %s20, 0
    %p158 = por %p156, %p157
    %p159 = scmp.ne.s32.totalorder %s147, %s148
    %p160 = scmp.eq.s32.totalorder %s21, 1
    %p161 = por %p159, %p160
    %p163 = scmp.ne.s32.totalorder %s148, %s162
    %p164 = scmp.eq.s32.totalorder %s21, 0
    %p165 = por %p163, %p164
    %s167 = sadd.s32 %s166, 1
    %p170 = scmp.eq.s32.totalorder %s15, 1
    %p171 = scmp.ne.s32.totalorder %s166, %s168
    %p172 = scmp.eq.s32.totalorder %s15, 0
    %p173 = por %p171, %p172
    %p174 = scmp.ne.s32.totalorder %s166, %s168
    %p175 = scmp.eq.s32.totalorder %s20, 1
    %p176 = por %p174, %p175
    %p177 = scmp.ne.s32.totalorder %s168, %s169
    %p178 = scmp.eq.s32.totalorder %s20, 0
    %p179 = por %p177, %p178
    %p180 = scmp.ne.s32.totalorder %s168, %s169
    %p181 = scmp.eq.s32.totalorder %s21, 1
    %p182 = por %p180, %p181
    %p184 = scmp.ne.s32.totalorder %s169, %s183
    %p185 = scmp.eq.s32.totalorder %s21, 0
    %p186 = por %p184, %p185
    %s187 = ssub.s32 %s22, %s34
    %s188 = ssub.s32 %s23, %s30
    %s189 = sor.u32 %s187, %s188
    %p190 = scmp.eq.s32.totalorder %s189, 0
    %s192 = sadd.s32 %s191, 1
    %s193 = scalar_select %p190, %s191, %s192
    %p196 = pneg %p190
    %p197 = scmp.eq.s32.totalorder %s15, 1
    %p198 = por %p196, %p197
    %p199 = scmp.ne.s32.totalorder %s191, %s194
    %p200 = scmp.eq.s32.totalorder %s15, 0
    %p201 = por %p199, %p200
    %p202 = scmp.ne.s32.totalorder %s191, %s194
    %p203 = scmp.eq.s32.totalorder %s20, 1
    %p204 = por %p202, %p203
    %p205 = scmp.ne.s32.totalorder %s194, %s195
    %p206 = scmp.eq.s32.totalorder %s20, 0
    %p207 = por %p205, %p206
    %p208 = scmp.ne.s32.totalorder %s194, %s195
    %p209 = scmp.eq.s32.totalorder %s21, 1
    %p210 = por %p208, %p209
    %p212 = scmp.ne.s32.totalorder %s195, %s211
    %p213 = scmp.eq.s32.totalorder %s21, 0
    %p214 = por %p212, %p213
    %s215 = ssub.s32 %s22, %s34
    %s216 = ssub.s32 %s23, %s30
    %s217 = sor.u32 %s215, %s216
    %p218 = scmp.eq.s32.totalorder %s217, 0
    %s220 = sadd.s32 %s219, 1
    %s221 = scalar_select %p218, %s219, %s220
    %p224 = pneg %p218
    %p225 = scmp.eq.s32.totalorder %s15, 1
    %p226 = por %p224, %p225
    %p227 = scmp.ne.s32.totalorder %s219, %s222
    %p228 = scmp.eq.s32.totalorder %s15, 0
    %p229 = por %p227, %p228
    %p230 = scmp.ne.s32.totalorder %s219, %s222
    %p231 = scmp.eq.s32.totalorder %s20, 1
    %p232 = por %p230, %p231
    %p233 = scmp.ne.s32.totalorder %s222, %s223
    %p234 = scmp.eq.s32.totalorder %s20, 0
    %p235 = por %p233, %p234
    %p236 = scmp.ne.s32.totalorder %s222, %s223
    %p237 = scmp.eq.s32.totalorder %s21, 1
    %p238 = por %p236, %p237
    %p240 = scmp.ne.s32.totalorder %s223, %s239
    %p241 = scmp.eq.s32.totalorder %s21, 0
    %p242 = por %p240, %p241
    %p243 = scmp.le.s32.totalorder 1, %s15
    %p244 = scmp.lt.s32.totalorder %s15, 3
    %p245 = pnand %p243, %p244
    %p246 = pneg %p245
    // Predicated region
    $region9: #{basic_block_forward.2} parent=5 // pred_check
      _
    $region10: #{basic_block_forward.2} parent=5 // pred_check_branch
      %248 = sbr.rel (%p245) target = $region12
    $region11: #{basic_block_forward.2} parent=5 // pred_region
      %s249 = ssub.s32 %s15, 1
      // Predicated region
      $region13: #{basic_block_forward.2} parent=11 // pred_check
        %p250 = pneg %p74
      $region14: #{basic_block_forward.2} parent=11 // pred_check_branch
        %252 = sbr.rel (%p250) target = $region16
      $region15: #{basic_block_forward.2} parent=11 // pred_region
        _
      $region16: #{basic_block_forward.2} parent=11 // pred_fallthru
        _
      // Predicated region
      $region17: #{basic_block_forward.2} parent=11 // pred_check
        %p253 = pneg %p95
      $region18: #{basic_block_forward.2} parent=11 // pred_check_branch
        %255 = sbr.rel (%p253) target = $region20
      $region19: #{basic_block_forward.2} parent=11 // pred_region
        _
      $region20: #{basic_block_forward.2} parent=11 // pred_fallthru
        _
      // Predicated region
      $region21: #{basic_block_forward.2} parent=11 // pred_check
        %p256 = pneg %p116
      $region22: #{basic_block_forward.2} parent=11 // pred_check_branch
        %258 = sbr.rel (%p256) target = $region24
      $region23: #{basic_block_forward.2} parent=11 // pred_region
        _
      $region24: #{basic_block_forward.2} parent=11 // pred_fallthru
        _
      // Predicated region
      $region25: #{basic_block_forward.2} parent=11 // pred_check
        %p259 = pneg %p137
      $region26: #{basic_block_forward.2} parent=11 // pred_check_branch
        %261 = sbr.rel (%p259) target = $region28
      $region27: #{basic_block_forward.2} parent=11 // pred_region
        _
      $region28: #{basic_block_forward.2} parent=11 // pred_fallthru
        _
      // Predicated region
      $region29: #{basic_block_forward.2} parent=11 // pred_check
        %p262 = pneg %p158
      $region30: #{basic_block_forward.2} parent=11 // pred_check_branch
        %264 = sbr.rel (%p262) target = $region32
      $region31: #{basic_block_forward.2} parent=11 // pred_region
        _
      $region32: #{basic_block_forward.2} parent=11 // pred_fallthru
        _
      // Predicated region
      $region33: #{basic_block_forward.2} parent=11 // pred_check
        %p265 = pneg %p179
      $region34: #{basic_block_forward.2} parent=11 // pred_check_branch
        %267 = sbr.rel (%p265) target = $region36
      $region35: #{basic_block_forward.2} parent=11 // pred_region
        _
      $region36: #{basic_block_forward.2} parent=11 // pred_fallthru
        _
    $region12: #{basic_block_forward.2} parent=5 // pred_fallthru
      _
    %p268 = scmp.lt.s32.totalorder %s15, 2
    // Predicated region
    $region37: #{basic_block_forward.2} parent=5 // pred_check
      %p269 = pneg %p268
    $region38: #{basic_block_forward.2} parent=5 // pred_check_branch
      %271 = sbr.rel (%p269) target = $region40
    $region39: #{basic_block_forward.2} parent=5 // pred_region
      // Predicated region
      $region41: #{basic_block_forward.2} parent=39 // pred_check
        %p272 = pneg %p47
      $region42: #{basic_block_forward.2} parent=39 // pred_check_branch
        %274 = sbr.rel (%p272) target = $region44
      $region43: #{basic_block_forward.2} parent=39 // pred_region
        %p275 = scmp.lt.s32.totalorder %s22, 1
        %s276 = scalar_select %p275, %s22, 1
        %s277 = smul.addr %s276, 54
        %s278 = smul.addr %s277, 4
        %s279 = scalar_lea.vmem %s0, %s278
      $region44: #{basic_block_forward.2} parent=39 // pred_fallthru
        _
    $region40: #{basic_block_forward.2} parent=5 // pred_fallthru
      _
    %p280 = scmp.le.s32.totalorder 1, %s15
    %p281 = scmp.lt.s32.totalorder %s15, 3
    %p282 = pnand %p280, %p281
    %p283 = pneg %p282
    // Predicated region
    $region45: #{basic_block_forward.2} parent=5 // pred_check
      _
    $region46: #{basic_block_forward.2} parent=5 // pred_check_branch
      %285 = sbr.rel (%p282) target = $region48
    $region47: #{basic_block_forward.2} parent=5 // pred_region
      %s286 = ssub.s32 %s15, 1
      %p287 = scmp.lt.s32.totalorder %s24, 1
      %s288 = scalar_select %p287, %s24, 1
      %s289 = smul.addr %s288, 54
      %s290 = smul.addr %s289, 4
      %s291 = scalar_lea.vmem %s0, %s290
      %p292 = pneg %p53
      %p293 = pneg %p50
      %p294 = pneg %p74
      %p295 = pneg %p71
      %p296 = pneg %p95
      %p297 = pneg %p92
      %p298 = pneg %p116
      %p299 = pneg %p113
      %p300 = pneg %p137
      %p301 = pneg %p134
      %p302 = pneg %p158
      %p303 = pneg %p155
      %p304 = pneg %p179
      %p305 = pneg %p176
      %p306 = pneg %p207
      %p307 = pneg %p204
      %s308 = smul.u32 32, %s25
      %p309 = scmp.lt.s32.totalorder %s24, 1
      %s310 = scalar_select %p309, %s24, 1
      %p311 = scmp.lt.s32.totalorder %s308, 31
      %s312 = scalar_select %p311, %s308, 31
      %s313 = smul.addr %s310, 32
      %s314 = sadd.s32 %s312, %s313
      %s315 = smul.addr %s314, 4
      %s316 = scalar_lea.vmem %s7, %s315
      %p317 = pneg %p235
      %p318 = pneg %p232
      %s319 = smul.u32 32, %s25
      %p320 = scmp.lt.s32.totalorder %s24, 1
      %s321 = scalar_select %p320, %s24, 1
      %p322 = scmp.lt.s32.totalorder %s319, 31
      %s323 = scalar_select %p322, %s319, 31
      %s324 = smul.addr %s321, 32
      %s325 = sadd.s32 %s323, %s324
      %s326 = smul.addr %s325, 4
      %s327 = scalar_lea.vmem %s8, %s326
      %p328 = scmp.lt.s32.totalorder %s24, 1
      %s329 = scalar_select %p328, %s24, 1
      %s330 = smul.addr %s329, 54
      %s331 = smul.addr %s330, 4
      %s332 = scalar_lea.vmem %s0, %s331
      %s333 = smul.u32 32, %s25
      %p334 = scmp.lt.s32.totalorder %s24, 1
      %s335 = scalar_select %p334, %s24, 1
      %p336 = scmp.lt.s32.totalorder %s333, 31
      %s337 = scalar_select %p336, %s333, 31
      %s338 = smul.addr %s335, 32
      %s339 = sadd.s32 %s337, %s338
      %s340 = smul.addr %s339, 4
      %s341 = scalar_lea.vmem %s7, %s340
      %s342 = smul.u32 32, %s25
      %s343 = smul.u32 32, %s25
      %p344 = scmp.lt.s32.totalorder %s24, 1
      %s345 = scalar_select %p344, %s24, 1
      %p346 = scmp.lt.s32.totalorder %s343, 31
      %s347 = scalar_select %p346, %s343, 31
      %s348 = smul.addr %s345, 32
      %s349 = sadd.s32 %s347, %s348
      %s350 = smul.addr %s349, 4
      %s351 = scalar_lea.vmem %s8, %s350
      %s352 = smul.u32 32, %s25
      %s354 = smul.u32 %s25, 16
      %s355 = smul.u32 %s354, 3
      %s356 = smul.addr %s355, 4
      %s357 = scalar_lea.vmem %s332, %s356
      %v358 = vld [vmem:[%s357] sm:$0xf]
      %v359 = vld [vmem:[%s357 + $0x4] sm:$0xf]
      %v360 = vld [vmem:[%s357 + $0x8] sm:$0x1]
      %v361 = vld [vmem:[%s357 + $0xc] sm:$0xf]
      %v362 = vld [vmem:[%s357 + $0x10] sm:$0xf]
      %v363 = vld [vmem:[%s357 + $0x14] sm:$0x1]
      %v364 = vld [vmem:[%s357 + $0x18] sm:$0xf]
      %v365 = vld [vmem:[%s357 + $0x1c] sm:$0xf]
      %v366 = vld [vmem:[%s357 + $0x20] sm:$0x1]
      %v367 = vld [vmem:[%s357 + $0x24] sm:$0xf]
      %v368 = vld [vmem:[%s357 + $0x28] sm:$0xf]
      %v369 = vld [vmem:[%s357 + $0x2c] sm:$0x1]
      %v370 = vld [vmem:[%s357 + $0x30] sm:$0xf]
      %v371 = vld [vmem:[%s357 + $0x34] sm:$0xf]
      %v372 = vld [vmem:[%s357 + $0x38] sm:$0x1]
      %v373 = vld [vmem:[%s357 + $0x3c] sm:$0xf]
      %v374 = vld [vmem:[%s357 + $0x40] sm:$0xf]
      %v375 = vld [vmem:[%s357 + $0x44] sm:$0x1]
      %v376 = vld [vmem:[%s357 + $0x48] sm:$0xf]
      %v377 = vld [vmem:[%s357 + $0x4c] sm:$0xf]
      %v378 = vld [vmem:[%s357 + $0x50] sm:$0x1]
      %v379 = vld [vmem:[%s357 + $0x54] sm:$0xf]
      %v380 = vld [vmem:[%s357 + $0x58] sm:$0xf]
      %v381 = vld [vmem:[%s357 + $0x5c] sm:$0x1]
      %v382 = vld [vmem:[%s357 + $0x60] sm:$0xf]
      %v383 = vld [vmem:[%s357 + $0x64] sm:$0xf]
      %v384 = vld [vmem:[%s357 + $0x68] sm:$0x1]
      %v385 = vld [vmem:[%s357 + $0x6c] sm:$0xf]
      %v386 = vld [vmem:[%s357 + $0x70] sm:$0xf]
      %v387 = vld [vmem:[%s357 + $0x74] sm:$0x1]
      %v388 = vld [vmem:[%s357 + $0x78] sm:$0xf]
      %v389 = vld [vmem:[%s357 + $0x7c] sm:$0xf]
      %v390 = vld [vmem:[%s357 + $0x80] sm:$0x1]
      %v391 = vld [vmem:[%s357 + $0x84] sm:$0xf]
      %v392 = vld [vmem:[%s357 + $0x88] sm:$0xf]
      %v393 = vld [vmem:[%s357 + $0x8c] sm:$0x1]
      %v394 = vld [vmem:[%s357 + $0x90] sm:$0xf]
      %v395 = vld [vmem:[%s357 + $0x94] sm:$0xf]
      %v396 = vld [vmem:[%s357 + $0x98] sm:$0x1]
      %v397 = vld [vmem:[%s357 + $0x9c] sm:$0xf]
      %v398 = vld [vmem:[%s357 + $0xa0] sm:$0xf]
      %v399 = vld [vmem:[%s357 + $0xa4] sm:$0x1]
      %v400 = vld [vmem:[%s357 + $0xa8] sm:$0xf]
      %v401 = vld [vmem:[%s357 + $0xac] sm:$0xf]
      %v402 = vld [vmem:[%s357 + $0xb0] sm:$0x1]
      %v403 = vld [vmem:[%s357 + $0xb4] sm:$0xf]
      %v404 = vld [vmem:[%s357 + $0xb8] sm:$0xf]
      %v405 = vld [vmem:[%s357 + $0xbc] sm:$0x1]
      %v406 = vld [vmem:[%s357 + $0xc0] sm:$0xf]
      %v407 = vld [vmem:[%s357 + $0xc4] sm:$0xf]
      %v408 = vld [vmem:[%s357 + $0xc8] sm:$0x1]
      %v409 = vld [vmem:[%s357 + $0xcc] sm:$0xf]
      %v410 = vld [vmem:[%s357 + $0xd0] sm:$0xf]
      %v411 = vld [vmem:[%s357 + $0xd4] sm:$0x1]
      %v444 = vunpack.c.l.b16 %v358
      %v445 = vunpack.c.l.b16 %v359
      %v446 = vunpack.c.l.b16 %v361
      %v447 = vunpack.c.l.b16 %v362
      %v448 = vunpack.c.l.b16 %v364
      %v449 = vunpack.c.l.b16 %v365
      %v450 = vunpack.c.l.b16 %v367
      %v451 = vunpack.c.l.b16 %v368
      %v452 = vunpack.c.l.b16 %v370
      %v453 = vunpack.c.l.b16 %v371
      %v454 = vunpack.c.l.b16 %v373
      %v455 = vunpack.c.l.b16 %v374
      %v456 = vunpack.c.l.b16 %v376
      %v457 = vunpack.c.l.b16 %v377
      %v458 = vunpack.c.l.b16 %v379
      %v459 = vunpack.c.l.b16 %v380
      %v460 = vunpack.c.l.b16 %v382
      %v461 = vunpack.c.l.b16 %v383
      %v462 = vunpack.c.l.b16 %v385
      %v463 = vunpack.c.l.b16 %v386
      %v464 = vunpack.c.l.b16 %v388
      %v465 = vunpack.c.l.b16 %v389
      %v466 = vunpack.c.l.b16 %v391
      %v467 = vunpack.c.l.b16 %v392
      %v468 = vunpack.c.l.b16 %v394
      %v469 = vunpack.c.l.b16 %v395
      %v470 = vunpack.c.l.b16 %v397
      %v471 = vunpack.c.l.b16 %v398
      %v472 = vunpack.c.l.b16 %v400
      %v473 = vunpack.c.l.b16 %v401
      %v474 = vunpack.c.l.b16 %v403
      %v475 = vunpack.c.l.b16 %v404
      %v476 = vpack.c.b16 %v445, %v444
      %v477 = vpack.c.b16 %v447, %v446
      %v478 = vpack.c.b16 %v449, %v448
      %v479 = vpack.c.b16 %v451, %v450
      %v480 = vpack.c.b16 %v453, %v452
      %v481 = vpack.c.b16 %v455, %v454
      %v482 = vpack.c.b16 %v457, %v456
      %v483 = vpack.c.b16 %v459, %v458
      %v484 = vpack.c.b16 %v461, %v460
      %v485 = vpack.c.b16 %v463, %v462
      %v486 = vpack.c.b16 %v465, %v464
      %v487 = vpack.c.b16 %v467, %v466
      %v488 = vpack.c.b16 %v469, %v468
      %v489 = vpack.c.b16 %v471, %v470
      %v490 = vpack.c.b16 %v473, %v472
      %v491 = vpack.c.b16 %v475, %v474
      %v524 = vunpack.c.l.b16 %v360
      %v525 = vunpack.c.l.b16 %v363
      %v526 = vunpack.c.l.b16 %v366
      %v527 = vunpack.c.l.b16 %v369
      %v528 = vunpack.c.l.b16 %v372
      %v529 = vunpack.c.l.b16 %v375
      %v530 = vunpack.c.l.b16 %v378
      %v531 = vunpack.c.l.b16 %v381
      %v532 = vunpack.c.l.b16 %v384
      %v533 = vunpack.c.l.b16 %v387
      %v534 = vunpack.c.l.b16 %v390
      %v535 = vunpack.c.l.b16 %v393
      %v536 = vunpack.c.l.b16 %v396
      %v537 = vunpack.c.l.b16 %v399
      %v538 = vunpack.c.l.b16 %v402
      %v539 = vunpack.c.l.b16 %v405
      %v540 = vpack.c.b16 %v524, %v524
      %v541 = vpack.c.b16 %v525, %v525
      %v542 = vpack.c.b16 %v526, %v526
      %v543 = vpack.c.b16 %v527, %v527
      %v544 = vpack.c.b16 %v528, %v528
      %v545 = vpack.c.b16 %v529, %v529
      %v546 = vpack.c.b16 %v530, %v530
      %v547 = vpack.c.b16 %v531, %v531
      %v548 = vpack.c.b16 %v532, %v532
      %v549 = vpack.c.b16 %v533, %v533
      %v550 = vpack.c.b16 %v534, %v534
      %v551 = vpack.c.b16 %v535, %v535
      %v552 = vpack.c.b16 %v536, %v536
      %v553 = vpack.c.b16 %v537, %v537
      %v554 = vpack.c.b16 %v538, %v538
      %v555 = vpack.c.b16 %v539, %v539
      %vm556 = vsmask.f32 7424
      %v558 = vshrl.u32 %v476, 16
      %v560 = vshll.u32 %v476, 16
      %v562 = vrot.slane %v560, 1
      %v563 = vor.u32 %v558, %v562
      %v565 = vshll.u32 %v540, 16
      %v567 = vrot.slane %v565, 1
      %v568 = vsel %vm556, %v563, %v567
      %v570 = vshrl.u32 %v477, 16
      %v572 = vshll.u32 %v477, 16
      %v574 = vrot.slane %v572, 1
      %v575 = vor.u32 %v570, %v574
      %v577 = vshll.u32 %v541, 16
      %v579 = vrot.slane %v577, 1
      %v580 = vsel %vm556, %v575, %v579
      %v582 = vshrl.u32 %v478, 16
      %v584 = vshll.u32 %v478, 16
      %v586 = vrot.slane %v584, 1
      %v587 = vor.u32 %v582, %v586
      %v589 = vshll.u32 %v542, 16
      %v591 = vrot.slane %v589, 1
      %v592 = vsel %vm556, %v587, %v591
      %v594 = vshrl.u32 %v479, 16
      %v596 = vshll.u32 %v479, 16
      %v598 = vrot.slane %v596, 1
      %v599 = vor.u32 %v594, %v598
      %v601 = vshll.u32 %v543, 16
      %v603 = vrot.slane %v601, 1
      %v604 = vsel %vm556, %v599, %v603
      %v606 = vshrl.u32 %v480, 16
      %v608 = vshll.u32 %v480, 16
      %v610 = vrot.slane %v608, 1
      %v611 = vor.u32 %v606, %v610
      %v613 = vshll.u32 %v544, 16
      %v615 = vrot.slane %v613, 1
      %v616 = vsel %vm556, %v611, %v615
      %v618 = vshrl.u32 %v481, 16
      %v620 = vshll.u32 %v481, 16
      %v622 = vrot.slane %v620, 1
      %v623 = vor.u32 %v618, %v622
      %v625 = vshll.u32 %v545, 16
      %v627 = vrot.slane %v625, 1
      %v628 = vsel %vm556, %v623, %v627
      %v630 = vshrl.u32 %v482, 16
      %v632 = vshll.u32 %v482, 16
      %v634 = vrot.slane %v632, 1
      %v635 = vor.u32 %v630, %v634
      %v637 = vshll.u32 %v546, 16
      %v639 = vrot.slane %v637, 1
      %v640 = vsel %vm556, %v635, %v639
      %v642 = vshrl.u32 %v483, 16
      %v644 = vshll.u32 %v483, 16
      %v646 = vrot.slane %v644, 1
      %v647 = vor.u32 %v642, %v646
      %v649 = vshll.u32 %v547, 16
      %v651 = vrot.slane %v649, 1
      %v652 = vsel %vm556, %v647, %v651
      %v654 = vshrl.u32 %v484, 16
      %v656 = vshll.u32 %v484, 16
      %v658 = vrot.slane %v656, 1
      %v659 = vor.u32 %v654, %v658
      %v661 = vshll.u32 %v548, 16
      %v663 = vrot.slane %v661, 1
      %v664 = vsel %vm556, %v659, %v663
      %v666 = vshrl.u32 %v485, 16
      %v668 = vshll.u32 %v485, 16
      %v670 = vrot.slane %v668, 1
      %v671 = vor.u32 %v666, %v670
      %v673 = vshll.u32 %v549, 16
      %v675 = vrot.slane %v673, 1
      %v676 = vsel %vm556, %v671, %v675
      %v678 = vshrl.u32 %v486, 16
      %v680 = vshll.u32 %v486, 16
      %v682 = vrot.slane %v680, 1
      %v683 = vor.u32 %v678, %v682
      %v685 = vshll.u32 %v550, 16
      %v687 = vrot.slane %v685, 1
      %v688 = vsel %vm556, %v683, %v687
      %v690 = vshrl.u32 %v487, 16
      %v692 = vshll.u32 %v487, 16
      %v694 = vrot.slane %v692, 1
      %v695 = vor.u32 %v690, %v694
      %v697 = vshll.u32 %v551, 16
      %v699 = vrot.slane %v697, 1
      %v700 = vsel %vm556, %v695, %v699
      %v702 = vshrl.u32 %v488, 16
      %v704 = vshll.u32 %v488, 16
      %v706 = vrot.slane %v704, 1
      %v707 = vor.u32 %v702, %v706
      %v709 = vshll.u32 %v552, 16
      %v711 = vrot.slane %v709, 1
      %v712 = vsel %vm556, %v707, %v711
      %v714 = vshrl.u32 %v489, 16
      %v716 = vshll.u32 %v489, 16
      %v718 = vrot.slane %v716, 1
      %v719 = vor.u32 %v714, %v718
      %v721 = vshll.u32 %v553, 16
      %v723 = vrot.slane %v721, 1
      %v724 = vsel %vm556, %v719, %v723
      %v726 = vshrl.u32 %v490, 16
      %v728 = vshll.u32 %v490, 16
      %v730 = vrot.slane %v728, 1
      %v731 = vor.u32 %v726, %v730
      %v733 = vshll.u32 %v554, 16
      %v735 = vrot.slane %v733, 1
      %v736 = vsel %vm556, %v731, %v735
      %v738 = vshrl.u32 %v491, 16
      %v740 = vshll.u32 %v491, 16
      %v742 = vrot.slane %v740, 1
      %v743 = vor.u32 %v738, %v742
      %v745 = vshll.u32 %v555, 16
      %v747 = vrot.slane %v745, 1
      %v748 = vsel %vm556, %v743, %v747
      %vm765 = vcmask 1046528
      %v766 = vrot.slane %v476, 1
      %v767 = vrot.slane %v540, 1
      %v768 = vsel %vm765, %v766, %v767
      %v769 = vrot.slane %v477, 1
      %v770 = vrot.slane %v541, 1
      %v771 = vsel %vm765, %v769, %v770
      %v772 = vrot.slane %v478, 1
      %v773 = vrot.slane %v542, 1
      %v774 = vsel %vm765, %v772, %v773
      %v775 = vrot.slane %v479, 1
      %v776 = vrot.slane %v543, 1
      %v777 = vsel %vm765, %v775, %v776
      %v778 = vrot.slane %v480, 1
      %v779 = vrot.slane %v544, 1
      %v780 = vsel %vm765, %v778, %v779
      %v781 = vrot.slane %v481, 1
      %v782 = vrot.slane %v545, 1
      %v783 = vsel %vm765, %v781, %v782
      %v784 = vrot.slane %v482, 1
      %v785 = vrot.slane %v546, 1
      %v786 = vsel %vm765, %v784, %v785
      %v787 = vrot.slane %v483, 1
      %v788 = vrot.slane %v547, 1
      %v789 = vsel %vm765, %v787, %v788
      %v790 = vrot.slane %v484, 1
      %v791 = vrot.slane %v548, 1
      %v792 = vsel %vm765, %v790, %v791
      %v793 = vrot.slane %v485, 1
      %v794 = vrot.slane %v549, 1
      %v795 = vsel %vm765, %v793, %v794
      %v796 = vrot.slane %v486, 1
      %v797 = vrot.slane %v550, 1
      %v798 = vsel %vm765, %v796, %v797
      %v799 = vrot.slane %v487, 1
      %v800 = vrot.slane %v551, 1
      %v801 = vsel %vm765, %v799, %v800
      %v802 = vrot.slane %v488, 1
      %v803 = vrot.slane %v552, 1
      %v804 = vsel %vm765, %v802, %v803
      %v805 = vrot.slane %v489, 1
      %v806 = vrot.slane %v553, 1
      %v807 = vsel %vm765, %v805, %v806
      %v808 = vrot.slane %v490, 1
      %v809 = vrot.slane %v554, 1
      %v810 = vsel %vm765, %v808, %v809
      %v811 = vrot.slane %v491, 1
      %v812 = vrot.slane %v555, 1
      %v813 = vsel %vm765, %v811, %v812
      %v830 = vld [vmem:[%s1] sm:$0xf]
      %v831 = vld [vmem:[%s1 + $0x4] sm:$0xf]
      %v832 = vld [vmem:[%s1 + $0x8] sm:$0xf]
      %v833 = vld [vmem:[%s1 + $0xc] sm:$0xf]
      %v834 = vld [vmem:[%s1 + $0x10] sm:$0xf]
      %v835 = vld [vmem:[%s1 + $0x14] sm:$0xf]
      %v836 = vld [vmem:[%s1 + $0x18] sm:$0xf]
      %v837 = vld [vmem:[%s1 + $0x1c] sm:$0xf]
      %v838 = vld [vmem:[%s1 + $0x20] sm:$0xf]
      %v839 = vld [vmem:[%s1 + $0x24] sm:$0xf]
      %v840 = vld [vmem:[%s1 + $0x28] sm:$0xf]
      %v841 = vld [vmem:[%s1 + $0x2c] sm:$0xf]
      %v842 = vld [vmem:[%s1 + $0x30] sm:$0xf]
      %v843 = vld [vmem:[%s1 + $0x34] sm:$0xf]
      %v844 = vld [vmem:[%s1 + $0x38] sm:$0xf]
      %v845 = vld [vmem:[%s1 + $0x3c] sm:$0xf]
      %v846 = vld [vmem:[%s1 + $0x40] sm:$0xf]
      %v847 = vld [vmem:[%s1 + $0x44] sm:$0xf]
      %v848 = vld [vmem:[%s1 + $0x48] sm:$0xf]
      %v849 = vld [vmem:[%s1 + $0x4c] sm:$0xf]
      %v850 = vld [vmem:[%s1 + $0x50] sm:$0xf]
      %v851 = vld [vmem:[%s1 + $0x54] sm:$0xf]
      %v852 = vld [vmem:[%s1 + $0x58] sm:$0xf]
      %v853 = vld [vmem:[%s1 + $0x5c] sm:$0xf]
      %v854 = vld [vmem:[%s1 + $0x60] sm:$0xf]
      %v855 = vld [vmem:[%s1 + $0x64] sm:$0xf]
      %v856 = vld [vmem:[%s1 + $0x68] sm:$0xf]
      %v857 = vld [vmem:[%s1 + $0x6c] sm:$0xf]
      %v858 = vld [vmem:[%s1 + $0x70] sm:$0xf]
      %v859 = vld [vmem:[%s1 + $0x74] sm:$0xf]
      %v860 = vld [vmem:[%s1 + $0x78] sm:$0xf]
      %v861 = vld [vmem:[%s1 + $0x7c] sm:$0xf]
      %v862 = vld [vmem:[%s1 + $0x80] sm:$0xf]
      %v863 = vld [vmem:[%s1 + $0x84] sm:$0xf]
      %v864 = vld [vmem:[%s1 + $0x88] sm:$0xf]
      %v865 = vld [vmem:[%s1 + $0x8c] sm:$0xf]
      %v866 = vld [vmem:[%s1 + $0x90] sm:$0xf]
      %v867 = vld [vmem:[%s1 + $0x94] sm:$0xf]
      %v868 = vld [vmem:[%s1 + $0x98] sm:$0xf]
      %v869 = vld [vmem:[%s1 + $0x9c] sm:$0xf]
      %v870 = vld [vmem:[%s1 + $0xa0] sm:$0xf]
      %v871 = vld [vmem:[%s1 + $0xa4] sm:$0xf]
      %v872 = vld [vmem:[%s1 + $0xa8] sm:$0xf]
      %v873 = vld [vmem:[%s1 + $0xac] sm:$0xf]
      %v874 = vld [vmem:[%s1 + $0xb0] sm:$0xf]
      %v875 = vld [vmem:[%s1 + $0xb4] sm:$0xf]
      %v876 = vld [vmem:[%s1 + $0xb8] sm:$0xf]
      %v877 = vld [vmem:[%s1 + $0xbc] sm:$0xf]
      %v880 = vunpack.c.l.b16 %v406
      %v881 = vunpack.c.l.b16 %v407
      %v882 = vpack.c.b16 %v881, %v880
      %v885 = vunpack.c.l.b16 %v408
      %v886 = vpack.c.b16 %v885, %v885
      %v888 = vshrl.u32 %v882, 16
      %v890 = vshll.u32 %v882, 16
      %v892 = vrot.slane %v890, 1
      %v893 = vor.u32 %v888, %v892
      %v895 = vshll.u32 %v886, 16
      %v897 = vrot.slane %v895, 1
      %v898 = vsel %vm556, %v893, %v897
      %v900 = vrot.slane %v882, 1
      %v901 = vrot.slane %v886, 1
      %v902 = vsel %vm765, %v900, %v901
      %s904 = scalar_lea.vmem %s1, 192
      %v905 = vld [vmem:[%s904] sm:$0xf]
      %v906 = vld [vmem:[%s904 + $0x4] sm:$0xf]
      %v907 = vld [vmem:[%s904 + $0x8] sm:$0xf]
      %v908 = vld [vmem:[%s904 + $0xc] sm:$0xf]
      %v909 = vld [vmem:[%s904 + $0x10] sm:$0xf]
      %v910 = vld [vmem:[%s904 + $0x14] sm:$0xf]
      %v911 = vld [vmem:[%s904 + $0x18] sm:$0xf]
      %v912 = vld [vmem:[%s904 + $0x1c] sm:$0xf]
      %v913 = vld [vmem:[%s904 + $0x20] sm:$0xf]
      %v914 = vld [vmem:[%s904 + $0x24] sm:$0xf]
      %v915 = vld [vmem:[%s904 + $0x28] sm:$0xf]
      %v916 = vld [vmem:[%s904 + $0x2c] sm:$0xf]
      %v917 = vld [vmem:[%s904 + $0x30] sm:$0xf]
      %v918 = vld [vmem:[%s904 + $0x34] sm:$0xf]
      %v919 = vld [vmem:[%s904 + $0x38] sm:$0xf]
      %v920 = vld [vmem:[%s904 + $0x3c] sm:$0xf]
      %v921 = vld [vmem:[%s904 + $0x40] sm:$0xf]
      %v922 = vld [vmem:[%s904 + $0x44] sm:$0xf]
      %v923 = vld [vmem:[%s904 + $0x48] sm:$0xf]
      %v924 = vld [vmem:[%s904 + $0x4c] sm:$0xf]
      %v925 = vld [vmem:[%s904 + $0x50] sm:$0xf]
      %v926 = vld [vmem:[%s904 + $0x54] sm:$0xf]
      %v927 = vld [vmem:[%s904 + $0x58] sm:$0xf]
      %v928 = vld [vmem:[%s904 + $0x5c] sm:$0xf]
      %v929 = vld [vmem:[%s904 + $0x60] sm:$0xf]
      %v930 = vld [vmem:[%s904 + $0x64] sm:$0xf]
      %v931 = vld [vmem:[%s904 + $0x68] sm:$0xf]
      %v932 = vld [vmem:[%s904 + $0x6c] sm:$0xf]
      %v933 = vld [vmem:[%s904 + $0x70] sm:$0xf]
      %v934 = vld [vmem:[%s904 + $0x74] sm:$0xf]
      %v935 = vld [vmem:[%s904 + $0x78] sm:$0xf]
      %v936 = vld [vmem:[%s904 + $0x7c] sm:$0xf]
      %v937 = vld [vmem:[%s904 + $0x80] sm:$0xf]
      %v938 = vld [vmem:[%s904 + $0x84] sm:$0xf]
      %v939 = vld [vmem:[%s904 + $0x88] sm:$0xf]
      %v940 = vld [vmem:[%s904 + $0x8c] sm:$0xf]
      %v941 = vld [vmem:[%s904 + $0x90] sm:$0xf]
      %v942 = vld [vmem:[%s904 + $0x94] sm:$0xf]
      %v943 = vld [vmem:[%s904 + $0x98] sm:$0xf]
      %v944 = vld [vmem:[%s904 + $0x9c] sm:$0xf]
      %v945 = vld [vmem:[%s904 + $0xa0] sm:$0xf]
      %v946 = vld [vmem:[%s904 + $0xa4] sm:$0xf]
      %v947 = vld [vmem:[%s904 + $0xa8] sm:$0xf]
      %v948 = vld [vmem:[%s904 + $0xac] sm:$0xf]
      %v949 = vld [vmem:[%s904 + $0xb0] sm:$0xf]
      %v950 = vld [vmem:[%s904 + $0xb4] sm:$0xf]
      %v951 = vld [vmem:[%s904 + $0xb8] sm:$0xf]
      %v952 = vld [vmem:[%s904 + $0xbc] sm:$0xf]
      %v1001 = vunpack.c.l.b16 %v905
      %v1002 = vunpack.c.l.b16 %v906
      %v1003 = vunpack.c.l.b16 %v907
      %v1004 = vunpack.c.l.b16 %v908
      %v1005 = vunpack.c.l.b16 %v909
      %v1006 = vunpack.c.l.b16 %v910
      %v1007 = vunpack.c.l.b16 %v911
      %v1008 = vunpack.c.l.b16 %v912
      %v1009 = vunpack.c.l.b16 %v913
      %v1010 = vunpack.c.l.b16 %v914
      %v1011 = vunpack.c.l.b16 %v915
      %v1012 = vunpack.c.l.b16 %v916
      %v1013 = vunpack.c.l.b16 %v917
      %v1014 = vunpack.c.l.b16 %v918
      %v1015 = vunpack.c.l.b16 %v919
      %v1016 = vunpack.c.l.b16 %v920
      %v1017 = vunpack.c.l.b16 %v921
      %v1018 = vunpack.c.l.b16 %v922
      %v1019 = vunpack.c.l.b16 %v923
      %v1020 = vunpack.c.l.b16 %v924
      %v1021 = vunpack.c.l.b16 %v925
      %v1022 = vunpack.c.l.b16 %v926
      %v1023 = vunpack.c.l.b16 %v927
      %v1024 = vunpack.c.l.b16 %v928
      %v1025 = vunpack.c.l.b16 %v929
      %v1026 = vunpack.c.l.b16 %v930
      %v1027 = vunpack.c.l.b16 %v931
      %v1028 = vunpack.c.l.b16 %v932
      %v1029 = vunpack.c.l.b16 %v933
      %v1030 = vunpack.c.l.b16 %v934
      %v1031 = vunpack.c.l.b16 %v935
      %v1032 = vunpack.c.l.b16 %v936
      %v1033 = vunpack.c.l.b16 %v937
      %v1034 = vunpack.c.l.b16 %v938
      %v1035 = vunpack.c.l.b16 %v939
      %v1036 = vunpack.c.l.b16 %v940
      %v1037 = vunpack.c.l.b16 %v941
      %v1038 = vunpack.c.l.b16 %v942
      %v1039 = vunpack.c.l.b16 %v943
      %v1040 = vunpack.c.l.b16 %v944
      %v1041 = vunpack.c.l.b16 %v945
      %v1042 = vunpack.c.l.b16 %v946
      %v1043 = vunpack.c.l.b16 %v947
      %v1044 = vunpack.c.l.b16 %v948
      %v1045 = vunpack.c.l.b16 %v949
      %v1046 = vunpack.c.l.b16 %v950
      %v1047 = vunpack.c.l.b16 %v951
      %v1048 = vunpack.c.l.b16 %v952
      %v1049 = vpack.c.b16 %v1002, %v1001
      %v1050 = vpack.c.b16 %v1004, %v1003
      %v1051 = vpack.c.b16 %v1006, %v1005
      %v1052 = vpack.c.b16 %v1008, %v1007
      %v1053 = vpack.c.b16 %v1010, %v1009
      %v1054 = vpack.c.b16 %v1012, %v1011
      %v1055 = vpack.c.b16 %v1014, %v1013
      %v1056 = vpack.c.b16 %v1016, %v1015
      %v1057 = vpack.c.b16 %v1018, %v1017
      %v1058 = vpack.c.b16 %v1020, %v1019
      %v1059 = vpack.c.b16 %v1022, %v1021
      %v1060 = vpack.c.b16 %v1024, %v1023
      %v1061 = vpack.c.b16 %v1026, %v1025
      %v1062 = vpack.c.b16 %v1028, %v1027
      %v1063 = vpack.c.b16 %v1030, %v1029
      %v1064 = vpack.c.b16 %v1032, %v1031
      %v1065 = vpack.c.b16 %v1034, %v1033
      %v1066 = vpack.c.b16 %v1036, %v1035
      %v1067 = vpack.c.b16 %v1038, %v1037
      %v1068 = vpack.c.b16 %v1040, %v1039
      %v1069 = vpack.c.b16 %v1042, %v1041
      %v1070 = vpack.c.b16 %v1044, %v1043
      %v1071 = vpack.c.b16 %v1046, %v1045
      %v1072 = vpack.c.b16 %v1048, %v1047
      %1097 = vmatprep.subr.bf16.mxu0 0
      %1098 = vmatpush1.bf16.msra.mxu0 %v1056
      %1099 = vmatprep.subr.bf16.mxu0 0
      %1100 = vmatpush1.bf16.msra.mxu0 %v1055
      %1101 = vmatprep.subr.bf16.mxu0 0
      %1102 = vmatpush1.bf16.msra.mxu0 %v1054
      %1103 = vmatprep.subr.bf16.mxu0 0
      %1104 = vmatpush1.bf16.msra.mxu0 %v1053
      %1105 = vmatprep.subr.bf16.mxu0 0
      %1106 = vmatpush1.bf16.msra.mxu0 %v1052
      %1107 = vmatprep.subr.bf16.mxu0 0
      %1108 = vmatpush1.bf16.msra.mxu0 %v1051
      %1109 = vmatprep.subr.bf16.mxu0 0
      %1110 = vmatpush1.bf16.msra.mxu0 %v1050
      %1111 = vmatprep.subr.bf16.mxu0 0
      %1112 = vmatpush1.bf16.msra.mxu0 %v1049
      %1113 = vmatprep.subr.bf16.mxu0 0
      %1114 = vmatpush2.bf16.msra.mxu0 %v1064
      %1115 = vmatprep.subr.bf16.mxu0 0
      %1116 = vmatpush2.bf16.msra.mxu0 %v1063
      %1117 = vmatprep.subr.bf16.mxu0 0
      %1118 = vmatpush2.bf16.msra.mxu0 %v1062
      %1119 = vmatprep.subr.bf16.mxu0 0
      %1120 = vmatpush2.bf16.msra.mxu0 %v1061
      %1121 = vmatprep.subr.bf16.mxu0 0
      %1122 = vmatpush2.bf16.msra.mxu0 %v1060
      %1123 = vmatprep.subr.bf16.mxu0 0
      %1124 = vmatpush2.bf16.msra.mxu0 %v1059
      %1125 = vmatprep.subr.bf16.mxu0 0
      %1126 = vmatpush2.bf16.msra.mxu0 %v1058
      %1127 = vmatprep.subr.bf16.mxu0 0
      %1128 = vmatpush2.bf16.msra.mxu0 %v1057
      %1129 = vmatprep.mubr.bf16.mxu0 %v580
      %1130 = vmatmul.mubr.bf16.gmra.mxu0 %v477
      %v1131 = vpop.f32.mrf.mxu0
      %v1132 = vadd.f32 0.0, %v1131
      %v1133 = vpop.f32.mrf.mxu0
      %v1134 = vpop.f32.mrf.mxu0
      %v1135 = vadd.f32 0.0, %v1134
      %v1136 = vpop.f32.mrf.mxu0
      %1137 = vmatprep.mubr.bf16.mxu0 %v592
      %1138 = vmatmul.mubr.bf16.gmra.mxu0 %v478
      %v1139 = vpop.f32.mrf.mxu0
      %v1140 = vadd.f32 0.0, %v1139
      %v1141 = vpop.f32.mrf.mxu0
      %v1142 = vpop.f32.mrf.mxu0
      %v1143 = vadd.f32 0.0, %v1142
      %v1144 = vpop.f32.mrf.mxu0
      %1145 = vmatprep.mubr.bf16.mxu0 %v604
      %1146 = vmatmul.mubr.bf16.gmra.mxu0 %v479
      %v1147 = vpop.f32.mrf.mxu0
      %v1148 = vadd.f32 0.0, %v1147
      %v1149 = vpop.f32.mrf.mxu0
      %v1150 = vpop.f32.mrf.mxu0
      %v1151 = vadd.f32 0.0, %v1150
      %v1152 = vpop.f32.mrf.mxu0
      %1153 = vmatprep.mubr.bf16.mxu0 %v616
      %1154 = vmatmul.mubr.bf16.gmra.mxu0 %v480
      %v1155 = vpop.f32.mrf.mxu0
      %v1156 = vadd.f32 0.0, %v1155
      %v1157 = vpop.f32.mrf.mxu0
      %v1158 = vpop.f32.mrf.mxu0
      %v1159 = vadd.f32 0.0, %v1158
      %v1160 = vpop.f32.mrf.mxu0
      %1161 = vmatprep.mubr.bf16.mxu0 %v628
      %1162 = vmatmul.mubr.bf16.gmra.mxu0 %v481
      %v1163 = vpop.f32.mrf.mxu0
      %v1164 = vadd.f32 0.0, %v1163
      %v1165 = vpop.f32.mrf.mxu0
      %v1166 = vpop.f32.mrf.mxu0
      %v1167 = vadd.f32 0.0, %v1166
      %v1168 = vpop.f32.mrf.mxu0
      %1169 = vmatprep.mubr.bf16.mxu0 %v640
      %1170 = vmatmul.mubr.bf16.gmra.mxu0 %v482
      %v1171 = vpop.f32.mrf.mxu0
      %v1172 = vadd.f32 0.0, %v1171
      %v1173 = vpop.f32.mrf.mxu0
      %v1174 = vpop.f32.mrf.mxu0
      %v1175 = vadd.f32 0.0, %v1174
      %v1176 = vpop.f32.mrf.mxu0
      %1177 = vmatprep.mubr.bf16.mxu0 %v652
      %1178 = vmatmul.mubr.bf16.gmra.mxu0 %v483
      %v1179 = vpop.f32.mrf.mxu0
      %v1180 = vadd.f32 0.0, %v1179
      %v1181 = vpop.f32.mrf.mxu0
      %v1182 = vpop.f32.mrf.mxu0
      %v1183 = vadd.f32 0.0, %v1182
      %v1184 = vpop.f32.mrf.mxu0
      %1185 = vmatprep.mubr.bf16.mxu0 %v664
      %1186 = vmatmul.mubr.bf16.gmra.mxu0 %v484
      %v1187 = vpop.f32.mrf.mxu0
      %v1188 = vadd.f32 0.0, %v1187
      %v1189 = vpop.f32.mrf.mxu0
      %v1190 = vpop.f32.mrf.mxu0
      %v1191 = vadd.f32 0.0, %v1190
      %v1192 = vpop.f32.mrf.mxu0
      %1193 = vmatprep.mubr.bf16.mxu0 %v676
      %1194 = vmatmul.mubr.bf16.gmra.mxu0 %v485
      %v1195 = vpop.f32.mrf.mxu0
      %v1196 = vadd.f32 0.0, %v1195
      %v1197 = vpop.f32.mrf.mxu0
      %v1198 = vpop.f32.mrf.mxu0
      %v1199 = vadd.f32 0.0, %v1198
      %v1200 = vpop.f32.mrf.mxu0
      %1201 = vmatprep.mubr.bf16.mxu0 %v688
      %1202 = vmatmul.mubr.bf16.gmra.mxu0 %v486
      %v1203 = vpop.f32.mrf.mxu0
      %v1204 = vadd.f32 0.0, %v1203
      %v1205 = vpop.f32.mrf.mxu0
      %v1206 = vpop.f32.mrf.mxu0
      %v1207 = vadd.f32 0.0, %v1206
      %v1208 = vpop.f32.mrf.mxu0
      %1209 = vmatprep.mubr.bf16.mxu0 %v700
      %1210 = vmatmul.mubr.bf16.gmra.mxu0 %v487
      %v1211 = vpop.f32.mrf.mxu0
      %v1212 = vadd.f32 0.0, %v1211
      %v1213 = vpop.f32.mrf.mxu0
      %v1214 = vpop.f32.mrf.mxu0
      %v1215 = vadd.f32 0.0, %v1214
      %v1216 = vpop.f32.mrf.mxu0
      %1217 = vmatprep.mubr.bf16.mxu0 %v712
      %1218 = vmatmul.mubr.bf16.gmra.mxu0 %v488
      %v1219 = vpop.f32.mrf.mxu0
      %v1220 = vadd.f32 0.0, %v1219
      %v1221 = vpop.f32.mrf.mxu0
      %v1222 = vpop.f32.mrf.mxu0
      %v1223 = vadd.f32 0.0, %v1222
      %v1224 = vpop.f32.mrf.mxu0
      %1225 = vmatprep.mubr.bf16.mxu0 %v724
      %1226 = vmatmul.mubr.bf16.gmra.mxu0 %v489
      %v1227 = vpop.f32.mrf.mxu0
      %v1228 = vadd.f32 0.0, %v1227
      %v1229 = vpop.f32.mrf.mxu0
      %v1230 = vpop.f32.mrf.mxu0
      %v1231 = vadd.f32 0.0, %v1230
      %v1232 = vpop.f32.mrf.mxu0
      %1233 = vmatprep.mubr.bf16.mxu0 %v736
      %1234 = vmatmul.mubr.bf16.gmra.mxu0 %v490
      %v1235 = vpop.f32.mrf.mxu0
      %v1236 = vadd.f32 0.0, %v1235
      %v1237 = vpop.f32.mrf.mxu0
      %v1238 = vpop.f32.mrf.mxu0
      %v1239 = vadd.f32 0.0, %v1238
      %v1240 = vpop.f32.mrf.mxu0
      %1241 = vmatprep.mubr.bf16.mxu0 %v748
      %1242 = vmatmul.mubr.bf16.gmra.mxu0 %v491
      %v1243 = vpop.f32.mrf.mxu0
      %v1244 = vadd.f32 0.0, %v1243
      %v1245 = vpop.f32.mrf.mxu0
      %v1246 = vpop.f32.mrf.mxu0
      %v1247 = vadd.f32 0.0, %v1246
      %v1248 = vpop.f32.mrf.mxu0
      %1249 = vmatprep.mubr.bf16.mxu0 %v898
      %1250 = vmatmul.mubr.bf16.gmra.mxu0 %v882
      %v1251 = vpop.f32.mrf.mxu0
      %v1252 = vadd.f32 0.0, %v1251
      %v1253 = vpop.f32.mrf.mxu0
      %v1254 = vpop.f32.mrf.mxu0
      %v1255 = vadd.f32 0.0, %v1254
      %v1256 = vpop.f32.mrf.mxu0
      %1257 = vdwg.mxu0
      %1258 = vmatprep.subr.bf16.mxu0 0
      %1259 = vmatpush1.bf16.msra.mxu0 %v1072
      %1260 = vmatprep.subr.bf16.mxu0 0
      %1261 = vmatpush1.bf16.msra.mxu0 %v1071
      %1262 = vmatprep.subr.bf16.mxu0 0
      %1263 = vmatpush1.bf16.msra.mxu0 %v1070
      %1264 = vmatprep.subr.bf16.mxu0 0
      %1265 = vmatpush1.bf16.msra.mxu0 %v1069
      %1266 = vmatprep.subr.bf16.mxu0 0
      %1267 = vmatpush1.bf16.msra.mxu0 %v1068
      %1268 = vmatprep.subr.bf16.mxu0 0
      %1269 = vmatpush1.bf16.msra.mxu0 %v1067
      %1270 = vmatprep.subr.bf16.mxu0 0
      %1271 = vmatpush1.bf16.msra.mxu0 %v1066
      %1272 = vmatprep.subr.bf16.mxu0 0
      %1273 = vmatpush1.bf16.msra.mxu0 %v1065
      %1274 = vmatprep.subr.bf16.mxu0 0
      %1275 = vmatpush2.bf16.msra.mxu0 0
      %1276 = vmatprep.subr.bf16.mxu0 0
      %1277 = vmatpush2.bf16.msra.mxu0 0
      %1278 = vmatprep.subr.bf16.mxu0 0
      %1279 = vmatpush2.bf16.msra.mxu0 0
      %1280 = vmatprep.subr.bf16.mxu0 0
      %1281 = vmatpush2.bf16.msra.mxu0 0
      %1282 = vmatprep.subr.bf16.mxu0 0
      %1283 = vmatpush2.bf16.msra.mxu0 0
      %1284 = vmatprep.subr.bf16.mxu0 0
      %1285 = vmatpush2.bf16.msra.mxu0 0
      %1286 = vmatprep.subr.bf16.mxu0 0
      %1287 = vmatpush2.bf16.msra.mxu0 0
      %1288 = vmatprep.subr.bf16.mxu0 0
      %1289 = vmatpush2.bf16.msra.mxu0 0
      %1290 = vmatprep.mubr.bf16.mxu0 0
      %1291 = vmatmul.mubr.bf16.gmra.mxu0 %v771
      %v1292 = vpop.f32.mrf.mxu0
      %v1293 = vadd.f32 %v1132, %v1292
      %v1294 = vpop.f32.mrf.mxu0
      %v1295 = vpop.f32.mrf.mxu0
      %v1296 = vadd.f32 %v1135, %v1295
      %v1297 = vpop.f32.mrf.mxu0
      %1298 = vmatprep.mubr.bf16.mxu0 0
      %1299 = vmatmul.mubr.bf16.gmra.mxu0 %v774
      %v1300 = vpop.f32.mrf.mxu0
      %v1301 = vadd.f32 %v1140, %v1300
      %v1302 = vpop.f32.mrf.mxu0
      %v1303 = vpop.f32.mrf.mxu0
      %v1304 = vadd.f32 %v1143, %v1303
      %v1305 = vpop.f32.mrf.mxu0
      %1306 = vmatprep.mubr.bf16.mxu0 0
      %1307 = vmatmul.mubr.bf16.gmra.mxu0 %v777
      %v1308 = vpop.f32.mrf.mxu0
      %v1309 = vadd.f32 %v1148, %v1308
      %v1310 = vpop.f32.mrf.mxu0
      %v1311 = vpop.f32.mrf.mxu0
      %v1312 = vadd.f32 %v1151, %v1311
      %v1313 = vpop.f32.mrf.mxu0
      %1314 = vmatprep.mubr.bf16.mxu0 0
      %1315 = vmatmul.mubr.bf16.gmra.mxu0 %v780
      %v1316 = vpop.f32.mrf.mxu0
      %v1317 = vadd.f32 %v1156, %v1316
      %v1318 = vpop.f32.mrf.mxu0
      %v1319 = vpop.f32.mrf.mxu0
      %v1320 = vadd.f32 %v1159, %v1319
      %v1321 = vpop.f32.mrf.mxu0
      %1322 = vmatprep.mubr.bf16.mxu0 0
      %1323 = vmatmul.mubr.bf16.gmra.mxu0 %v783
      %v1324 = vpop.f32.mrf.mxu0
      %v1325 = vadd.f32 %v1164, %v1324
      %v1326 = vpop.f32.mrf.mxu0
      %v1327 = vpop.f32.mrf.mxu0
      %v1328 = vadd.f32 %v1167, %v1327
      %v1329 = vpop.f32.mrf.mxu0
      %1330 = vmatprep.mubr.bf16.mxu0 0
      %1331 = vmatmul.mubr.bf16.gmra.mxu0 %v786
      %v1332 = vpop.f32.mrf.mxu0
      %v1333 = vadd.f32 %v1172, %v1332
      %v1334 = vpop.f32.mrf.mxu0
      %v1335 = vpop.f32.mrf.mxu0
      %v1336 = vadd.f32 %v1175, %v1335
      %v1337 = vpop.f32.mrf.mxu0
      %1338 = vmatprep.mubr.bf16.mxu0 0
      %1339 = vmatmul.mubr.bf16.gmra.mxu0 %v789
      %v1340 = vpop.f32.mrf.mxu0
      %v1341 = vadd.f32 %v1180, %v1340
      %v1342 = vpop.f32.mrf.mxu0
      %v1343 = vpop.f32.mrf.mxu0
      %v1344 = vadd.f32 %v1183, %v1343
      %v1345 = vpop.f32.mrf.mxu0
      %1346 = vmatprep.mubr.bf16.mxu0 0
      %1347 = vmatmul.mubr.bf16.gmra.mxu0 %v792
      %v1348 = vpop.f32.mrf.mxu0
      %v1349 = vadd.f32 %v1188, %v1348
      %v1350 = vpop.f32.mrf.mxu0
      %v1351 = vpop.f32.mrf.mxu0
      %v1352 = vadd.f32 %v1191, %v1351
      %v1353 = vpop.f32.mrf.mxu0
      %1354 = vmatprep.mubr.bf16.mxu0 0
      %1355 = vmatmul.mubr.bf16.gmra.mxu0 %v795
      %v1356 = vpop.f32.mrf.mxu0
      %v1357 = vadd.f32 %v1196, %v1356
      %v1358 = vpop.f32.mrf.mxu0
      %v1359 = vpop.f32.mrf.mxu0
      %v1360 = vadd.f32 %v1199, %v1359
      %v1361 = vpop.f32.mrf.mxu0
      %1362 = vmatprep.mubr.bf16.mxu0 0
      %1363 = vmatmul.mubr.bf16.gmra.mxu0 %v798
      %v1364 = vpop.f32.mrf.mxu0
      %v1365 = vadd.f32 %v1204, %v1364
      %v1366 = vpop.f32.mrf.mxu0
      %v1367 = vpop.f32.mrf.mxu0
      %v1368 = vadd.f32 %v1207, %v1367
      %v1369 = vpop.f32.mrf.mxu0
      %1370 = vmatprep.mubr.bf16.mxu0 0
      %1371 = vmatmul.mubr.bf16.gmra.mxu0 %v801
      %v1372 = vpop.f32.mrf.mxu0
      %v1373 = vadd.f32 %v1212, %v1372
      %v1374 = vpop.f32.mrf.mxu0
      %v1375 = vpop.f32.mrf.mxu0
      %v1376 = vadd.f32 %v1215, %v1375
      %v1377 = vpop.f32.mrf.mxu0
      %1378 = vmatprep.mubr.bf16.mxu0 0
      %1379 = vmatmul.mubr.bf16.gmra.mxu0 %v804
      %v1380 = vpop.f32.mrf.mxu0
      %v1381 = vadd.f32 %v1220, %v1380
      %v1382 = vpop.f32.mrf.mxu0
      %v1383 = vpop.f32.mrf.mxu0
      %v1384 = vadd.f32 %v1223, %v1383
      %v1385 = vpop.f32.mrf.mxu0
      %1386 = vmatprep.mubr.bf16.mxu0 0
      %1387 = vmatmul.mubr.bf16.gmra.mxu0 %v807
      %v1388 = vpop.f32.mrf.mxu0
      %v1389 = vadd.f32 %v1228, %v1388
      %v1390 = vpop.f32.mrf.mxu0
      %v1391 = vpop.f32.mrf.mxu0
      %v1392 = vadd.f32 %v1231, %v1391
      %v1393 = vpop.f32.mrf.mxu0
      %1394 = vmatprep.mubr.bf16.mxu0 0
      %1395 = vmatmul.mubr.bf16.gmra.mxu0 %v810
      %v1396 = vpop.f32.mrf.mxu0
      %v1397 = vadd.f32 %v1236, %v1396
      %v1398 = vpop.f32.mrf.mxu0
      %v1399 = vpop.f32.mrf.mxu0
      %v1400 = vadd.f32 %v1239, %v1399
      %v1401 = vpop.f32.mrf.mxu0
      %1402 = vmatprep.mubr.bf16.mxu0 0
      %1403 = vmatmul.mubr.bf16.gmra.mxu0 %v813
      %v1404 = vpop.f32.mrf.mxu0
      %v1405 = vadd.f32 %v1244, %v1404
      %v1406 = vpop.f32.mrf.mxu0
      %v1407 = vpop.f32.mrf.mxu0
      %v1408 = vadd.f32 %v1247, %v1407
      %v1409 = vpop.f32.mrf.mxu0
      %1410 = vmatprep.mubr.bf16.mxu0 0
      %1411 = vmatmul.mubr.bf16.gmra.mxu0 %v902
      %v1412 = vpop.f32.mrf.mxu0
      %v1413 = vadd.f32 %v1252, %v1412
      %v1414 = vpop.f32.mrf.mxu0
      %v1415 = vpop.f32.mrf.mxu0
      %v1416 = vadd.f32 %v1255, %v1415
      %v1417 = vpop.f32.mrf.mxu0
      %1418 = vdwg.mxu0
      %v1467 = vunpack.c.l.b16 %v830
      %v1468 = vunpack.c.l.b16 %v831
      %v1469 = vunpack.c.l.b16 %v832
      %v1470 = vunpack.c.l.b16 %v833
      %v1471 = vunpack.c.l.b16 %v834
      %v1472 = vunpack.c.l.b16 %v835
      %v1473 = vunpack.c.l.b16 %v836
      %v1474 = vunpack.c.l.b16 %v837
      %v1475 = vunpack.c.l.b16 %v838
      %v1476 = vunpack.c.l.b16 %v839
      %v1477 = vunpack.c.l.b16 %v840
      %v1478 = vunpack.c.l.b16 %v841
      %v1479 = vunpack.c.l.b16 %v842
      %v1480 = vunpack.c.l.b16 %v843
      %v1481 = vunpack.c.l.b16 %v844
      %v1482 = vunpack.c.l.b16 %v845
      %v1483 = vunpack.c.l.b16 %v846
      %v1484 = vunpack.c.l.b16 %v847
      %v1485 = vunpack.c.l.b16 %v848
      %v1486 = vunpack.c.l.b16 %v849
      %v1487 = vunpack.c.l.b16 %v850
      %v1488 = vunpack.c.l.b16 %v851
      %v1489 = vunpack.c.l.b16 %v852
      %v1490 = vunpack.c.l.b16 %v853
      %v1491 = vunpack.c.l.b16 %v854
      %v1492 = vunpack.c.l.b16 %v855
      %v1493 = vunpack.c.l.b16 %v856
      %v1494 = vunpack.c.l.b16 %v857
      %v1495 = vunpack.c.l.b16 %v858
      %v1496 = vunpack.c.l.b16 %v859
      %v1497 = vunpack.c.l.b16 %v860
      %v1498 = vunpack.c.l.b16 %v861
      %v1499 = vunpack.c.l.b16 %v862
      %v1500 = vunpack.c.l.b16 %v863
      %v1501 = vunpack.c.l.b16 %v864
      %v1502 = vunpack.c.l.b16 %v865
      %v1503 = vunpack.c.l.b16 %v866
      %v1504 = vunpack.c.l.b16 %v867
      %v1505 = vunpack.c.l.b16 %v868
      %v1506 = vunpack.c.l.b16 %v869
      %v1507 = vunpack.c.l.b16 %v870
      %v1508 = vunpack.c.l.b16 %v871
      %v1509 = vunpack.c.l.b16 %v872
      %v1510 = vunpack.c.l.b16 %v873
      %v1511 = vunpack.c.l.b16 %v874
      %v1512 = vunpack.c.l.b16 %v875
      %v1513 = vunpack.c.l.b16 %v876
      %v1514 = vunpack.c.l.b16 %v877
      %v1515 = vpack.c.b16 %v1468, %v1467
      %v1516 = vpack.c.b16 %v1470, %v1469
      %v1517 = vpack.c.b16 %v1472, %v1471
      %v1518 = vpack.c.b16 %v1474, %v1473
      %v1519 = vpack.c.b16 %v1476, %v1475
      %v1520 = vpack.c.b16 %v1478, %v1477
      %v1521 = vpack.c.b16 %v1480, %v1479
      %v1522 = vpack.c.b16 %v1482, %v1481
      %v1523 = vpack.c.b16 %v1484, %v1483
      %v1524 = vpack.c.b16 %v1486, %v1485
      %v1525 = vpack.c.b16 %v1488, %v1487
      %v1526 = vpack.c.b16 %v1490, %v1489
      %v1527 = vpack.c.b16 %v1492, %v1491
      %v1528 = vpack.c.b16 %v1494, %v1493
      %v1529 = vpack.c.b16 %v1496, %v1495
      %v1530 = vpack.c.b16 %v1498, %v1497
      %v1531 = vpack.c.b16 %v1500, %v1499
      %v1532 = vpack.c.b16 %v1502, %v1501
      %v1533 = vpack.c.b16 %v1504, %v1503
      %v1534 = vpack.c.b16 %v1506, %v1505
      %v1535 = vpack.c.b16 %v1508, %v1507
      %v1536 = vpack.c.b16 %v1510, %v1509
      %v1537 = vpack.c.b16 %v1512, %v1511
      %v1538 = vpack.c.b16 %v1514, %v1513
      %1563 = vmatprep.subr.bf16.mxu0 0
      %1564 = vmatpush1.bf16.msra.mxu0 %v1522
      %1565 = vmatprep.subr.bf16.mxu0 0
      %1566 = vmatpush1.bf16.msra.mxu0 %v1521
      %1567 = vmatprep.subr.bf16.mxu0 0
      %1568 = vmatpush1.bf16.msra.mxu0 %v1520
      %1569 = vmatprep.subr.bf16.mxu0 0
      %1570 = vmatpush1.bf16.msra.mxu0 %v1519
      %1571 = vmatprep.subr.bf16.mxu0 0
      %1572 = vmatpush1.bf16.msra.mxu0 %v1518
      %1573 = vmatprep.subr.bf16.mxu0 0
      %1574 = vmatpush1.bf16.msra.mxu0 %v1517
      %1575 = vmatprep.subr.bf16.mxu0 0
      %1576 = vmatpush1.bf16.msra.mxu0 %v1516
      %1577 = vmatprep.subr.bf16.mxu0 0
      %1578 = vmatpush1.bf16.msra.mxu0 %v1515
      %1579 = vmatprep.subr.bf16.mxu0 0
      %1580 = vmatpush2.bf16.msra.mxu0 %v1530
      %1581 = vmatprep.subr.bf16.mxu0 0
      %1582 = vmatpush2.bf16.msra.mxu0 %v1529
      %1583 = vmatprep.subr.bf16.mxu0 0
      %1584 = vmatpush2.bf16.msra.mxu0 %v1528
      %1585 = vmatprep.subr.bf16.mxu0 0
      %1586 = vmatpush2.bf16.msra.mxu0 %v1527
      %1587 = vmatprep.subr.bf16.mxu0 0
      %1588 = vmatpush2.bf16.msra.mxu0 %v1526
      %1589 = vmatprep.subr.bf16.mxu0 0
      %1590 = vmatpush2.bf16.msra.mxu0 %v1525
      %1591 = vmatprep.subr.bf16.mxu0 0
      %1592 = vmatpush2.bf16.msra.mxu0 %v1524
      %1593 = vmatprep.subr.bf16.mxu0 0
      %1594 = vmatpush2.bf16.msra.mxu0 %v1523
      %1595 = vmatprep.mubr.bf16.mxu0 %v568
      %1596 = vmatmul.mubr.bf16.gmra.mxu0 %v476
      %v1597 = vpop.f32.mrf.mxu0
      %v1598 = vadd.f32 %v1293, %v1597
      %v1599 = vpop.f32.mrf.mxu0
      %v1600 = vpop.f32.mrf.mxu0
      %v1601 = vadd.f32 %v1296, %v1600
      %v1602 = vpop.f32.mrf.mxu0
      %1603 = vmatprep.mubr.bf16.mxu0 %v580
      %1604 = vmatmul.mubr.bf16.gmra.mxu0 %v477
      %v1605 = vpop.f32.mrf.mxu0
      %v1606 = vadd.f32 %v1301, %v1605
      %v1607 = vpop.f32.mrf.mxu0
      %v1608 = vpop.f32.mrf.mxu0
      %v1609 = vadd.f32 %v1304, %v1608
      %v1610 = vpop.f32.mrf.mxu0
      %1611 = vmatprep.mubr.bf16.mxu0 %v592
      %1612 = vmatmul.mubr.bf16.gmra.mxu0 %v478
      %v1613 = vpop.f32.mrf.mxu0
      %v1614 = vadd.f32 %v1309, %v1613
      %v1615 = vpop.f32.mrf.mxu0
      %v1616 = vpop.f32.mrf.mxu0
      %v1617 = vadd.f32 %v1312, %v1616
      %v1618 = vpop.f32.mrf.mxu0
      %1619 = vmatprep.mubr.bf16.mxu0 %v604
      %1620 = vmatmul.mubr.bf16.gmra.mxu0 %v479
      %v1621 = vpop.f32.mrf.mxu0
      %v1622 = vadd.f32 %v1317, %v1621
      %v1623 = vpop.f32.mrf.mxu0
      %v1624 = vpop.f32.mrf.mxu0
      %v1625 = vadd.f32 %v1320, %v1624
      %v1626 = vpop.f32.mrf.mxu0
      %1627 = vmatprep.mubr.bf16.mxu0 %v616
      %1628 = vmatmul.mubr.bf16.gmra.mxu0 %v480
      %v1629 = vpop.f32.mrf.mxu0
      %v1630 = vadd.f32 %v1325, %v1629
      %v1631 = vpop.f32.mrf.mxu0
      %v1632 = vpop.f32.mrf.mxu0
      %v1633 = vadd.f32 %v1328, %v1632
      %v1634 = vpop.f32.mrf.mxu0
      %1635 = vmatprep.mubr.bf16.mxu0 %v628
      %1636 = vmatmul.mubr.bf16.gmra.mxu0 %v481
      %v1637 = vpop.f32.mrf.mxu0
      %v1638 = vadd.f32 %v1333, %v1637
      %v1639 = vpop.f32.mrf.mxu0
      %v1640 = vpop.f32.mrf.mxu0
      %v1641 = vadd.f32 %v1336, %v1640
      %v1642 = vpop.f32.mrf.mxu0
      %1643 = vmatprep.mubr.bf16.mxu0 %v640
      %1644 = vmatmul.mubr.bf16.gmra.mxu0 %v482
      %v1645 = vpop.f32.mrf.mxu0
      %v1646 = vadd.f32 %v1341, %v1645
      %v1647 = vpop.f32.mrf.mxu0
      %v1648 = vpop.f32.mrf.mxu0
      %v1649 = vadd.f32 %v1344, %v1648
      %v1650 = vpop.f32.mrf.mxu0
      %1651 = vmatprep.mubr.bf16.mxu0 %v652
      %1652 = vmatmul.mubr.bf16.gmra.mxu0 %v483
      %v1653 = vpop.f32.mrf.mxu0
      %v1654 = vadd.f32 %v1349, %v1653
      %v1655 = vpop.f32.mrf.mxu0
      %v1656 = vpop.f32.mrf.mxu0
      %v1657 = vadd.f32 %v1352, %v1656
      %v1658 = vpop.f32.mrf.mxu0
      %1659 = vmatprep.mubr.bf16.mxu0 %v664
      %1660 = vmatmul.mubr.bf16.gmra.mxu0 %v484
      %v1661 = vpop.f32.mrf.mxu0
      %v1662 = vadd.f32 %v1357, %v1661
      %v1663 = vpop.f32.mrf.mxu0
      %v1664 = vpop.f32.mrf.mxu0
      %v1665 = vadd.f32 %v1360, %v1664
      %v1666 = vpop.f32.mrf.mxu0
      %1667 = vmatprep.mubr.bf16.mxu0 %v676
      %1668 = vmatmul.mubr.bf16.gmra.mxu0 %v485
      %v1669 = vpop.f32.mrf.mxu0
      %v1670 = vadd.f32 %v1365, %v1669
      %v1671 = vpop.f32.mrf.mxu0
      %v1672 = vpop.f32.mrf.mxu0
      %v1673 = vadd.f32 %v1368, %v1672
      %v1674 = vpop.f32.mrf.mxu0
      %1675 = vmatprep.mubr.bf16.mxu0 %v688
      %1676 = vmatmul.mubr.bf16.gmra.mxu0 %v486
      %v1677 = vpop.f32.mrf.mxu0
      %v1678 = vadd.f32 %v1373, %v1677
      %v1679 = vpop.f32.mrf.mxu0
      %v1680 = vpop.f32.mrf.mxu0
      %v1681 = vadd.f32 %v1376, %v1680
      %v1682 = vpop.f32.mrf.mxu0
      %1683 = vmatprep.mubr.bf16.mxu0 %v700
      %1684 = vmatmul.mubr.bf16.gmra.mxu0 %v487
      %v1685 = vpop.f32.mrf.mxu0
      %v1686 = vadd.f32 %v1381, %v1685
      %v1687 = vpop.f32.mrf.mxu0
      %v1688 = vpop.f32.mrf.mxu0
      %v1689 = vadd.f32 %v1384, %v1688
      %v1690 = vpop.f32.mrf.mxu0
      %1691 = vmatprep.mubr.bf16.mxu0 %v712
      %1692 = vmatmul.mubr.bf16.gmra.mxu0 %v488
      %v1693 = vpop.f32.mrf.mxu0
      %v1694 = vadd.f32 %v1389, %v1693
      %v1695 = vpop.f32.mrf.mxu0
      %v1696 = vpop.f32.mrf.mxu0
      %v1697 = vadd.f32 %v1392, %v1696
      %v1698 = vpop.f32.mrf.mxu0
      %1699 = vmatprep.mubr.bf16.mxu0 %v724
      %1700 = vmatmul.mubr.bf16.gmra.mxu0 %v489
      %v1701 = vpop.f32.mrf.mxu0
      %v1702 = vadd.f32 %v1397, %v1701
      %v1703 = vpop.f32.mrf.mxu0
      %v1704 = vpop.f32.mrf.mxu0
      %v1705 = vadd.f32 %v1400, %v1704
      %v1706 = vpop.f32.mrf.mxu0
      %1707 = vmatprep.mubr.bf16.mxu0 %v736
      %1708 = vmatmul.mubr.bf16.gmra.mxu0 %v490
      %v1709 = vpop.f32.mrf.mxu0
      %v1710 = vadd.f32 %v1405, %v1709
      %v1711 = vpop.f32.mrf.mxu0
      %v1712 = vpop.f32.mrf.mxu0
      %v1713 = vadd.f32 %v1408, %v1712
      %v1714 = vpop.f32.mrf.mxu0
      %1715 = vmatprep.mubr.bf16.mxu0 %v748
      %1716 = vmatmul.mubr.bf16.gmra.mxu0 %v491
      %v1717 = vpop.f32.mrf.mxu0
      %v1718 = vadd.f32 %v1413, %v1717
      %v1719 = vpop.f32.mrf.mxu0
      %v1720 = vpop.f32.mrf.mxu0
      %v1721 = vadd.f32 %v1416, %v1720
      %v1722 = vpop.f32.mrf.mxu0
      %1723 = vdwg.mxu0
      %1724 = vmatprep.subr.bf16.mxu0 0
      %1725 = vmatpush1.bf16.msra.mxu0 %v1538
      %1726 = vmatprep.subr.bf16.mxu0 0
      %1727 = vmatpush1.bf16.msra.mxu0 %v1537
      %1728 = vmatprep.subr.bf16.mxu0 0
      %1729 = vmatpush1.bf16.msra.mxu0 %v1536
      %1730 = vmatprep.subr.bf16.mxu0 0
      %1731 = vmatpush1.bf16.msra.mxu0 %v1535
      %1732 = vmatprep.subr.bf16.mxu0 0
      %1733 = vmatpush1.bf16.msra.mxu0 %v1534
      %1734 = vmatprep.subr.bf16.mxu0 0
      %1735 = vmatpush1.bf16.msra.mxu0 %v1533
      %1736 = vmatprep.subr.bf16.mxu0 0
      %1737 = vmatpush1.bf16.msra.mxu0 %v1532
      %1738 = vmatprep.subr.bf16.mxu0 0
      %1739 = vmatpush1.bf16.msra.mxu0 %v1531
      %1740 = vmatprep.subr.bf16.mxu0 0
      %1741 = vmatpush2.bf16.msra.mxu0 0
      %1742 = vmatprep.subr.bf16.mxu0 0
      %1743 = vmatpush2.bf16.msra.mxu0 0
      %1744 = vmatprep.subr.bf16.mxu0 0
      %1745 = vmatpush2.bf16.msra.mxu0 0
      %1746 = vmatprep.subr.bf16.mxu0 0
      %1747 = vmatpush2.bf16.msra.mxu0 0
      %1748 = vmatprep.subr.bf16.mxu0 0
      %1749 = vmatpush2.bf16.msra.mxu0 0
      %1750 = vmatprep.subr.bf16.mxu0 0
      %1751 = vmatpush2.bf16.msra.mxu0 0
      %1752 = vmatprep.subr.bf16.mxu0 0
      %1753 = vmatpush2.bf16.msra.mxu0 0
      %1754 = vmatprep.subr.bf16.mxu0 0
      %1755 = vmatpush2.bf16.msra.mxu0 0
      %1756 = vmatprep.mubr.bf16.mxu0 0
      %1757 = vmatmul.mubr.bf16.gmra.mxu0 %v768
      %v1758 = vpop.f32.mrf.mxu0
      %v1759 = vadd.f32 %v1598, %v1758
      %v1760 = vpop.f32.mrf.mxu0
      %v1761 = vpop.f32.mrf.mxu0
      %v1762 = vadd.f32 %v1601, %v1761
      %v1763 = vpop.f32.mrf.mxu0
      %1764 = vmatprep.mubr.bf16.mxu0 0
      %1765 = vmatmul.mubr.bf16.gmra.mxu0 %v771
      %v1766 = vpop.f32.mrf.mxu0
      %v1767 = vadd.f32 %v1606, %v1766
      %v1768 = vpop.f32.mrf.mxu0
      %v1769 = vpop.f32.mrf.mxu0
      %v1770 = vadd.f32 %v1609, %v1769
      %v1771 = vpop.f32.mrf.mxu0
      %1772 = vmatprep.mubr.bf16.mxu0 0
      %1773 = vmatmul.mubr.bf16.gmra.mxu0 %v774
      %v1774 = vpop.f32.mrf.mxu0
      %v1775 = vadd.f32 %v1614, %v1774
      %v1776 = vpop.f32.mrf.mxu0
      %v1777 = vpop.f32.mrf.mxu0
      %v1778 = vadd.f32 %v1617, %v1777
      %v1779 = vpop.f32.mrf.mxu0
      %1780 = vmatprep.mubr.bf16.mxu0 0
      %1781 = vmatmul.mubr.bf16.gmra.mxu0 %v777
      %v1782 = vpop.f32.mrf.mxu0
      %v1783 = vadd.f32 %v1622, %v1782
      %v1784 = vpop.f32.mrf.mxu0
      %v1785 = vpop.f32.mrf.mxu0
      %v1786 = vadd.f32 %v1625, %v1785
      %v1787 = vpop.f32.mrf.mxu0
      %1788 = vmatprep.mubr.bf16.mxu0 0
      %1789 = vmatmul.mubr.bf16.gmra.mxu0 %v780
      %v1790 = vpop.f32.mrf.mxu0
      %v1791 = vadd.f32 %v1630, %v1790
      %v1792 = vpop.f32.mrf.mxu0
      %v1793 = vpop.f32.mrf.mxu0
      %v1794 = vadd.f32 %v1633, %v1793
      %v1795 = vpop.f32.mrf.mxu0
      %1796 = vmatprep.mubr.bf16.mxu0 0
      %1797 = vmatmul.mubr.bf16.gmra.mxu0 %v783
      %v1798 = vpop.f32.mrf.mxu0
      %v1799 = vadd.f32 %v1638, %v1798
      %v1800 = vpop.f32.mrf.mxu0
      %v1801 = vpop.f32.mrf.mxu0
      %v1802 = vadd.f32 %v1641, %v1801
      %v1803 = vpop.f32.mrf.mxu0
      %1804 = vmatprep.mubr.bf16.mxu0 0
      %1805 = vmatmul.mubr.bf16.gmra.mxu0 %v786
      %v1806 = vpop.f32.mrf.mxu0
      %v1807 = vadd.f32 %v1646, %v1806
      %v1808 = vpop.f32.mrf.mxu0
      %v1809 = vpop.f32.mrf.mxu0
      %v1810 = vadd.f32 %v1649, %v1809
      %v1811 = vpop.f32.mrf.mxu0
      %1812 = vmatprep.mubr.bf16.mxu0 0
      %1813 = vmatmul.mubr.bf16.gmra.mxu0 %v789
      %v1814 = vpop.f32.mrf.mxu0
      %v1815 = vadd.f32 %v1654, %v1814
      %v1816 = vpop.f32.mrf.mxu0
      %v1817 = vpop.f32.mrf.mxu0
      %v1818 = vadd.f32 %v1657, %v1817
      %v1819 = vpop.f32.mrf.mxu0
      %1820 = vmatprep.mubr.bf16.mxu0 0
      %1821 = vmatmul.mubr.bf16.gmra.mxu0 %v792
      %v1822 = vpop.f32.mrf.mxu0
      %v1823 = vadd.f32 %v1662, %v1822
      %v1824 = vpop.f32.mrf.mxu0
      %v1825 = vpop.f32.mrf.mxu0
      %v1826 = vadd.f32 %v1665, %v1825
      %v1827 = vpop.f32.mrf.mxu0
      %1828 = vmatprep.mubr.bf16.mxu0 0
      %1829 = vmatmul.mubr.bf16.gmra.mxu0 %v795
      %v1830 = vpop.f32.mrf.mxu0
      %v1831 = vadd.f32 %v1670, %v1830
      %v1832 = vpop.f32.mrf.mxu0
      %v1833 = vpop.f32.mrf.mxu0
      %v1834 = vadd.f32 %v1673, %v1833
      %v1835 = vpop.f32.mrf.mxu0
      %1836 = vmatprep.mubr.bf16.mxu0 0
      %1837 = vmatmul.mubr.bf16.gmra.mxu0 %v798
      %v1838 = vpop.f32.mrf.mxu0
      %v1839 = vadd.f32 %v1678, %v1838
      %v1840 = vpop.f32.mrf.mxu0
      %v1841 = vpop.f32.mrf.mxu0
      %v1842 = vadd.f32 %v1681, %v1841
      %v1843 = vpop.f32.mrf.mxu0
      %1844 = vmatprep.mubr.bf16.mxu0 0
      %1845 = vmatmul.mubr.bf16.gmra.mxu0 %v801
      %v1846 = vpop.f32.mrf.mxu0
      %v1847 = vadd.f32 %v1686, %v1846
      %v1848 = vpop.f32.mrf.mxu0
      %v1849 = vpop.f32.mrf.mxu0
      %v1850 = vadd.f32 %v1689, %v1849
      %v1851 = vpop.f32.mrf.mxu0
      %1852 = vmatprep.mubr.bf16.mxu0 0
      %1853 = vmatmul.mubr.bf16.gmra.mxu0 %v804
      %v1854 = vpop.f32.mrf.mxu0
      %v1855 = vadd.f32 %v1694, %v1854
      %v1856 = vpop.f32.mrf.mxu0
      %v1857 = vpop.f32.mrf.mxu0
      %v1858 = vadd.f32 %v1697, %v1857
      %v1859 = vpop.f32.mrf.mxu0
      %1860 = vmatprep.mubr.bf16.mxu0 0
      %1861 = vmatmul.mubr.bf16.gmra.mxu0 %v807
      %v1862 = vpop.f32.mrf.mxu0
      %v1863 = vadd.f32 %v1702, %v1862
      %v1864 = vpop.f32.mrf.mxu0
      %v1865 = vpop.f32.mrf.mxu0
      %v1866 = vadd.f32 %v1705, %v1865
      %v1867 = vpop.f32.mrf.mxu0
      %1868 = vmatprep.mubr.bf16.mxu0 0
      %1869 = vmatmul.mubr.bf16.gmra.mxu0 %v810
      %v1870 = vpop.f32.mrf.mxu0
      %v1871 = vadd.f32 %v1710, %v1870
      %v1872 = vpop.f32.mrf.mxu0
      %v1873 = vpop.f32.mrf.mxu0
      %v1874 = vadd.f32 %v1713, %v1873
      %v1875 = vpop.f32.mrf.mxu0
      %1876 = vmatprep.mubr.bf16.mxu0 0
      %1877 = vmatmul.mubr.bf16.gmra.mxu0 %v813
      %v1878 = vpop.f32.mrf.mxu0
      %v1879 = vadd.f32 %v1718, %v1878
      %v1880 = vpop.f32.mrf.mxu0
      %v1881 = vpop.f32.mrf.mxu0
      %v1882 = vadd.f32 %v1721, %v1881
      %v1883 = vpop.f32.mrf.mxu0
      %1884 = vdwg.mxu0
      %v1887 = vunpack.c.l.b16 %v409
      %v1888 = vunpack.c.l.b16 %v410
      %v1889 = vpack.c.b16 %v1888, %v1887
      %v1892 = vunpack.c.l.b16 %v411
      %v1893 = vpack.c.b16 %v1892, %v1892
      %v1895 = vshrl.u32 %v1889, 16
      %v1897 = vshll.u32 %v1889, 16
      %v1899 = vrot.slane %v1897, 1
      %v1900 = vor.u32 %v1895, %v1899
      %v1902 = vshll.u32 %v1893, 16
      %v1904 = vrot.slane %v1902, 1
      %v1905 = vsel %vm556, %v1900, %v1904
      %v1907 = vrot.slane %v1889, 1
      %v1908 = vrot.slane %v1893, 1
      %v1909 = vsel %vm765, %v1907, %v1908
      %s1911 = scalar_lea.vmem %s1, 384
      %v1912 = vld [vmem:[%s1911] sm:$0xf]
      %v1913 = vld [vmem:[%s1911 + $0x4] sm:$0xf]
      %v1914 = vld [vmem:[%s1911 + $0x8] sm:$0xf]
      %v1915 = vld [vmem:[%s1911 + $0xc] sm:$0xf]
      %v1916 = vld [vmem:[%s1911 + $0x10] sm:$0xf]
      %v1917 = vld [vmem:[%s1911 + $0x14] sm:$0xf]
      %v1918 = vld [vmem:[%s1911 + $0x18] sm:$0xf]
      %v1919 = vld [vmem:[%s1911 + $0x1c] sm:$0xf]
      %v1920 = vld [vmem:[%s1911 + $0x20] sm:$0xf]
      %v1921 = vld [vmem:[%s1911 + $0x24] sm:$0xf]
      %v1922 = vld [vmem:[%s1911 + $0x28] sm:$0xf]
      %v1923 = vld [vmem:[%s1911 + $0x2c] sm:$0xf]
      %v1924 = vld [vmem:[%s1911 + $0x30] sm:$0xf]
      %v1925 = vld [vmem:[%s1911 + $0x34] sm:$0xf]
      %v1926 = vld [vmem:[%s1911 + $0x38] sm:$0xf]
      %v1927 = vld [vmem:[%s1911 + $0x3c] sm:$0xf]
      %v1928 = vld [vmem:[%s1911 + $0x40] sm:$0xf]
      %v1929 = vld [vmem:[%s1911 + $0x44] sm:$0xf]
      %v1930 = vld [vmem:[%s1911 + $0x48] sm:$0xf]
      %v1931 = vld [vmem:[%s1911 + $0x4c] sm:$0xf]
      %v1932 = vld [vmem:[%s1911 + $0x50] sm:$0xf]
      %v1933 = vld [vmem:[%s1911 + $0x54] sm:$0xf]
      %v1934 = vld [vmem:[%s1911 + $0x58] sm:$0xf]
      %v1935 = vld [vmem:[%s1911 + $0x5c] sm:$0xf]
      %v1936 = vld [vmem:[%s1911 + $0x60] sm:$0xf]
      %v1937 = vld [vmem:[%s1911 + $0x64] sm:$0xf]
      %v1938 = vld [vmem:[%s1911 + $0x68] sm:$0xf]
      %v1939 = vld [vmem:[%s1911 + $0x6c] sm:$0xf]
      %v1940 = vld [vmem:[%s1911 + $0x70] sm:$0xf]
      %v1941 = vld [vmem:[%s1911 + $0x74] sm:$0xf]
      %v1942 = vld [vmem:[%s1911 + $0x78] sm:$0xf]
      %v1943 = vld [vmem:[%s1911 + $0x7c] sm:$0xf]
      %v1944 = vld [vmem:[%s1911 + $0x80] sm:$0xf]
      %v1945 = vld [vmem:[%s1911 + $0x84] sm:$0xf]
      %v1946 = vld [vmem:[%s1911 + $0x88] sm:$0xf]
      %v1947 = vld [vmem:[%s1911 + $0x8c] sm:$0xf]
      %v1948 = vld [vmem:[%s1911 + $0x90] sm:$0xf]
      %v1949 = vld [vmem:[%s1911 + $0x94] sm:$0xf]
      %v1950 = vld [vmem:[%s1911 + $0x98] sm:$0xf]
      %v1951 = vld [vmem:[%s1911 + $0x9c] sm:$0xf]
      %v1952 = vld [vmem:[%s1911 + $0xa0] sm:$0xf]
      %v1953 = vld [vmem:[%s1911 + $0xa4] sm:$0xf]
      %v1954 = vld [vmem:[%s1911 + $0xa8] sm:$0xf]
      %v1955 = vld [vmem:[%s1911 + $0xac] sm:$0xf]
      %v1956 = vld [vmem:[%s1911 + $0xb0] sm:$0xf]
      %v1957 = vld [vmem:[%s1911 + $0xb4] sm:$0xf]
      %v1958 = vld [vmem:[%s1911 + $0xb8] sm:$0xf]
      %v1959 = vld [vmem:[%s1911 + $0xbc] sm:$0xf]
      %v2008 = vunpack.c.l.b16 %v1912
      %v2009 = vunpack.c.l.b16 %v1913
      %v2010 = vunpack.c.l.b16 %v1914
      %v2011 = vunpack.c.l.b16 %v1915
      %v2012 = vunpack.c.l.b16 %v1916
      %v2013 = vunpack.c.l.b16 %v1917
      %v2014 = vunpack.c.l.b16 %v1918
      %v2015 = vunpack.c.l.b16 %v1919
      %v2016 = vunpack.c.l.b16 %v1920
      %v2017 = vunpack.c.l.b16 %v1921
      %v2018 = vunpack.c.l.b16 %v1922
      %v2019 = vunpack.c.l.b16 %v1923
      %v2020 = vunpack.c.l.b16 %v1924
      %v2021 = vunpack.c.l.b16 %v1925
      %v2022 = vunpack.c.l.b16 %v1926
      %v2023 = vunpack.c.l.b16 %v1927
      %v2024 = vunpack.c.l.b16 %v1928
      %v2025 = vunpack.c.l.b16 %v1929
      %v2026 = vunpack.c.l.b16 %v1930
      %v2027 = vunpack.c.l.b16 %v1931
      %v2028 = vunpack.c.l.b16 %v1932
      %v2029 = vunpack.c.l.b16 %v1933
      %v2030 = vunpack.c.l.b16 %v1934
      %v2031 = vunpack.c.l.b16 %v1935
      %v2032 = vunpack.c.l.b16 %v1936
      %v2033 = vunpack.c.l.b16 %v1937
      %v2034 = vunpack.c.l.b16 %v1938
      %v2035 = vunpack.c.l.b16 %v1939
      %v2036 = vunpack.c.l.b16 %v1940
      %v2037 = vunpack.c.l.b16 %v1941
      %v2038 = vunpack.c.l.b16 %v1942
      %v2039 = vunpack.c.l.b16 %v1943
      %v2040 = vunpack.c.l.b16 %v1944
      %v2041 = vunpack.c.l.b16 %v1945
      %v2042 = vunpack.c.l.b16 %v1946
      %v2043 = vunpack.c.l.b16 %v1947
      %v2044 = vunpack.c.l.b16 %v1948
      %v2045 = vunpack.c.l.b16 %v1949
      %v2046 = vunpack.c.l.b16 %v1950
      %v2047 = vunpack.c.l.b16 %v1951
      %v2048 = vunpack.c.l.b16 %v1952
      %v2049 = vunpack.c.l.b16 %v1953
      %v2050 = vunpack.c.l.b16 %v1954
      %v2051 = vunpack.c.l.b16 %v1955
      %v2052 = vunpack.c.l.b16 %v1956
      %v2053 = vunpack.c.l.b16 %v1957
      %v2054 = vunpack.c.l.b16 %v1958
      %v2055 = vunpack.c.l.b16 %v1959
      %v2056 = vpack.c.b16 %v2009, %v2008
      %v2057 = vpack.c.b16 %v2011, %v2010
      %v2058 = vpack.c.b16 %v2013, %v2012
      %v2059 = vpack.c.b16 %v2015, %v2014
      %v2060 = vpack.c.b16 %v2017, %v2016
      %v2061 = vpack.c.b16 %v2019, %v2018
      %v2062 = vpack.c.b16 %v2021, %v2020
      %v2063 = vpack.c.b16 %v2023, %v2022
      %v2064 = vpack.c.b16 %v2025, %v2024
      %v2065 = vpack.c.b16 %v2027, %v2026
      %v2066 = vpack.c.b16 %v2029, %v2028
      %v2067 = vpack.c.b16 %v2031, %v2030
      %v2068 = vpack.c.b16 %v2033, %v2032
      %v2069 = vpack.c.b16 %v2035, %v2034
      %v2070 = vpack.c.b16 %v2037, %v2036
      %v2071 = vpack.c.b16 %v2039, %v2038
      %v2072 = vpack.c.b16 %v2041, %v2040
      %v2073 = vpack.c.b16 %v2043, %v2042
      %v2074 = vpack.c.b16 %v2045, %v2044
      %v2075 = vpack.c.b16 %v2047, %v2046
      %v2076 = vpack.c.b16 %v2049, %v2048
      %v2077 = vpack.c.b16 %v2051, %v2050
      %v2078 = vpack.c.b16 %v2053, %v2052
      %v2079 = vpack.c.b16 %v2055, %v2054
      %2104 = vmatprep.subr.bf16.mxu0 0
      %2105 = vmatpush1.bf16.msra.mxu0 %v2063
      %2106 = vmatprep.subr.bf16.mxu0 0
      %2107 = vmatpush1.bf16.msra.mxu0 %v2062
      %2108 = vmatprep.subr.bf16.mxu0 0
      %2109 = vmatpush1.bf16.msra.mxu0 %v2061
      %2110 = vmatprep.subr.bf16.mxu0 0
      %2111 = vmatpush1.bf16.msra.mxu0 %v2060
      %2112 = vmatprep.subr.bf16.mxu0 0
      %2113 = vmatpush1.bf16.msra.mxu0 %v2059
      %2114 = vmatprep.subr.bf16.mxu0 0
      %2115 = vmatpush1.bf16.msra.mxu0 %v2058
      %2116 = vmatprep.subr.bf16.mxu0 0
      %2117 = vmatpush1.bf16.msra.mxu0 %v2057
      %2118 = vmatprep.subr.bf16.mxu0 0
      %2119 = vmatpush1.bf16.msra.mxu0 %v2056
      %2120 = vmatprep.subr.bf16.mxu0 0
      %2121 = vmatpush2.bf16.msra.mxu0 %v2071
      %2122 = vmatprep.subr.bf16.mxu0 0
      %2123 = vmatpush2.bf16.msra.mxu0 %v2070
      %2124 = vmatprep.subr.bf16.mxu0 0
      %2125 = vmatpush2.bf16.msra.mxu0 %v2069
      %2126 = vmatprep.subr.bf16.mxu0 0
      %2127 = vmatpush2.bf16.msra.mxu0 %v2068
      %2128 = vmatprep.subr.bf16.mxu0 0
      %2129 = vmatpush2.bf16.msra.mxu0 %v2067
      %2130 = vmatprep.subr.bf16.mxu0 0
      %2131 = vmatpush2.bf16.msra.mxu0 %v2066
      %2132 = vmatprep.subr.bf16.mxu0 0
      %2133 = vmatpush2.bf16.msra.mxu0 %v2065
      %2134 = vmatprep.subr.bf16.mxu0 0
      %2135 = vmatpush2.bf16.msra.mxu0 %v2064
      %2136 = vmatprep.mubr.bf16.mxu0 %v592
      %2137 = vmatmul.mubr.bf16.gmra.mxu0 %v478
      %v2138 = vpop.f32.mrf.mxu0
      %v2139 = vadd.f32 0.0, %v2138
      %v2140 = vpop.f32.mrf.mxu0
      %v2141 = vpop.f32.mrf.mxu0
      %v2142 = vadd.f32 0.0, %v2141
      %v2143 = vpop.f32.mrf.mxu0
      %2144 = vmatprep.mubr.bf16.mxu0 %v604
      %2145 = vmatmul.mubr.bf16.gmra.mxu0 %v479
      %v2146 = vpop.f32.mrf.mxu0
      %v2147 = vadd.f32 0.0, %v2146
      %v2148 = vpop.f32.mrf.mxu0
      %v2149 = vpop.f32.mrf.mxu0
      %v2150 = vadd.f32 0.0, %v2149
      %v2151 = vpop.f32.mrf.mxu0
      %2152 = vmatprep.mubr.bf16.mxu0 %v616
      %2153 = vmatmul.mubr.bf16.gmra.mxu0 %v480
      %v2154 = vpop.f32.mrf.mxu0
      %v2155 = vadd.f32 0.0, %v2154
      %v2156 = vpop.f32.mrf.mxu0
      %v2157 = vpop.f32.mrf.mxu0
      %v2158 = vadd.f32 0.0, %v2157
      %v2159 = vpop.f32.mrf.mxu0
      %2160 = vmatprep.mubr.bf16.mxu0 %v628
      %2161 = vmatmul.mubr.bf16.gmra.mxu0 %v481
      %v2162 = vpop.f32.mrf.mxu0
      %v2163 = vadd.f32 0.0, %v2162
      %v2164 = vpop.f32.mrf.mxu0
      %v2165 = vpop.f32.mrf.mxu0
      %v2166 = vadd.f32 0.0, %v2165
      %v2167 = vpop.f32.mrf.mxu0
      %2168 = vmatprep.mubr.bf16.mxu0 %v640
      %2169 = vmatmul.mubr.bf16.gmra.mxu0 %v482
      %v2170 = vpop.f32.mrf.mxu0
      %v2171 = vadd.f32 0.0, %v2170
      %v2172 = vpop.f32.mrf.mxu0
      %v2173 = vpop.f32.mrf.mxu0
      %v2174 = vadd.f32 0.0, %v2173
      %v2175 = vpop.f32.mrf.mxu0
      %2176 = vmatprep.mubr.bf16.mxu0 %v652
      %2177 = vmatmul.mubr.bf16.gmra.mxu0 %v483
      %v2178 = vpop.f32.mrf.mxu0
      %v2179 = vadd.f32 0.0, %v2178
      %v2180 = vpop.f32.mrf.mxu0
      %v2181 = vpop.f32.mrf.mxu0
      %v2182 = vadd.f32 0.0, %v2181
      %v2183 = vpop.f32.mrf.mxu0
      %2184 = vmatprep.mubr.bf16.mxu0 %v664
      %2185 = vmatmul.mubr.bf16.gmra.mxu0 %v484
      %v2186 = vpop.f32.mrf.mxu0
      %v2187 = vadd.f32 0.0, %v2186
      %v2188 = vpop.f32.mrf.mxu0
      %v2189 = vpop.f32.mrf.mxu0
      %v2190 = vadd.f32 0.0, %v2189
      %v2191 = vpop.f32.mrf.mxu0
      %2192 = vmatprep.mubr.bf16.mxu0 %v676
      %2193 = vmatmul.mubr.bf16.gmra.mxu0 %v485
      %v2194 = vpop.f32.mrf.mxu0
      %v2195 = vadd.f32 0.0, %v2194
      %v2196 = vpop.f32.mrf.mxu0
      %v2197 = vpop.f32.mrf.mxu0
      %v2198 = vadd.f32 0.0, %v2197
      %v2199 = vpop.f32.mrf.mxu0
      %2200 = vmatprep.mubr.bf16.mxu0 %v688
      %2201 = vmatmul.mubr.bf16.gmra.mxu0 %v486
      %v2202 = vpop.f32.mrf.mxu0
      %v2203 = vadd.f32 0.0, %v2202
      %v2204 = vpop.f32.mrf.mxu0
      %v2205 = vpop.f32.mrf.mxu0
      %v2206 = vadd.f32 0.0, %v2205
      %v2207 = vpop.f32.mrf.mxu0
      %2208 = vmatprep.mubr.bf16.mxu0 %v700
      %2209 = vmatmul.mubr.bf16.gmra.mxu0 %v487
      %v2210 = vpop.f32.mrf.mxu0
      %v2211 = vadd.f32 0.0, %v2210
      %v2212 = vpop.f32.mrf.mxu0
      %v2213 = vpop.f32.mrf.mxu0
      %v2214 = vadd.f32 0.0, %v2213
      %v2215 = vpop.f32.mrf.mxu0
      %2216 = vmatprep.mubr.bf16.mxu0 %v712
      %2217 = vmatmul.mubr.bf16.gmra.mxu0 %v488
      %v2218 = vpop.f32.mrf.mxu0
      %v2219 = vadd.f32 0.0, %v2218
      %v2220 = vpop.f32.mrf.mxu0
      %v2221 = vpop.f32.mrf.mxu0
      %v2222 = vadd.f32 0.0, %v2221
      %v2223 = vpop.f32.mrf.mxu0
      %2224 = vmatprep.mubr.bf16.mxu0 %v724
      %2225 = vmatmul.mubr.bf16.gmra.mxu0 %v489
      %v2226 = vpop.f32.mrf.mxu0
      %v2227 = vadd.f32 0.0, %v2226
      %v2228 = vpop.f32.mrf.mxu0
      %v2229 = vpop.f32.mrf.mxu0
      %v2230 = vadd.f32 0.0, %v2229
      %v2231 = vpop.f32.mrf.mxu0
      %2232 = vmatprep.mubr.bf16.mxu0 %v736
      %2233 = vmatmul.mubr.bf16.gmra.mxu0 %v490
      %v2234 = vpop.f32.mrf.mxu0
      %v2235 = vadd.f32 0.0, %v2234
      %v2236 = vpop.f32.mrf.mxu0
      %v2237 = vpop.f32.mrf.mxu0
      %v2238 = vadd.f32 0.0, %v2237
      %v2239 = vpop.f32.mrf.mxu0
      %2240 = vmatprep.mubr.bf16.mxu0 %v748
      %2241 = vmatmul.mubr.bf16.gmra.mxu0 %v491
      %v2242 = vpop.f32.mrf.mxu0
      %v2243 = vadd.f32 0.0, %v2242
      %v2244 = vpop.f32.mrf.mxu0
      %v2245 = vpop.f32.mrf.mxu0
      %v2246 = vadd.f32 0.0, %v2245
      %v2247 = vpop.f32.mrf.mxu0
      %2248 = vmatprep.mubr.bf16.mxu0 %v898
      %2249 = vmatmul.mubr.bf16.gmra.mxu0 %v882
      %v2250 = vpop.f32.mrf.mxu0
      %v2251 = vadd.f32 0.0, %v2250
      %v2252 = vpop.f32.mrf.mxu0
      %v2253 = vpop.f32.mrf.mxu0
      %v2254 = vadd.f32 0.0, %v2253
      %v2255 = vpop.f32.mrf.mxu0
      %2256 = vmatprep.mubr.bf16.mxu0 %v1905
      %2257 = vmatmul.mubr.bf16.gmra.mxu0 %v1889
      %v2258 = vpop.f32.mrf.mxu0
      %v2259 = vadd.f32 0.0, %v2258
      %v2260 = vpop.f32.mrf.mxu0
      %v2261 = vpop.f32.mrf.mxu0
      %v2262 = vadd.f32 0.0, %v2261
      %v2263 = vpop.f32.mrf.mxu0
      %2264 = vdwg.mxu0
      %2265 = vmatprep.subr.bf16.mxu0 0
      %2266 = vmatpush1.bf16.msra.mxu0 %v2079
      %2267 = vmatprep.subr.bf16.mxu0 0
      %2268 = vmatpush1.bf16.msra.mxu0 %v2078
      %2269 = vmatprep.subr.bf16.mxu0 0
      %2270 = vmatpush1.bf16.msra.mxu0 %v2077
      %2271 = vmatprep.subr.bf16.mxu0 0
      %2272 = vmatpush1.bf16.msra.mxu0 %v2076
      %2273 = vmatprep.subr.bf16.mxu0 0
      %2274 = vmatpush1.bf16.msra.mxu0 %v2075
      %2275 = vmatprep.subr.bf16.mxu0 0
      %2276 = vmatpush1.bf16.msra.mxu0 %v2074
      %2277 = vmatprep.subr.bf16.mxu0 0
      %2278 = vmatpush1.bf16.msra.mxu0 %v2073
      %2279 = vmatprep.subr.bf16.mxu0 0
      %2280 = vmatpush1.bf16.msra.mxu0 %v2072
      %2281 = vmatprep.subr.bf16.mxu0 0
      %2282 = vmatpush2.bf16.msra.mxu0 0
      %2283 = vmatprep.subr.bf16.mxu0 0
      %2284 = vmatpush2.bf16.msra.mxu0 0
      %2285 = vmatprep.subr.bf16.mxu0 0
      %2286 = vmatpush2.bf16.msra.mxu0 0
      %2287 = vmatprep.subr.bf16.mxu0 0
      %2288 = vmatpush2.bf16.msra.mxu0 0
      %2289 = vmatprep.subr.bf16.mxu0 0
      %2290 = vmatpush2.bf16.msra.mxu0 0
      %2291 = vmatprep.subr.bf16.mxu0 0
      %2292 = vmatpush2.bf16.msra.mxu0 0
      %2293 = vmatprep.subr.bf16.mxu0 0
      %2294 = vmatpush2.bf16.msra.mxu0 0
      %2295 = vmatprep.subr.bf16.mxu0 0
      %2296 = vmatpush2.bf16.msra.mxu0 0
      %2297 = vmatprep.mubr.bf16.mxu0 0
      %2298 = vmatmul.mubr.bf16.gmra.mxu0 %v774
      %v2299 = vpop.f32.mrf.mxu0
      %v2300 = vadd.f32 %v2139, %v2299
      %v2301 = vpop.f32.mrf.mxu0
      %v2302 = vpop.f32.mrf.mxu0
      %v2303 = vadd.f32 %v2142, %v2302
      %v2304 = vpop.f32.mrf.mxu0
      %2305 = vmatprep.mubr.bf16.mxu0 0
      %2306 = vmatmul.mubr.bf16.gmra.mxu0 %v777
      %v2307 = vpop.f32.mrf.mxu0
      %v2308 = vadd.f32 %v2147, %v2307
      %v2309 = vpop.f32.mrf.mxu0
      %v2310 = vpop.f32.mrf.mxu0
      %v2311 = vadd.f32 %v2150, %v2310
      %v2312 = vpop.f32.mrf.mxu0
      %2313 = vmatprep.mubr.bf16.mxu0 0
      %2314 = vmatmul.mubr.bf16.gmra.mxu0 %v780
      %v2315 = vpop.f32.mrf.mxu0
      %v2316 = vadd.f32 %v2155, %v2315
      %v2317 = vpop.f32.mrf.mxu0
      %v2318 = vpop.f32.mrf.mxu0
      %v2319 = vadd.f32 %v2158, %v2318
      %v2320 = vpop.f32.mrf.mxu0
      %2321 = vmatprep.mubr.bf16.mxu0 0
      %2322 = vmatmul.mubr.bf16.gmra.mxu0 %v783
      %v2323 = vpop.f32.mrf.mxu0
      %v2324 = vadd.f32 %v2163, %v2323
      %v2325 = vpop.f32.mrf.mxu0
      %v2326 = vpop.f32.mrf.mxu0
      %v2327 = vadd.f32 %v2166, %v2326
      %v2328 = vpop.f32.mrf.mxu0
      %2329 = vmatprep.mubr.bf16.mxu0 0
      %2330 = vmatmul.mubr.bf16.gmra.mxu0 %v786
      %v2331 = vpop.f32.mrf.mxu0
      %v2332 = vadd.f32 %v2171, %v2331
      %v2333 = vpop.f32.mrf.mxu0
      %v2334 = vpop.f32.mrf.mxu0
      %v2335 = vadd.f32 %v2174, %v2334
      %v2336 = vpop.f32.mrf.mxu0
      %2337 = vmatprep.mubr.bf16.mxu0 0
      %2338 = vmatmul.mubr.bf16.gmra.mxu0 %v789
      %v2339 = vpop.f32.mrf.mxu0
      %v2340 = vadd.f32 %v2179, %v2339
      %v2341 = vpop.f32.mrf.mxu0
      %v2342 = vpop.f32.mrf.mxu0
      %v2343 = vadd.f32 %v2182, %v2342
      %v2344 = vpop.f32.mrf.mxu0
      %2345 = vmatprep.mubr.bf16.mxu0 0
      %2346 = vmatmul.mubr.bf16.gmra.mxu0 %v792
      %v2347 = vpop.f32.mrf.mxu0
      %v2348 = vadd.f32 %v2187, %v2347
      %v2349 = vpop.f32.mrf.mxu0
      %v2350 = vpop.f32.mrf.mxu0
      %v2351 = vadd.f32 %v2190, %v2350
      %v2352 = vpop.f32.mrf.mxu0
      %2353 = vmatprep.mubr.bf16.mxu0 0
      %2354 = vmatmul.mubr.bf16.gmra.mxu0 %v795
      %v2355 = vpop.f32.mrf.mxu0
      %v2356 = vadd.f32 %v2195, %v2355
      %v2357 = vpop.f32.mrf.mxu0
      %v2358 = vpop.f32.mrf.mxu0
      %v2359 = vadd.f32 %v2198, %v2358
      %v2360 = vpop.f32.mrf.mxu0
      %2361 = vmatprep.mubr.bf16.mxu0 0
      %2362 = vmatmul.mubr.bf16.gmra.mxu0 %v798
      %v2363 = vpop.f32.mrf.mxu0
      %v2364 = vadd.f32 %v2203, %v2363
      %v2365 = vpop.f32.mrf.mxu0
      %v2366 = vpop.f32.mrf.mxu0
      %v2367 = vadd.f32 %v2206, %v2366
      %v2368 = vpop.f32.mrf.mxu0
      %2369 = vmatprep.mubr.bf16.mxu0 0
      %2370 = vmatmul.mubr.bf16.gmra.mxu0 %v801
      %v2371 = vpop.f32.mrf.mxu0
      %v2372 = vadd.f32 %v2211, %v2371
      %v2373 = vpop.f32.mrf.mxu0
      %v2374 = vpop.f32.mrf.mxu0
      %v2375 = vadd.f32 %v2214, %v2374
      %v2376 = vpop.f32.mrf.mxu0
      %2377 = vmatprep.mubr.bf16.mxu0 0
      %2378 = vmatmul.mubr.bf16.gmra.mxu0 %v804
      %v2379 = vpop.f32.mrf.mxu0
      %v2380 = vadd.f32 %v2219, %v2379
      %v2381 = vpop.f32.mrf.mxu0
      %v2382 = vpop.f32.mrf.mxu0
      %v2383 = vadd.f32 %v2222, %v2382
      %v2384 = vpop.f32.mrf.mxu0
      %2385 = vmatprep.mubr.bf16.mxu0 0
      %2386 = vmatmul.mubr.bf16.gmra.mxu0 %v807
      %v2387 = vpop.f32.mrf.mxu0
      %v2388 = vadd.f32 %v2227, %v2387
      %v2389 = vpop.f32.mrf.mxu0
      %v2390 = vpop.f32.mrf.mxu0
      %v2391 = vadd.f32 %v2230, %v2390
      %v2392 = vpop.f32.mrf.mxu0
      %2393 = vmatprep.mubr.bf16.mxu0 0
      %2394 = vmatmul.mubr.bf16.gmra.mxu0 %v810
      %v2395 = vpop.f32.mrf.mxu0
      %v2396 = vadd.f32 %v2235, %v2395
      %v2397 = vpop.f32.mrf.mxu0
      %v2398 = vpop.f32.mrf.mxu0
      %v2399 = vadd.f32 %v2238, %v2398
      %v2400 = vpop.f32.mrf.mxu0
      %2401 = vmatprep.mubr.bf16.mxu0 0
      %2402 = vmatmul.mubr.bf16.gmra.mxu0 %v813
      %v2403 = vpop.f32.mrf.mxu0
      %v2404 = vadd.f32 %v2243, %v2403
      %v2405 = vpop.f32.mrf.mxu0
      %v2406 = vpop.f32.mrf.mxu0
      %v2407 = vadd.f32 %v2246, %v2406
      %v2408 = vpop.f32.mrf.mxu0
      %2409 = vmatprep.mubr.bf16.mxu0 0
      %2410 = vmatmul.mubr.bf16.gmra.mxu0 %v902
      %v2411 = vpop.f32.mrf.mxu0
      %v2412 = vadd.f32 %v2251, %v2411
      %v2413 = vpop.f32.mrf.mxu0
      %v2414 = vpop.f32.mrf.mxu0
      %v2415 = vadd.f32 %v2254, %v2414
      %v2416 = vpop.f32.mrf.mxu0
      %2417 = vmatprep.mubr.bf16.mxu0 0
      %2418 = vmatmul.mubr.bf16.gmra.mxu0 %v1909
      %v2419 = vpop.f32.mrf.mxu0
      %v2420 = vadd.f32 %v2259, %v2419
      %v2421 = vpop.f32.mrf.mxu0
      %v2422 = vpop.f32.mrf.mxu0
      %v2423 = vadd.f32 %v2262, %v2422
      %v2424 = vpop.f32.mrf.mxu0
      %2425 = vdwg.mxu0
      %v2426 = vadd.f32 %v1759, %v2300
      %v2427 = vadd.f32 %v1762, %v2303
      %v2428 = vadd.f32 %v1767, %v2308
      %v2429 = vadd.f32 %v1770, %v2311
      %v2430 = vadd.f32 %v1775, %v2316
      %v2431 = vadd.f32 %v1778, %v2319
      %v2432 = vadd.f32 %v1783, %v2324
      %v2433 = vadd.f32 %v1786, %v2327
      %v2434 = vadd.f32 %v1791, %v2332
      %v2435 = vadd.f32 %v1794, %v2335
      %v2436 = vadd.f32 %v1799, %v2340
      %v2437 = vadd.f32 %v1802, %v2343
      %v2438 = vadd.f32 %v1807, %v2348
      %v2439 = vadd.f32 %v1810, %v2351
      %v2440 = vadd.f32 %v1815, %v2356
      %v2441 = vadd.f32 %v1818, %v2359
      %v2442 = vadd.f32 %v1823, %v2364
      %v2443 = vadd.f32 %v1826, %v2367
      %v2444 = vadd.f32 %v1831, %v2372
      %v2445 = vadd.f32 %v1834, %v2375
      %v2446 = vadd.f32 %v1839, %v2380
      %v2447 = vadd.f32 %v1842, %v2383
      %v2448 = vadd.f32 %v1847, %v2388
      %v2449 = vadd.f32 %v1850, %v2391
      %v2450 = vadd.f32 %v1855, %v2396
      %v2451 = vadd.f32 %v1858, %v2399
      %v2452 = vadd.f32 %v1863, %v2404
      %v2453 = vadd.f32 %v1866, %v2407
      %v2454 = vadd.f32 %v1871, %v2412
      %v2455 = vadd.f32 %v1874, %v2415
      %v2456 = vadd.f32 %v1879, %v2420
      %v2457 = vadd.f32 %v1882, %v2423
      %v2458 = vld [vmem:[%s2] sm:$0x1]
      %v2460 = vlaneseq
      %v2461 = vshrl.u32 %v2460, 7
      %v2462 = vsub.s32 0, %v2461
      %v2463 = vrot.slane %v2458, %v2462
      %v2465 = vmul.f32 %v2426, %v2463
      %v2466 = vmul.f32 %v2427, %v2463
      %v2467 = vmul.f32 %v2428, %v2463
      %v2468 = vmul.f32 %v2429, %v2463
      %v2469 = vmul.f32 %v2430, %v2463
      %v2470 = vmul.f32 %v2431, %v2463
      %v2471 = vmul.f32 %v2432, %v2463
      %v2472 = vmul.f32 %v2433, %v2463
      %v2473 = vmul.f32 %v2434, %v2463
      %v2474 = vmul.f32 %v2435, %v2463
      %v2475 = vmul.f32 %v2436, %v2463
      %v2476 = vmul.f32 %v2437, %v2463
      %v2477 = vmul.f32 %v2438, %v2463
      %v2478 = vmul.f32 %v2439, %v2463
      %v2479 = vmul.f32 %v2440, %v2463
      %v2480 = vmul.f32 %v2441, %v2463
      %v2481 = vmul.f32 %v2442, %v2463
      %v2482 = vmul.f32 %v2443, %v2463
      %v2483 = vmul.f32 %v2444, %v2463
      %v2484 = vmul.f32 %v2445, %v2463
      %v2485 = vmul.f32 %v2446, %v2463
      %v2486 = vmul.f32 %v2447, %v2463
      %v2487 = vmul.f32 %v2448, %v2463
      %v2488 = vmul.f32 %v2449, %v2463
      %v2489 = vmul.f32 %v2450, %v2463
      %v2490 = vmul.f32 %v2451, %v2463
      %v2491 = vmul.f32 %v2452, %v2463
      %v2492 = vmul.f32 %v2453, %v2463
      %v2493 = vmul.f32 %v2454, %v2463
      %v2494 = vmul.f32 %v2455, %v2463
      %v2495 = vmul.f32 %v2456, %v2463
      %v2496 = vmul.f32 %v2457, %v2463
      %v2497 = vld [vmem:[%s3] sm:$0x1]
      %v2499 = vlaneseq
      %v2500 = vshrl.u32 %v2499, 7
      %v2501 = vsub.s32 0, %v2500
      %v2502 = vrot.slane %v2497, %v2501
      %v2504 = vadd.f32 %v2465, %v2502
      %v2505 = vadd.f32 %v2466, %v2502
      %v2506 = vadd.f32 %v2467, %v2502
      %v2507 = vadd.f32 %v2468, %v2502
      %v2508 = vadd.f32 %v2469, %v2502
      %v2509 = vadd.f32 %v2470, %v2502
      %v2510 = vadd.f32 %v2471, %v2502
      %v2511 = vadd.f32 %v2472, %v2502
      %v2512 = vadd.f32 %v2473, %v2502
      %v2513 = vadd.f32 %v2474, %v2502
      %v2514 = vadd.f32 %v2475, %v2502
      %v2515 = vadd.f32 %v2476, %v2502
      %v2516 = vadd.f32 %v2477, %v2502
      %v2517 = vadd.f32 %v2478, %v2502
      %v2518 = vadd.f32 %v2479, %v2502
      %v2519 = vadd.f32 %v2480, %v2502
      %v2520 = vadd.f32 %v2481, %v2502
      %v2521 = vadd.f32 %v2482, %v2502
      %v2522 = vadd.f32 %v2483, %v2502
      %v2523 = vadd.f32 %v2484, %v2502
      %v2524 = vadd.f32 %v2485, %v2502
      %v2525 = vadd.f32 %v2486, %v2502
      %v2526 = vadd.f32 %v2487, %v2502
      %v2527 = vadd.f32 %v2488, %v2502
      %v2528 = vadd.f32 %v2489, %v2502
      %v2529 = vadd.f32 %v2490, %v2502
      %v2530 = vadd.f32 %v2491, %v2502
      %v2531 = vadd.f32 %v2492, %v2502
      %v2532 = vadd.f32 %v2493, %v2502
      %v2533 = vadd.f32 %v2494, %v2502
      %v2534 = vadd.f32 %v2495, %v2502
      %v2535 = vadd.f32 %v2496, %v2502
      %v2536 = vmax.f32 %v2504, 0.0
      %v2537 = vmax.f32 %v2505, 0.0
      %v2538 = vmax.f32 %v2506, 0.0
      %v2539 = vmax.f32 %v2507, 0.0
      %v2540 = vmax.f32 %v2508, 0.0
      %v2541 = vmax.f32 %v2509, 0.0
      %v2542 = vmax.f32 %v2510, 0.0
      %v2543 = vmax.f32 %v2511, 0.0
      %v2544 = vmax.f32 %v2512, 0.0
      %v2545 = vmax.f32 %v2513, 0.0
      %v2546 = vmax.f32 %v2514, 0.0
      %v2547 = vmax.f32 %v2515, 0.0
      %v2548 = vmax.f32 %v2516, 0.0
      %v2549 = vmax.f32 %v2517, 0.0
      %v2550 = vmax.f32 %v2518, 0.0
      %v2551 = vmax.f32 %v2519, 0.0
      %v2552 = vmax.f32 %v2520, 0.0
      %v2553 = vmax.f32 %v2521, 0.0
      %v2554 = vmax.f32 %v2522, 0.0
      %v2555 = vmax.f32 %v2523, 0.0
      %v2556 = vmax.f32 %v2524, 0.0
      %v2557 = vmax.f32 %v2525, 0.0
      %v2558 = vmax.f32 %v2526, 0.0
      %v2559 = vmax.f32 %v2527, 0.0
      %v2560 = vmax.f32 %v2528, 0.0
      %v2561 = vmax.f32 %v2529, 0.0
      %v2562 = vmax.f32 %v2530, 0.0
      %v2563 = vmax.f32 %v2531, 0.0
      %v2564 = vmax.f32 %v2532, 0.0
      %v2565 = vmax.f32 %v2533, 0.0
      %v2566 = vmax.f32 %v2534, 0.0
      %v2567 = vmax.f32 %v2535, 0.0
      %v2568 = vpack.c.bf16 %v2537, %v2536
      %v2569 = vpack.c.bf16 %v2539, %v2538
      %v2570 = vpack.c.bf16 %v2541, %v2540
      %v2571 = vpack.c.bf16 %v2543, %v2542
      %v2572 = vpack.c.bf16 %v2545, %v2544
      %v2573 = vpack.c.bf16 %v2547, %v2546
      %v2574 = vpack.c.bf16 %v2549, %v2548
      %v2575 = vpack.c.bf16 %v2551, %v2550
      %v2576 = vpack.c.bf16 %v2553, %v2552
      %v2577 = vpack.c.bf16 %v2555, %v2554
      %v2578 = vpack.c.bf16 %v2557, %v2556
      %v2579 = vpack.c.bf16 %v2559, %v2558
      %v2580 = vpack.c.bf16 %v2561, %v2560
      %v2581 = vpack.c.bf16 %v2563, %v2562
      %v2582 = vpack.c.bf16 %v2565, %v2564
      %v2583 = vpack.c.bf16 %v2567, %v2566
      %v2600 = vunpack.c.l.b16 %v2568
      %v2601 = vunpack.c.h.b16 %v2568
      %v2602 = vunpack.c.l.b16 %v2569
      %v2603 = vunpack.c.h.b16 %v2569
      %v2604 = vunpack.c.l.b16 %v2570
      %v2605 = vunpack.c.h.b16 %v2570
      %v2606 = vunpack.c.l.b16 %v2571
      %v2607 = vunpack.c.h.b16 %v2571
      %v2608 = vunpack.c.l.b16 %v2572
      %v2609 = vunpack.c.h.b16 %v2572
      %v2610 = vunpack.c.l.b16 %v2573
      %v2611 = vunpack.c.h.b16 %v2573
      %v2612 = vunpack.c.l.b16 %v2574
      %v2613 = vunpack.c.h.b16 %v2574
      %v2614 = vunpack.c.l.b16 %v2575
      %v2615 = vunpack.c.h.b16 %v2575
      %v2616 = vunpack.c.l.b16 %v2576
      %v2617 = vunpack.c.h.b16 %v2576
      %v2618 = vunpack.c.l.b16 %v2577
      %v2619 = vunpack.c.h.b16 %v2577
      %v2620 = vunpack.c.l.b16 %v2578
      %v2621 = vunpack.c.h.b16 %v2578
      %v2622 = vunpack.c.l.b16 %v2579
      %v2623 = vunpack.c.h.b16 %v2579
      %v2624 = vunpack.c.l.b16 %v2580
      %v2625 = vunpack.c.h.b16 %v2580
      %v2626 = vunpack.c.l.b16 %v2581
      %v2627 = vunpack.c.h.b16 %v2581
      %v2628 = vunpack.c.l.b16 %v2582
      %v2629 = vunpack.c.h.b16 %v2582
      %v2630 = vunpack.c.l.b16 %v2583
      %v2631 = vunpack.c.h.b16 %v2583
      %v2632 = vpack.c.b16 %v2600, %v2600
      %v2633 = vpack.c.b16 %v2601, %v2601
      %v2634 = vpack.c.b16 %v2602, %v2602
      %v2635 = vpack.c.b16 %v2603, %v2603
      %v2636 = vpack.c.b16 %v2604, %v2604
      %v2637 = vpack.c.b16 %v2605, %v2605
      %v2638 = vpack.c.b16 %v2606, %v2606
      %v2639 = vpack.c.b16 %v2607, %v2607
      %v2640 = vpack.c.b16 %v2608, %v2608
      %v2641 = vpack.c.b16 %v2609, %v2609
      %v2642 = vpack.c.b16 %v2610, %v2610
      %v2643 = vpack.c.b16 %v2611, %v2611
      %v2644 = vpack.c.b16 %v2612, %v2612
      %v2645 = vpack.c.b16 %v2613, %v2613
      %v2646 = vpack.c.b16 %v2614, %v2614
      %v2647 = vpack.c.b16 %v2615, %v2615
      %v2648 = vpack.c.b16 %v2616, %v2616
      %v2649 = vpack.c.b16 %v2617, %v2617
      %v2650 = vpack.c.b16 %v2618, %v2618
      %v2651 = vpack.c.b16 %v2619, %v2619
      %v2652 = vpack.c.b16 %v2620, %v2620
      %v2653 = vpack.c.b16 %v2621, %v2621
      %v2654 = vpack.c.b16 %v2622, %v2622
      %v2655 = vpack.c.b16 %v2623, %v2623
      %v2656 = vpack.c.b16 %v2624, %v2624
      %v2657 = vpack.c.b16 %v2625, %v2625
      %v2658 = vpack.c.b16 %v2626, %v2626
      %v2659 = vpack.c.b16 %v2627, %v2627
      %v2660 = vpack.c.b16 %v2628, %v2628
      %v2661 = vpack.c.b16 %v2629, %v2629
      %v2662 = vpack.c.b16 %v2630, %v2630
      %v2663 = vpack.c.b16 %v2631, %v2631
      %2696 = vst [vmem:[%s341] sm:$0xf] %v2632
      %2697 = vst [vmem:[%s341 + $0x4] sm:$0xf] %v2633
      %2698 = vst [vmem:[%s341 + $0x8] sm:$0xf] %v2634
      %2699 = vst [vmem:[%s341 + $0xc] sm:$0xf] %v2635
      %2700 = vst [vmem:[%s341 + $0x10] sm:$0xf] %v2636
      %2701 = vst [vmem:[%s341 + $0x14] sm:$0xf] %v2637
      %2702 = vst [vmem:[%s341 + $0x18] sm:$0xf] %v2638
      %2703 = vst [vmem:[%s341 + $0x1c] sm:$0xf] %v2639
      %2704 = vst [vmem:[%s341 + $0x20] sm:$0xf] %v2640
      %2705 = vst [vmem:[%s341 + $0x24] sm:$0xf] %v2641
      %2706 = vst [vmem:[%s341 + $0x28] sm:$0xf] %v2642
      %2707 = vst [vmem:[%s341 + $0x2c] sm:$0xf] %v2643
      %2708 = vst [vmem:[%s341 + $0x30] sm:$0xf] %v2644
      %2709 = vst [vmem:[%s341 + $0x34] sm:$0xf] %v2645
      %2710 = vst [vmem:[%s341 + $0x38] sm:$0xf] %v2646
      %2711 = vst [vmem:[%s341 + $0x3c] sm:$0xf] %v2647
      %2712 = vst [vmem:[%s341 + $0x40] sm:$0xf] %v2648
      %2713 = vst [vmem:[%s341 + $0x44] sm:$0xf] %v2649
      %2714 = vst [vmem:[%s341 + $0x48] sm:$0xf] %v2650
      %2715 = vst [vmem:[%s341 + $0x4c] sm:$0xf] %v2651
      %2716 = vst [vmem:[%s341 + $0x50] sm:$0xf] %v2652
      %2717 = vst [vmem:[%s341 + $0x54] sm:$0xf] %v2653
      %2718 = vst [vmem:[%s341 + $0x58] sm:$0xf] %v2654
      %2719 = vst [vmem:[%s341 + $0x5c] sm:$0xf] %v2655
      %2720 = vst [vmem:[%s341 + $0x60] sm:$0xf] %v2656
      %2721 = vst [vmem:[%s341 + $0x64] sm:$0xf] %v2657
      %2722 = vst [vmem:[%s341 + $0x68] sm:$0xf] %v2658
      %2723 = vst [vmem:[%s341 + $0x6c] sm:$0xf] %v2659
      %2724 = vst [vmem:[%s341 + $0x70] sm:$0xf] %v2660
      %2725 = vst [vmem:[%s341 + $0x74] sm:$0xf] %v2661
      %2726 = vst [vmem:[%s341 + $0x78] sm:$0xf] %v2662
      %2727 = vst [vmem:[%s341 + $0x7c] sm:$0xf] %v2663
      %vm2728 = vsmask.f32 3328
      %vm2729 = vsmask.f32 7440
      %vm2730 = vmor %vm2728, %vm2729
      %v2732 = vshrl.u32 %v361, 16
      %v2734 = vrot.slane %v2732, 4
      %v2735 = vshll.u32 %v361, 16
      %v2737 = vrot.slane %v2735, 5
      %v2738 = vor.u32 %v2734, %v2737
      %v2739 = vrot.slane %v2738, 4
      %v2741 = vshll.u32 %v362, 16
      %v2743 = vrot.slane %v2741, 5
      %v2744 = vsel %vm2730, %v2739, %v2743
      %v2745 = vshrl.u32 %v362, 16
      %v2747 = vrot.slane %v2745, 4
      %v2748 = vor.u32 %v2747, %v2743
      %v2749 = vrot.slane %v2748, 4
      %v2751 = vshll.u32 %v363, 16
      %v2753 = vrot.slane %v2751, 5
      %v2754 = vsel %vm2730, %v2749, %v2753
      %v2756 = vshrl.u32 %v364, 16
      %v2758 = vrot.slane %v2756, 4
      %v2759 = vshll.u32 %v364, 16
      %v2761 = vrot.slane %v2759, 5
      %v2762 = vor.u32 %v2758, %v2761
      %v2763 = vrot.slane %v2762, 4
      %v2765 = vshll.u32 %v365, 16
      %v2767 = vrot.slane %v2765, 5
      %v2768 = vsel %vm2730, %v2763, %v2767
      %v2769 = vshrl.u32 %v365, 16
      %v2771 = vrot.slane %v2769, 4
      %v2772 = vor.u32 %v2771, %v2767
      %v2773 = vrot.slane %v2772, 4
      %v2775 = vshll.u32 %v366, 16
      %v2777 = vrot.slane %v2775, 5
      %v2778 = vsel %vm2730, %v2773, %v2777
      %v2780 = vshrl.u32 %v367, 16
      %v2782 = vrot.slane %v2780, 4
      %v2783 = vshll.u32 %v367, 16
      %v2785 = vrot.slane %v2783, 5
      %v2786 = vor.u32 %v2782, %v2785
      %v2787 = vrot.slane %v2786, 4
      %v2789 = vshll.u32 %v368, 16
      %v2791 = vrot.slane %v2789, 5
      %v2792 = vsel %vm2730, %v2787, %v2791
      %v2793 = vshrl.u32 %v368, 16
      %v2795 = vrot.slane %v2793, 4
      %v2796 = vor.u32 %v2795, %v2791
      %v2797 = vrot.slane %v2796, 4
      %v2799 = vshll.u32 %v369, 16
      %v2801 = vrot.slane %v2799, 5
      %v2802 = vsel %vm2730, %v2797, %v2801
      %v2804 = vshrl.u32 %v370, 16
      %v2806 = vrot.slane %v2804, 4
      %v2807 = vshll.u32 %v370, 16
      %v2809 = vrot.slane %v2807, 5
      %v2810 = vor.u32 %v2806, %v2809
      %v2811 = vrot.slane %v2810, 4
      %v2813 = vshll.u32 %v371, 16
      %v2815 = vrot.slane %v2813, 5
      %v2816 = vsel %vm2730, %v2811, %v2815
      %v2817 = vshrl.u32 %v371, 16
      %v2819 = vrot.slane %v2817, 4
      %v2820 = vor.u32 %v2819, %v2815
      %v2821 = vrot.slane %v2820, 4
      %v2823 = vshll.u32 %v372, 16
      %v2825 = vrot.slane %v2823, 5
      %v2826 = vsel %vm2730, %v2821, %v2825
      %v2828 = vshrl.u32 %v373, 16
      %v2830 = vrot.slane %v2828, 4
      %v2831 = vshll.u32 %v373, 16
      %v2833 = vrot.slane %v2831, 5
      %v2834 = vor.u32 %v2830, %v2833
      %v2835 = vrot.slane %v2834, 4
      %v2837 = vshll.u32 %v374, 16
      %v2839 = vrot.slane %v2837, 5
      %v2840 = vsel %vm2730, %v2835, %v2839
      %v2841 = vshrl.u32 %v374, 16
      %v2843 = vrot.slane %v2841, 4
      %v2844 = vor.u32 %v2843, %v2839
      %v2845 = vrot.slane %v2844, 4
      %v2847 = vshll.u32 %v375, 16
      %v2849 = vrot.slane %v2847, 5
      %v2850 = vsel %vm2730, %v2845, %v2849
      %v2852 = vshrl.u32 %v376, 16
      %v2854 = vrot.slane %v2852, 4
      %v2855 = vshll.u32 %v376, 16
      %v2857 = vrot.slane %v2855, 5
      %v2858 = vor.u32 %v2854, %v2857
      %v2859 = vrot.slane %v2858, 4
      %v2861 = vshll.u32 %v377, 16
      %v2863 = vrot.slane %v2861, 5
      %v2864 = vsel %vm2730, %v2859, %v2863
      %v2865 = vshrl.u32 %v377, 16
      %v2867 = vrot.slane %v2865, 4
      %v2868 = vor.u32 %v2867, %v2863
      %v2869 = vrot.slane %v2868, 4
      %v2871 = vshll.u32 %v378, 16
      %v2873 = vrot.slane %v2871, 5
      %v2874 = vsel %vm2730, %v2869, %v2873
      %v2876 = vshrl.u32 %v379, 16
      %v2878 = vrot.slane %v2876, 4
      %v2879 = vshll.u32 %v379, 16
      %v2881 = vrot.slane %v2879, 5
      %v2882 = vor.u32 %v2878, %v2881
      %v2883 = vrot.slane %v2882, 4
      %v2885 = vshll.u32 %v380, 16
      %v2887 = vrot.slane %v2885, 5
      %v2888 = vsel %vm2730, %v2883, %v2887
      %v2889 = vshrl.u32 %v380, 16
      %v2891 = vrot.slane %v2889, 4
      %v2892 = vor.u32 %v2891, %v2887
      %v2893 = vrot.slane %v2892, 4
      %v2895 = vshll.u32 %v381, 16
      %v2897 = vrot.slane %v2895, 5
      %v2898 = vsel %vm2730, %v2893, %v2897
      %v2900 = vshrl.u32 %v382, 16
      %v2902 = vrot.slane %v2900, 4
      %v2903 = vshll.u32 %v382, 16
      %v2905 = vrot.slane %v2903, 5
      %v2906 = vor.u32 %v2902, %v2905
      %v2907 = vrot.slane %v2906, 4
      %v2909 = vshll.u32 %v383, 16
      %v2911 = vrot.slane %v2909, 5
      %v2912 = vsel %vm2730, %v2907, %v2911
      %v2913 = vshrl.u32 %v383, 16
      %v2915 = vrot.slane %v2913, 4
      %v2916 = vor.u32 %v2915, %v2911
      %v2917 = vrot.slane %v2916, 4
      %v2919 = vshll.u32 %v384, 16
      %v2921 = vrot.slane %v2919, 5
      %v2922 = vsel %vm2730, %v2917, %v2921
      %v2924 = vshrl.u32 %v385, 16
      %v2926 = vrot.slane %v2924, 4
      %v2927 = vshll.u32 %v385, 16
      %v2929 = vrot.slane %v2927, 5
      %v2930 = vor.u32 %v2926, %v2929
      %v2931 = vrot.slane %v2930, 4
      %v2933 = vshll.u32 %v386, 16
      %v2935 = vrot.slane %v2933, 5
      %v2936 = vsel %vm2730, %v2931, %v2935
      %v2937 = vshrl.u32 %v386, 16
      %v2939 = vrot.slane %v2937, 4
      %v2940 = vor.u32 %v2939, %v2935
      %v2941 = vrot.slane %v2940, 4
      %v2943 = vshll.u32 %v387, 16
      %v2945 = vrot.slane %v2943, 5
      %v2946 = vsel %vm2730, %v2941, %v2945
      %v2948 = vshrl.u32 %v388, 16
      %v2950 = vrot.slane %v2948, 4
      %v2951 = vshll.u32 %v388, 16
      %v2953 = vrot.slane %v2951, 5
      %v2954 = vor.u32 %v2950, %v2953
      %v2955 = vrot.slane %v2954, 4
      %v2957 = vshll.u32 %v389, 16
      %v2959 = vrot.slane %v2957, 5
      %v2960 = vsel %vm2730, %v2955, %v2959
      %v2961 = vshrl.u32 %v389, 16
      %v2963 = vrot.slane %v2961, 4
      %v2964 = vor.u32 %v2963, %v2959
      %v2965 = vrot.slane %v2964, 4
      %v2967 = vshll.u32 %v390, 16
      %v2969 = vrot.slane %v2967, 5
      %v2970 = vsel %vm2730, %v2965, %v2969
      %v2972 = vshrl.u32 %v391, 16
      %v2974 = vrot.slane %v2972, 4
      %v2975 = vshll.u32 %v391, 16
      %v2977 = vrot.slane %v2975, 5
      %v2978 = vor.u32 %v2974, %v2977
      %v2979 = vrot.slane %v2978, 4
      %v2981 = vshll.u32 %v392, 16
      %v2983 = vrot.slane %v2981, 5
      %v2984 = vsel %vm2730, %v2979, %v2983
      %v2985 = vshrl.u32 %v392, 16
      %v2987 = vrot.slane %v2985, 4
      %v2988 = vor.u32 %v2987, %v2983
      %v2989 = vrot.slane %v2988, 4
      %v2991 = vshll.u32 %v393, 16
      %v2993 = vrot.slane %v2991, 5
      %v2994 = vsel %vm2730, %v2989, %v2993
      %v2996 = vshrl.u32 %v394, 16
      %v2998 = vrot.slane %v2996, 4
      %v2999 = vshll.u32 %v394, 16
      %v3001 = vrot.slane %v2999, 5
      %v3002 = vor.u32 %v2998, %v3001
      %v3003 = vrot.slane %v3002, 4
      %v3005 = vshll.u32 %v395, 16
      %v3007 = vrot.slane %v3005, 5
      %v3008 = vsel %vm2730, %v3003, %v3007
      %v3009 = vshrl.u32 %v395, 16
      %v3011 = vrot.slane %v3009, 4
      %v3012 = vor.u32 %v3011, %v3007
      %v3013 = vrot.slane %v3012, 4
      %v3015 = vshll.u32 %v396, 16
      %v3017 = vrot.slane %v3015, 5
      %v3018 = vsel %vm2730, %v3013, %v3017
      %v3020 = vshrl.u32 %v397, 16
      %v3022 = vrot.slane %v3020, 4
      %v3023 = vshll.u32 %v397, 16
      %v3025 = vrot.slane %v3023, 5
      %v3026 = vor.u32 %v3022, %v3025
      %v3027 = vrot.slane %v3026, 4
      %v3029 = vshll.u32 %v398, 16
      %v3031 = vrot.slane %v3029, 5
      %v3032 = vsel %vm2730, %v3027, %v3031
      %v3033 = vshrl.u32 %v398, 16
      %v3035 = vrot.slane %v3033, 4
      %v3036 = vor.u32 %v3035, %v3031
      %v3037 = vrot.slane %v3036, 4
      %v3039 = vshll.u32 %v399, 16
      %v3041 = vrot.slane %v3039, 5
      %v3042 = vsel %vm2730, %v3037, %v3041
      %v3044 = vshrl.u32 %v400, 16
      %v3046 = vrot.slane %v3044, 4
      %v3047 = vshll.u32 %v400, 16
      %v3049 = vrot.slane %v3047, 5
      %v3050 = vor.u32 %v3046, %v3049
      %v3051 = vrot.slane %v3050, 4
      %v3053 = vshll.u32 %v401, 16
      %v3055 = vrot.slane %v3053, 5
      %v3056 = vsel %vm2730, %v3051, %v3055
      %v3057 = vshrl.u32 %v401, 16
      %v3059 = vrot.slane %v3057, 4
      %v3060 = vor.u32 %v3059, %v3055
      %v3061 = vrot.slane %v3060, 4
      %v3063 = vshll.u32 %v402, 16
      %v3065 = vrot.slane %v3063, 5
      %v3066 = vsel %vm2730, %v3061, %v3065
      %v3068 = vshrl.u32 %v403, 16
      %v3070 = vrot.slane %v3068, 4
      %v3071 = vshll.u32 %v403, 16
      %v3073 = vrot.slane %v3071, 5
      %v3074 = vor.u32 %v3070, %v3073
      %v3075 = vrot.slane %v3074, 4
      %v3077 = vshll.u32 %v404, 16
      %v3079 = vrot.slane %v3077, 5
      %v3080 = vsel %vm2730, %v3075, %v3079
      %v3081 = vshrl.u32 %v404, 16
      %v3083 = vrot.slane %v3081, 4
      %v3084 = vor.u32 %v3083, %v3079
      %v3085 = vrot.slane %v3084, 4
      %v3087 = vshll.u32 %v405, 16
      %v3089 = vrot.slane %v3087, 5
      %v3090 = vsel %vm2730, %v3085, %v3089
      %v3092 = vshrl.u32 %v406, 16
      %v3094 = vrot.slane %v3092, 4
      %v3095 = vshll.u32 %v406, 16
      %v3097 = vrot.slane %v3095, 5
      %v3098 = vor.u32 %v3094, %v3097
      %v3099 = vrot.slane %v3098, 4
      %v3101 = vshll.u32 %v407, 16
      %v3103 = vrot.slane %v3101, 5
      %v3104 = vsel %vm2730, %v3099, %v3103
      %v3105 = vshrl.u32 %v407, 16
      %v3107 = vrot.slane %v3105, 4
      %v3108 = vor.u32 %v3107, %v3103
      %v3109 = vrot.slane %v3108, 4
      %v3111 = vshll.u32 %v408, 16
      %v3113 = vrot.slane %v3111, 5
      %v3114 = vsel %vm2730, %v3109, %v3113
      %v3115 = vld [vmem:[%s4] sm:$0xf]
      %v3116 = vld [vmem:[%s4 + $0x4] sm:$0xf]
      %v3117 = vld [vmem:[%s4 + $0x8] sm:$0xf]
      %v3118 = vld [vmem:[%s4 + $0xc] sm:$0xf]
      %v3119 = vld [vmem:[%s4 + $0x10] sm:$0xf]
      %v3120 = vld [vmem:[%s4 + $0x14] sm:$0xf]
      %v3121 = vld [vmem:[%s4 + $0x18] sm:$0xf]
      %v3122 = vld [vmem:[%s4 + $0x1c] sm:$0xf]
      %v3123 = vld [vmem:[%s4 + $0x20] sm:$0xf]
      %v3124 = vld [vmem:[%s4 + $0x24] sm:$0xf]
      %v3125 = vld [vmem:[%s4 + $0x28] sm:$0xf]
      %v3126 = vld [vmem:[%s4 + $0x2c] sm:$0xf]
      %v3127 = vld [vmem:[%s4 + $0x30] sm:$0xf]
      %v3128 = vld [vmem:[%s4 + $0x34] sm:$0xf]
      %v3129 = vld [vmem:[%s4 + $0x38] sm:$0xf]
      %v3130 = vld [vmem:[%s4 + $0x3c] sm:$0xf]
      %v3131 = vunpack.c.l.b16 %v2744
      %v3132 = vunpack.c.l.b16 %v2754
      %v3133 = vunpack.c.l.b16 %v2768
      %v3134 = vunpack.c.l.b16 %v2778
      %v3135 = vunpack.c.l.b16 %v2792
      %v3136 = vunpack.c.l.b16 %v2802
      %v3137 = vunpack.c.l.b16 %v2816
      %v3138 = vunpack.c.l.b16 %v2826
      %v3139 = vunpack.c.l.b16 %v2840
      %v3140 = vunpack.c.l.b16 %v2850
      %v3141 = vunpack.c.l.b16 %v2864
      %v3142 = vunpack.c.l.b16 %v2874
      %v3143 = vunpack.c.l.b16 %v2888
      %v3144 = vunpack.c.l.b16 %v2898
      %v3145 = vunpack.c.l.b16 %v2912
      %v3146 = vunpack.c.l.b16 %v2922
      %v3147 = vunpack.c.l.b16 %v2936
      %v3148 = vunpack.c.l.b16 %v2946
      %v3149 = vunpack.c.l.b16 %v2960
      %v3150 = vunpack.c.l.b16 %v2970
      %v3151 = vunpack.c.l.b16 %v2984
      %v3152 = vunpack.c.l.b16 %v2994
      %v3153 = vunpack.c.l.b16 %v3008
      %v3154 = vunpack.c.l.b16 %v3018
      %v3155 = vunpack.c.l.b16 %v3032
      %v3156 = vunpack.c.l.b16 %v3042
      %v3157 = vunpack.c.l.b16 %v3056
      %v3158 = vunpack.c.l.b16 %v3066
      %v3159 = vunpack.c.l.b16 %v3080
      %v3160 = vunpack.c.l.b16 %v3090
      %v3161 = vunpack.c.l.b16 %v3104
      %v3162 = vunpack.c.l.b16 %v3114
      %v3163 = vpack.c.b16 %v3132, %v3131
      %v3164 = vpack.c.b16 %v3134, %v3133
      %v3165 = vpack.c.b16 %v3136, %v3135
      %v3166 = vpack.c.b16 %v3138, %v3137
      %v3167 = vpack.c.b16 %v3140, %v3139
      %v3168 = vpack.c.b16 %v3142, %v3141
      %v3169 = vpack.c.b16 %v3144, %v3143
      %v3170 = vpack.c.b16 %v3146, %v3145
      %v3171 = vpack.c.b16 %v3148, %v3147
      %v3172 = vpack.c.b16 %v3150, %v3149
      %v3173 = vpack.c.b16 %v3152, %v3151
      %v3174 = vpack.c.b16 %v3154, %v3153
      %v3175 = vpack.c.b16 %v3156, %v3155
      %v3176 = vpack.c.b16 %v3158, %v3157
      %v3177 = vpack.c.b16 %v3160, %v3159
      %v3178 = vpack.c.b16 %v3162, %v3161
      %v3211 = vunpack.c.l.b16 %v3115
      %v3212 = vunpack.c.l.b16 %v3116
      %v3213 = vunpack.c.l.b16 %v3117
      %v3214 = vunpack.c.l.b16 %v3118
      %v3215 = vunpack.c.l.b16 %v3119
      %v3216 = vunpack.c.l.b16 %v3120
      %v3217 = vunpack.c.l.b16 %v3121
      %v3218 = vunpack.c.l.b16 %v3122
      %v3219 = vunpack.c.l.b16 %v3123
      %v3220 = vunpack.c.l.b16 %v3124
      %v3221 = vunpack.c.l.b16 %v3125
      %v3222 = vunpack.c.l.b16 %v3126
      %v3223 = vunpack.c.l.b16 %v3127
      %v3224 = vunpack.c.l.b16 %v3128
      %v3225 = vunpack.c.l.b16 %v3129
      %v3226 = vunpack.c.l.b16 %v3130
      %v3227 = vpack.c.b16 %v3212, %v3211
      %v3228 = vpack.c.b16 %v3214, %v3213
      %v3229 = vpack.c.b16 %v3216, %v3215
      %v3230 = vpack.c.b16 %v3218, %v3217
      %v3231 = vpack.c.b16 %v3220, %v3219
      %v3232 = vpack.c.b16 %v3222, %v3221
      %v3233 = vpack.c.b16 %v3224, %v3223
      %v3234 = vpack.c.b16 %v3226, %v3225
      %3243 = vmatprep.subr.bf16.mxu0 0
      %3244 = vmatpush1.bf16.msra.mxu0 %v3234
      %3245 = vmatprep.subr.bf16.mxu0 0
      %3246 = vmatpush1.bf16.msra.mxu0 %v3233
      %3247 = vmatprep.subr.bf16.mxu0 0
      %3248 = vmatpush1.bf16.msra.mxu0 %v3232
      %3249 = vmatprep.subr.bf16.mxu0 0
      %3250 = vmatpush1.bf16.msra.mxu0 %v3231
      %3251 = vmatprep.subr.bf16.mxu0 0
      %3252 = vmatpush1.bf16.msra.mxu0 %v3230
      %3253 = vmatprep.subr.bf16.mxu0 0
      %3254 = vmatpush1.bf16.msra.mxu0 %v3229
      %3255 = vmatprep.subr.bf16.mxu0 0
      %3256 = vmatpush1.bf16.msra.mxu0 %v3228
      %3257 = vmatprep.subr.bf16.mxu0 0
      %3258 = vmatpush1.bf16.msra.mxu0 %v3227
      %3259 = vmatprep.subr.bf16.mxu0 0
      %3260 = vmatpush2.bf16.msra.mxu0 0
      %3261 = vmatprep.subr.bf16.mxu0 0
      %3262 = vmatpush2.bf16.msra.mxu0 0
      %3263 = vmatprep.subr.bf16.mxu0 0
      %3264 = vmatpush2.bf16.msra.mxu0 0
      %3265 = vmatprep.subr.bf16.mxu0 0
      %3266 = vmatpush2.bf16.msra.mxu0 0
      %3267 = vmatprep.subr.bf16.mxu0 0
      %3268 = vmatpush2.bf16.msra.mxu0 0
      %3269 = vmatprep.subr.bf16.mxu0 0
      %3270 = vmatpush2.bf16.msra.mxu0 0
      %3271 = vmatprep.subr.bf16.mxu0 0
      %3272 = vmatpush2.bf16.msra.mxu0 0
      %3273 = vmatprep.subr.bf16.mxu0 0
      %3274 = vmatpush2.bf16.msra.mxu0 0
      %3275 = vmatprep.mubr.bf16.mxu0 0
      %3276 = vmatmul.mubr.bf16.gmra.mxu0 %v3163
      %v3277 = vpop.f32.mrf.mxu0
      %v3278 = vadd.f32 0.0, %v3277
      %v3279 = vpop.f32.mrf.mxu0
      %v3280 = vpop.f32.mrf.mxu0
      %v3281 = vadd.f32 0.0, %v3280
      %v3282 = vpop.f32.mrf.mxu0
      %3283 = vmatprep.mubr.bf16.mxu0 0
      %3284 = vmatmul.mubr.bf16.gmra.mxu0 %v3164
      %v3285 = vpop.f32.mrf.mxu0
      %v3286 = vadd.f32 0.0, %v3285
      %v3287 = vpop.f32.mrf.mxu0
      %v3288 = vpop.f32.mrf.mxu0
      %v3289 = vadd.f32 0.0, %v3288
      %v3290 = vpop.f32.mrf.mxu0
      %3291 = vmatprep.mubr.bf16.mxu0 0
      %3292 = vmatmul.mubr.bf16.gmra.mxu0 %v3165
      %v3293 = vpop.f32.mrf.mxu0
      %v3294 = vadd.f32 0.0, %v3293
      %v3295 = vpop.f32.mrf.mxu0
      %v3296 = vpop.f32.mrf.mxu0
      %v3297 = vadd.f32 0.0, %v3296
      %v3298 = vpop.f32.mrf.mxu0
      %3299 = vmatprep.mubr.bf16.mxu0 0
      %3300 = vmatmul.mubr.bf16.gmra.mxu0 %v3166
      %v3301 = vpop.f32.mrf.mxu0
      %v3302 = vadd.f32 0.0, %v3301
      %v3303 = vpop.f32.mrf.mxu0
      %v3304 = vpop.f32.mrf.mxu0
      %v3305 = vadd.f32 0.0, %v3304
      %v3306 = vpop.f32.mrf.mxu0
      %3307 = vmatprep.mubr.bf16.mxu0 0
      %3308 = vmatmul.mubr.bf16.gmra.mxu0 %v3167
      %v3309 = vpop.f32.mrf.mxu0
      %v3310 = vadd.f32 0.0, %v3309
      %v3311 = vpop.f32.mrf.mxu0
      %v3312 = vpop.f32.mrf.mxu0
      %v3313 = vadd.f32 0.0, %v3312
      %v3314 = vpop.f32.mrf.mxu0
      %3315 = vmatprep.mubr.bf16.mxu0 0
      %3316 = vmatmul.mubr.bf16.gmra.mxu0 %v3168
      %v3317 = vpop.f32.mrf.mxu0
      %v3318 = vadd.f32 0.0, %v3317
      %v3319 = vpop.f32.mrf.mxu0
      %v3320 = vpop.f32.mrf.mxu0
      %v3321 = vadd.f32 0.0, %v3320
      %v3322 = vpop.f32.mrf.mxu0
      %3323 = vmatprep.mubr.bf16.mxu0 0
      %3324 = vmatmul.mubr.bf16.gmra.mxu0 %v3169
      %v3325 = vpop.f32.mrf.mxu0
      %v3326 = vadd.f32 0.0, %v3325
      %v3327 = vpop.f32.mrf.mxu0
      %v3328 = vpop.f32.mrf.mxu0
      %v3329 = vadd.f32 0.0, %v3328
      %v3330 = vpop.f32.mrf.mxu0
      %3331 = vmatprep.mubr.bf16.mxu0 0
      %3332 = vmatmul.mubr.bf16.gmra.mxu0 %v3170
      %v3333 = vpop.f32.mrf.mxu0
      %v3334 = vadd.f32 0.0, %v3333
      %v3335 = vpop.f32.mrf.mxu0
      %v3336 = vpop.f32.mrf.mxu0
      %v3337 = vadd.f32 0.0, %v3336
      %v3338 = vpop.f32.mrf.mxu0
      %3339 = vmatprep.mubr.bf16.mxu0 0
      %3340 = vmatmul.mubr.bf16.gmra.mxu0 %v3171
      %v3341 = vpop.f32.mrf.mxu0
      %v3342 = vadd.f32 0.0, %v3341
      %v3343 = vpop.f32.mrf.mxu0
      %v3344 = vpop.f32.mrf.mxu0
      %v3345 = vadd.f32 0.0, %v3344
      %v3346 = vpop.f32.mrf.mxu0
      %3347 = vmatprep.mubr.bf16.mxu0 0
      %3348 = vmatmul.mubr.bf16.gmra.mxu0 %v3172
      %v3349 = vpop.f32.mrf.mxu0
      %v3350 = vadd.f32 0.0, %v3349
      %v3351 = vpop.f32.mrf.mxu0
      %v3352 = vpop.f32.mrf.mxu0
      %v3353 = vadd.f32 0.0, %v3352
      %v3354 = vpop.f32.mrf.mxu0
      %3355 = vmatprep.mubr.bf16.mxu0 0
      %3356 = vmatmul.mubr.bf16.gmra.mxu0 %v3173
      %v3357 = vpop.f32.mrf.mxu0
      %v3358 = vadd.f32 0.0, %v3357
      %v3359 = vpop.f32.mrf.mxu0
      %v3360 = vpop.f32.mrf.mxu0
      %v3361 = vadd.f32 0.0, %v3360
      %v3362 = vpop.f32.mrf.mxu0
      %3363 = vmatprep.mubr.bf16.mxu0 0
      %3364 = vmatmul.mubr.bf16.gmra.mxu0 %v3174
      %v3365 = vpop.f32.mrf.mxu0
      %v3366 = vadd.f32 0.0, %v3365
      %v3367 = vpop.f32.mrf.mxu0
      %v3368 = vpop.f32.mrf.mxu0
      %v3369 = vadd.f32 0.0, %v3368
      %v3370 = vpop.f32.mrf.mxu0
      %3371 = vmatprep.mubr.bf16.mxu0 0
      %3372 = vmatmul.mubr.bf16.gmra.mxu0 %v3175
      %v3373 = vpop.f32.mrf.mxu0
      %v3374 = vadd.f32 0.0, %v3373
      %v3375 = vpop.f32.mrf.mxu0
      %v3376 = vpop.f32.mrf.mxu0
      %v3377 = vadd.f32 0.0, %v3376
      %v3378 = vpop.f32.mrf.mxu0
      %3379 = vmatprep.mubr.bf16.mxu0 0
      %3380 = vmatmul.mubr.bf16.gmra.mxu0 %v3176
      %v3381 = vpop.f32.mrf.mxu0
      %v3382 = vadd.f32 0.0, %v3381
      %v3383 = vpop.f32.mrf.mxu0
      %v3384 = vpop.f32.mrf.mxu0
      %v3385 = vadd.f32 0.0, %v3384
      %v3386 = vpop.f32.mrf.mxu0
      %3387 = vmatprep.mubr.bf16.mxu0 0
      %3388 = vmatmul.mubr.bf16.gmra.mxu0 %v3177
      %v3389 = vpop.f32.mrf.mxu0
      %v3390 = vadd.f32 0.0, %v3389
      %v3391 = vpop.f32.mrf.mxu0
      %v3392 = vpop.f32.mrf.mxu0
      %v3393 = vadd.f32 0.0, %v3392
      %v3394 = vpop.f32.mrf.mxu0
      %3395 = vmatprep.mubr.bf16.mxu0 0
      %3396 = vmatmul.mubr.bf16.gmra.mxu0 %v3178
      %v3397 = vpop.f32.mrf.mxu0
      %v3398 = vadd.f32 0.0, %v3397
      %v3399 = vpop.f32.mrf.mxu0
      %v3400 = vpop.f32.mrf.mxu0
      %v3401 = vadd.f32 0.0, %v3400
      %v3402 = vpop.f32.mrf.mxu0
      %3403 = vdwg.mxu0
      %v3404 = vld [vmem:[%s5] sm:$0x1]
      %v3406 = vlaneseq
      %v3407 = vshrl.u32 %v3406, 7
      %v3408 = vsub.s32 0, %v3407
      %v3409 = vrot.slane %v3404, %v3408
      %v3411 = vmul.f32 %v3278, %v3409
      %v3412 = vmul.f32 %v3281, %v3409
      %v3413 = vmul.f32 %v3286, %v3409
      %v3414 = vmul.f32 %v3289, %v3409
      %v3415 = vmul.f32 %v3294, %v3409
      %v3416 = vmul.f32 %v3297, %v3409
      %v3417 = vmul.f32 %v3302, %v3409
      %v3418 = vmul.f32 %v3305, %v3409
      %v3419 = vmul.f32 %v3310, %v3409
      %v3420 = vmul.f32 %v3313, %v3409
      %v3421 = vmul.f32 %v3318, %v3409
      %v3422 = vmul.f32 %v3321, %v3409
      %v3423 = vmul.f32 %v3326, %v3409
      %v3424 = vmul.f32 %v3329, %v3409
      %v3425 = vmul.f32 %v3334, %v3409
      %v3426 = vmul.f32 %v3337, %v3409
      %v3427 = vmul.f32 %v3342, %v3409
      %v3428 = vmul.f32 %v3345, %v3409
      %v3429 = vmul.f32 %v3350, %v3409
      %v3430 = vmul.f32 %v3353, %v3409
      %v3431 = vmul.f32 %v3358, %v3409
      %v3432 = vmul.f32 %v3361, %v3409
      %v3433 = vmul.f32 %v3366, %v3409
      %v3434 = vmul.f32 %v3369, %v3409
      %v3435 = vmul.f32 %v3374, %v3409
      %v3436 = vmul.f32 %v3377, %v3409
      %v3437 = vmul.f32 %v3382, %v3409
      %v3438 = vmul.f32 %v3385, %v3409
      %v3439 = vmul.f32 %v3390, %v3409
      %v3440 = vmul.f32 %v3393, %v3409
      %v3441 = vmul.f32 %v3398, %v3409
      %v3442 = vmul.f32 %v3401, %v3409
      %v3443 = vld [vmem:[%s6] sm:$0x1]
      %v3445 = vlaneseq
      %v3446 = vshrl.u32 %v3445, 7
      %v3447 = vsub.s32 0, %v3446
      %v3448 = vrot.slane %v3443, %v3447
      %v3450 = vadd.f32 %v3411, %v3448
      %v3451 = vadd.f32 %v3412, %v3448
      %v3452 = vadd.f32 %v3413, %v3448
      %v3453 = vadd.f32 %v3414, %v3448
      %v3454 = vadd.f32 %v3415, %v3448
      %v3455 = vadd.f32 %v3416, %v3448
      %v3456 = vadd.f32 %v3417, %v3448
      %v3457 = vadd.f32 %v3418, %v3448
      %v3458 = vadd.f32 %v3419, %v3448
      %v3459 = vadd.f32 %v3420, %v3448
      %v3460 = vadd.f32 %v3421, %v3448
      %v3461 = vadd.f32 %v3422, %v3448
      %v3462 = vadd.f32 %v3423, %v3448
      %v3463 = vadd.f32 %v3424, %v3448
      %v3464 = vadd.f32 %v3425, %v3448
      %v3465 = vadd.f32 %v3426, %v3448
      %v3466 = vadd.f32 %v3427, %v3448
      %v3467 = vadd.f32 %v3428, %v3448
      %v3468 = vadd.f32 %v3429, %v3448
      %v3469 = vadd.f32 %v3430, %v3448
      %v3470 = vadd.f32 %v3431, %v3448
      %v3471 = vadd.f32 %v3432, %v3448
      %v3472 = vadd.f32 %v3433, %v3448
      %v3473 = vadd.f32 %v3434, %v3448
      %v3474 = vadd.f32 %v3435, %v3448
      %v3475 = vadd.f32 %v3436, %v3448
      %v3476 = vadd.f32 %v3437, %v3448
      %v3477 = vadd.f32 %v3438, %v3448
      %v3478 = vadd.f32 %v3439, %v3448
      %v3479 = vadd.f32 %v3440, %v3448
      %v3480 = vadd.f32 %v3441, %v3448
      %v3481 = vadd.f32 %v3442, %v3448
      %v3482 = vpack.c.bf16 %v3451, %v3450
      %v3483 = vpack.c.bf16 %v3453, %v3452
      %v3484 = vpack.c.bf16 %v3455, %v3454
      %v3485 = vpack.c.bf16 %v3457, %v3456
      %v3486 = vpack.c.bf16 %v3459, %v3458
      %v3487 = vpack.c.bf16 %v3461, %v3460
      %v3488 = vpack.c.bf16 %v3463, %v3462
      %v3489 = vpack.c.bf16 %v3465, %v3464
      %v3490 = vpack.c.bf16 %v3467, %v3466
      %v3491 = vpack.c.bf16 %v3469, %v3468
      %v3492 = vpack.c.bf16 %v3471, %v3470
      %v3493 = vpack.c.bf16 %v3473, %v3472
      %v3494 = vpack.c.bf16 %v3475, %v3474
      %v3495 = vpack.c.bf16 %v3477, %v3476
      %v3496 = vpack.c.bf16 %v3479, %v3478
      %v3497 = vpack.c.bf16 %v3481, %v3480
      %v3514 = vunpack.c.l.b16 %v3482
      %v3515 = vunpack.c.h.b16 %v3482
      %v3516 = vunpack.c.l.b16 %v3483
      %v3517 = vunpack.c.h.b16 %v3483
      %v3518 = vunpack.c.l.b16 %v3484
      %v3519 = vunpack.c.h.b16 %v3484
      %v3520 = vunpack.c.l.b16 %v3485
      %v3521 = vunpack.c.h.b16 %v3485
      %v3522 = vunpack.c.l.b16 %v3486
      %v3523 = vunpack.c.h.b16 %v3486
      %v3524 = vunpack.c.l.b16 %v3487
      %v3525 = vunpack.c.h.b16 %v3487
      %v3526 = vunpack.c.l.b16 %v3488
      %v3527 = vunpack.c.h.b16 %v3488
      %v3528 = vunpack.c.l.b16 %v3489
      %v3529 = vunpack.c.h.b16 %v3489
      %v3530 = vunpack.c.l.b16 %v3490
      %v3531 = vunpack.c.h.b16 %v3490
      %v3532 = vunpack.c.l.b16 %v3491
      %v3533 = vunpack.c.h.b16 %v3491
      %v3534 = vunpack.c.l.b16 %v3492
      %v3535 = vunpack.c.h.b16 %v3492
      %v3536 = vunpack.c.l.b16 %v3493
      %v3537 = vunpack.c.h.b16 %v3493
      %v3538 = vunpack.c.l.b16 %v3494
      %v3539 = vunpack.c.h.b16 %v3494
      %v3540 = vunpack.c.l.b16 %v3495
      %v3541 = vunpack.c.h.b16 %v3495
      %v3542 = vunpack.c.l.b16 %v3496
      %v3543 = vunpack.c.h.b16 %v3496
      %v3544 = vunpack.c.l.b16 %v3497
      %v3545 = vunpack.c.h.b16 %v3497
      %v3546 = vpack.c.b16 %v3514, %v3514
      %v3547 = vpack.c.b16 %v3515, %v3515
      %v3548 = vpack.c.b16 %v3516, %v3516
      %v3549 = vpack.c.b16 %v3517, %v3517
      %v3550 = vpack.c.b16 %v3518, %v3518
      %v3551 = vpack.c.b16 %v3519, %v3519
      %v3552 = vpack.c.b16 %v3520, %v3520
      %v3553 = vpack.c.b16 %v3521, %v3521
      %v3554 = vpack.c.b16 %v3522, %v3522
      %v3555 = vpack.c.b16 %v3523, %v3523
      %v3556 = vpack.c.b16 %v3524, %v3524
      %v3557 = vpack.c.b16 %v3525, %v3525
      %v3558 = vpack.c.b16 %v3526, %v3526
      %v3559 = vpack.c.b16 %v3527, %v3527
      %v3560 = vpack.c.b16 %v3528, %v3528
      %v3561 = vpack.c.b16 %v3529, %v3529
      %v3562 = vpack.c.b16 %v3530, %v3530
      %v3563 = vpack.c.b16 %v3531, %v3531
      %v3564 = vpack.c.b16 %v3532, %v3532
      %v3565 = vpack.c.b16 %v3533, %v3533
      %v3566 = vpack.c.b16 %v3534, %v3534
      %v3567 = vpack.c.b16 %v3535, %v3535
      %v3568 = vpack.c.b16 %v3536, %v3536
      %v3569 = vpack.c.b16 %v3537, %v3537
      %v3570 = vpack.c.b16 %v3538, %v3538
      %v3571 = vpack.c.b16 %v3539, %v3539
      %v3572 = vpack.c.b16 %v3540, %v3540
      %v3573 = vpack.c.b16 %v3541, %v3541
      %v3574 = vpack.c.b16 %v3542, %v3542
      %v3575 = vpack.c.b16 %v3543, %v3543
      %v3576 = vpack.c.b16 %v3544, %v3544
      %v3577 = vpack.c.b16 %v3545, %v3545
      %3610 = vst [vmem:[%s351] sm:$0xf] %v3546
      %3611 = vst [vmem:[%s351 + $0x4] sm:$0xf] %v3547
      %3612 = vst [vmem:[%s351 + $0x8] sm:$0xf] %v3548
      %3613 = vst [vmem:[%s351 + $0xc] sm:$0xf] %v3549
      %3614 = vst [vmem:[%s351 + $0x10] sm:$0xf] %v3550
      %3615 = vst [vmem:[%s351 + $0x14] sm:$0xf] %v3551
      %3616 = vst [vmem:[%s351 + $0x18] sm:$0xf] %v3552
      %3617 = vst [vmem:[%s351 + $0x1c] sm:$0xf] %v3553
      %3618 = vst [vmem:[%s351 + $0x20] sm:$0xf] %v3554
      %3619 = vst [vmem:[%s351 + $0x24] sm:$0xf] %v3555
      %3620 = vst [vmem:[%s351 + $0x28] sm:$0xf] %v3556
      %3621 = vst [vmem:[%s351 + $0x2c] sm:$0xf] %v3557
      %3622 = vst [vmem:[%s351 + $0x30] sm:$0xf] %v3558
      %3623 = vst [vmem:[%s351 + $0x34] sm:$0xf] %v3559
      %3624 = vst [vmem:[%s351 + $0x38] sm:$0xf] %v3560
      %3625 = vst [vmem:[%s351 + $0x3c] sm:$0xf] %v3561
      %3626 = vst [vmem:[%s351 + $0x40] sm:$0xf] %v3562
      %3627 = vst [vmem:[%s351 + $0x44] sm:$0xf] %v3563
      %3628 = vst [vmem:[%s351 + $0x48] sm:$0xf] %v3564
      %3629 = vst [vmem:[%s351 + $0x4c] sm:$0xf] %v3565
      %3630 = vst [vmem:[%s351 + $0x50] sm:$0xf] %v3566
      %3631 = vst [vmem:[%s351 + $0x54] sm:$0xf] %v3567
      %3632 = vst [vmem:[%s351 + $0x58] sm:$0xf] %v3568
      %3633 = vst [vmem:[%s351 + $0x5c] sm:$0xf] %v3569
      %3634 = vst [vmem:[%s351 + $0x60] sm:$0xf] %v3570
      %3635 = vst [vmem:[%s351 + $0x64] sm:$0xf] %v3571
      %3636 = vst [vmem:[%s351 + $0x68] sm:$0xf] %v3572
      %3637 = vst [vmem:[%s351 + $0x6c] sm:$0xf] %v3573
      %3638 = vst [vmem:[%s351 + $0x70] sm:$0xf] %v3574
      %3639 = vst [vmem:[%s351 + $0x74] sm:$0xf] %v3575
      %3640 = vst [vmem:[%s351 + $0x78] sm:$0xf] %v3576
      %3641 = vst [vmem:[%s351 + $0x7c] sm:$0xf] %v3577
      %s3642 = smul.u32 32, %s25
      %p3643 = scmp.lt.s32.totalorder %s24, 1
      %s3644 = scalar_select %p3643, %s24, 1
      %p3645 = scmp.lt.s32.totalorder %s3642, 31
      %s3646 = scalar_select %p3645, %s3642, 31
      %s3647 = smul.addr %s3644, 32
      %s3648 = sadd.s32 %s3646, %s3647
      %s3649 = smul.addr %s3648, 4
      %s3650 = scalar_lea.vmem %s7, %s3649
      %s3651 = smul.u32 32, %s25
      %p3652 = scmp.lt.s32.totalorder %s24, 1
      %s3653 = scalar_select %p3652, %s24, 1
      %p3654 = scmp.lt.s32.totalorder %s3651, 31
      %s3655 = scalar_select %p3654, %s3651, 31
      %s3656 = smul.addr %s3653, 32
      %s3657 = sadd.s32 %s3655, %s3656
      %s3658 = smul.addr %s3657, 4
      %s3659 = scalar_lea.vmem %s8, %s3658
      // Predicated region
      $region49: #{basic_block_forward.2} parent=47 // pred_check
        %p3660 = pneg %p204
      $region50: #{basic_block_forward.2} parent=47 // pred_check_branch
        %3662 = sbr.rel (%p3660) target = $region52
      $region51: #{basic_block_forward.2} parent=47 // pred_region
        %s3663 = smul.u32 32, %s25
      $region52: #{basic_block_forward.2} parent=47 // pred_fallthru
        _
      // Predicated region
      $region53: #{basic_block_forward.2} parent=47 // pred_check
        %p3664 = pneg %p232
      $region54: #{basic_block_forward.2} parent=47 // pred_check_branch
        %3666 = sbr.rel (%p3664) target = $region56
      $region55: #{basic_block_forward.2} parent=47 // pred_region
        %s3667 = smul.u32 32, %s25
      $region56: #{basic_block_forward.2} parent=47 // pred_fallthru
        _
    $region48: #{basic_block_forward.2} parent=5 // pred_fallthru
      _
    %p3668 = scmp.le.s32.totalorder 2, %s15
    // Predicated region
    $region57: #{basic_block_forward.2} parent=5 // pred_check
      %p3669 = pneg %p3668
    $region58: #{basic_block_forward.2} parent=5 // pred_check_branch
      %3671 = sbr.rel (%p3669) target = $region60
    $region59: #{basic_block_forward.2} parent=5 // pred_region
      %s3672 = ssub.s32 %s15, 2
      // Predicated region
      $region61: #{basic_block_forward.2} parent=59 // pred_check
        %p3673 = pneg %p210
      $region62: #{basic_block_forward.2} parent=59 // pred_check_branch
        %3675 = sbr.rel (%p3673) target = $region64
      $region63: #{basic_block_forward.2} parent=59 // pred_region
        %s3676 = smul.u32 32, %s27
        %p3677 = scmp.lt.s32.totalorder %s26, 1
        %s3678 = scalar_select %p3677, %s26, 1
        %p3679 = scmp.lt.s32.totalorder %s3676, 31
        %s3680 = scalar_select %p3679, %s3676, 31
        %s3681 = smul.addr %s3678, 32
        %s3682 = sadd.s32 %s3680, %s3681
        %s3683 = smul.addr %s3682, 4
        %s3684 = scalar_lea.vmem %s7, %s3683
      $region64: #{basic_block_forward.2} parent=59 // pred_fallthru
        _
      // Predicated region
      $region65: #{basic_block_forward.2} parent=59 // pred_check
        %p3685 = pneg %p238
      $region66: #{basic_block_forward.2} parent=59 // pred_check_branch
        %3687 = sbr.rel (%p3685) target = $region68
      $region67: #{basic_block_forward.2} parent=59 // pred_region
        %s3688 = smul.u32 32, %s27
        %p3689 = scmp.lt.s32.totalorder %s26, 1
        %s3690 = scalar_select %p3689, %s26, 1
        %p3691 = scmp.lt.s32.totalorder %s3688, 31
        %s3692 = scalar_select %p3691, %s3688, 31
        %s3693 = smul.addr %s3690, 32
        %s3694 = sadd.s32 %s3692, %s3693
        %s3695 = smul.addr %s3694, 4
        %s3696 = scalar_lea.vmem %s8, %s3695
      $region68: #{basic_block_forward.2} parent=59 // pred_fallthru
        _
    $region60: #{basic_block_forward.2} parent=5 // pred_fallthru
      _
  $region6: #{basic_block_forward.2} parent=0 // loop_footer
    %s19 = sadd.s32 1, %s15
  $region7: #{basic_block_forward.2} parent=0 // loop_footer_branch
    %14 = sbr.rel target = $region3
  $region8: #{basic_block_forward.2} parent=0 // loop_exit
    _

</llo_original>
